<compile_context>
chip_gen: v7x
topology: tpu7x:2x2x1
jax: 0.10.0
libtpu: 0.0.40
codegen_flags: <defaults>
</compile_context>

<pallas_src>
import jax
import jax.numpy as jnp
from jax.experimental import pallas as pl
from jax.experimental.pallas import tpu as pltpu

NUM_LAYERS = 3
BN_EPS = 1e-5
NEG_INF = -1e30


# ---------------------------------------------------------------------------
# Kernel
# ---------------------------------------------------------------------------
def _make_kernel(a_resident: bool, tile_m: int):
    """Build the fused GIN kernel.  `a_resident` / `tile_m` are static."""

    def kernel(x_hbm, a_in, pT_ref,
               w1_ref, b1_ref, w2_ref, b2_ref,
               wl1_ref, bl1_ref, wl2_ref, bl2_ref,
               out_ref, *scratch):
        if a_resident:
            h0, h1, pooled, a_vmem, sem = scratch
        else:
            h0, h1, pooled, sem = scratch
            a_vmem = None

        l = pl.program_id(0)                 # GIN layer index
        i = pl.program_id(1)                 # node row-tile index
        n_tiles = pl.num_programs(1)
        row0 = pl.multiple_of(i * tile_m, 128)   # aligned stripe start

        # One-time setup at the very first grid step: zero the pooling
        # accumulator and DMA x (and A, on the resident fast path) into VMEM.
        @pl.when(jnp.logical_and(l == 0, i == 0))
        def _():
            pooled[...] = jnp.zeros_like(pooled)
            cx = pltpu.make_async_copy(x_hbm, h0, sem.at[0])
            cx.start()
            if a_resident:
                ca = pltpu.make_async_copy(a_in, a_vmem, sem.at[1])
                ca.start()
                ca.wait()
            cx.wait()

        def a_stripe():
            if a_resident:
                return a_vmem[pl.ds(row0, tile_m), :]
            return a_in[...]                 # streamed (tile_m, n_pad) block

        def gin_layer(src_ref, dst_ref, pool):
            # eps = 0 -> the self term is a plain add on top of A @ H.
            h_self = src_ref[pl.ds(row0, tile_m), :].astype(jnp.float32)
            agg = h_self + jnp.dot(a_stripe(), src_ref[...],
                                   preferred_element_type=jnp.float32)
            # Linear (+ folded BatchNorm) + ReLU
            y = jnp.dot(agg.astype(jnp.bfloat16), w1_ref[...],
                        preferred_element_type=jnp.float32) + b1_ref[...]
            y = jnp.maximum(y, 0.0)
            # Linear + ReLU
            y = jnp.dot(y.astype(jnp.bfloat16), w2_ref[...],
                        preferred_element_type=jnp.float32) + b2_ref[...]
            y = jnp.maximum(y, 0.0)
            if pool:
                # global_add_pool folded into the stripe loop:
                # pooled += P^T[:, stripe] @ y   (padded node columns are 0).
                pooled[...] += jnp.dot(pT_ref[...], y.astype(jnp.bfloat16),
                                       preferred_element_type=jnp.float32)
            else:
                dst_ref[pl.ds(row0, tile_m), :] = y.astype(jnp.bfloat16)

        # Static ping-pong keeps H resident in VMEM across all three layers:
        #   layer 0: h0(=x) -> h1,  layer 1: h1 -> h0,  layer 2: h0 -> pooled.
        @pl.when(l == 0)
        def _():
            gin_layer(h0, h1, pool=False)

        @pl.when(l == 1)
        def _():
            gin_layer(h1, h0, pool=False)

        @pl.when(l == 2)
        def _():
            gin_layer(h0, None, pool=True)

        # Classifier head on the tiny (g_pad, d) pooled accumulator.
        @pl.when(jnp.logical_and(l == NUM_LAYERS - 1, i == n_tiles - 1))
        def _():
            g = pooled[...]
            z = jnp.dot(g.astype(jnp.bfloat16), wl1_ref[...],
                        preferred_element_type=jnp.float32) + bl1_ref[...]
            z = jnp.maximum(z, 0.0)
            # dropout (eval mode) == identity
            logits = jnp.dot(z.astype(jnp.bfloat16), wl2_ref[...],
                             preferred_element_type=jnp.float32) + bl2_ref[...]
            # Padded class columns carry a -1e30 bias -> vanish from the reduce.
            m = jnp.max(logits, axis=-1, keepdims=True)
            sh = logits - m
            lse = jnp.log(jnp.sum(jnp.exp(sh), axis=-1, keepdims=True))
            out_ref[...] = sh - lse

    return kernel


# ---------------------------------------------------------------------------
# Wrapper helpers
# ---------------------------------------------------------------------------
def _round_up(x, m):
    return ((x + m - 1) // m) * m


def _pad2(a, rows, cols, fill=0.0):
    out = jnp.full((rows, cols), fill, a.dtype)
    return out.at[: a.shape[0], : a.shape[1]].set(a)


def _device_budget():
    """(vmem_limit_bytes or None, planning budget in bytes)."""
    try:
        kind = jax.devices()[0].device_kind.lower()
    except Exception:
        kind = ""
    if "v7" in kind:                      # 64 MiB VMEM per TensorCore
        return 48 << 20, 48 << 20
    if "v5" in kind or "v6" in kind:      # 128 MiB VMEM
        return 96 << 20, 96 << 20
    return None, 28 << 20                 # unknown: plan conservatively


def _plan_tiles(n, d, g_pad, c_pad, budget):
    """Pick (tile_m, n_pad, a_resident) from the actual VMEM budget."""
    margin = 3 << 20
    fixed_small = (
        2 * (2 * d * d * 2 + 2 * d * 4)                          # W1/W2/b1/b2 (x2 buf)
        + 2 * (d * d * 2 + d * 4 + d * c_pad * 2 + c_pad * 4)    # classifier head
        + 2 * g_pad * c_pad * 4                                  # output block
        + g_pad * d * 4                                          # pooled accumulator
        + margin)

    n128 = _round_up(n, 128)
    cands = [t for t in (1024, 512, 256, 128) if t <= n128]
    if n128 <= 1024 and n128 not in cands:
        cands.append(n128)
    cands = sorted(set(cands), reverse=True)

    best_res, best_str = None, None
    for tm in cands:
        n_pad = _round_up(n, tm)
        base = (fixed_small
                + 2 * n_pad * d * 2          # h0 + h1 residents
                + n_pad * d * 2              # safety: full-H matmul operand temp
                + 2 * g_pad * tm * 2         # P^T stripes (double-buffered)
                + 24 * tm * d)               # per-stripe f32/bf16 temporaries
        res_need = base + n_pad * n_pad * 2 + tm * n_pad * 2   # A resident (+slice temp)
        str_need = base + 2 * tm * n_pad * 2                   # A stripes (double-buffered)
        if best_res is None and res_need <= budget:
            best_res = (tm, n_pad)
        if best_str is None and str_need <= budget:
            best_str = (tm, n_pad)

    if best_res is not None:
        return best_res[0], best_res[1], True
    if best_str is not None:
        return best_str[0], best_str[1], False
    return 128, _round_up(n, 128), False     # very large graphs: best effort


def _fold_bn(w, b, bn):
    """Fold eval-mode BatchNorm1d into the preceding Linear (w: [in, out])."""
    scale = bn["gamma"] / jnp.sqrt(bn["var"] + BN_EPS)
    return w * scale[None, :], (b - bn["mean"]) * scale + bn["beta"]


# ---------------------------------------------------------------------------
# Forward
# ---------------------------------------------------------------------------
def net_gin_w_forward(params, x, edge_index, edge_weight, batch, num_graphs,
                      *, _force_path=None):
    n, f = x.shape
    nhid = params["gin"][0]["lin2"]["w"].shape[0]
    n_classes = params["lin2"]["w"].shape[1]

    d = _round_up(max(f, nhid), 128)          # lane-dense working width
    c_pad = _round_up(n_classes, 128)         # lane-dense class dim
    g_pad = _round_up(num_graphs, 16)

    vmem_limit, budget = _device_budget()
    tile_m, n_pad, a_resident = _plan_tiles(n, d, g_pad, c_pad, budget)
    if _force_path == "stream":
        a_resident = False
    elif _force_path == "resident":
        a_resident = True
    n_tiles = n_pad // tile_m

    # Dense weighted adjacency A[dst, src] = w (no self loops; the eps=0 self
    # term is added inside the kernel).  bf16 halves the dominant HBM stream.
    a = jnp.zeros((n_pad, n_pad), jnp.float32)
    a = a.at[edge_index[1], edge_index[0]].add(edge_weight)
    a = a.astype(jnp.bfloat16)

    x_p = _pad2(x.astype(jnp.float32), n_pad, d).astype(jnp.bfloat16)

    # Transposed pooling one-hot: P^T[g, j] = 1 iff node j belongs to graph g.
    # Padded node columns stay zero, so padded H rows never reach pooling.
    pool_t = jnp.zeros((g_pad, n_pad), jnp.float32)
    pool_t = pool_t.at[batch.astype(jnp.int32), jnp.arange(n)].set(1.0)
    pool_t = pool_t.astype(jnp.bfloat16)

    # Fold BN into the first Linear of each GIN MLP, lane-pad, stack per layer.
    w1s, b1s, w2s, b2s = [], [], [], []
    for layer in params["gin"]:
        w1, b1 = _fold_bn(layer["lin1"]["w"], layer["lin1"]["b"], layer["bn"])
        w1s.append(_pad2(w1, d, d))
        b1s.append(_pad2(b1[None, :], 1, d))
        w2s.append(_pad2(layer["lin2"]["w"], d, d))
        b2s.append(_pad2(layer["lin2"]["b"][None, :], 1, d))
    w1s = jnp.stack(w1s).astype(jnp.bfloat16)          # [3, D, D]
    b1s = jnp.stack(b1s)                                # [3, 1, D] f32
    w2s = jnp.stack(w2s).astype(jnp.bfloat16)
    b2s = jnp.stack(b2s)

    wl1 = _pad2(params["lin1"]["w"], d, d).astype(jnp.bfloat16)
    bl1 = _pad2(params["lin1"]["b"][None, :], 1, d)
    wl2 = _pad2(params["lin2"]["w"], d, c_pad).astype(jnp.bfloat16)
    bl2 = _pad2(params["lin2"]["b"][None, :], 1, c_pad, fill=NEG_INF)

    grid = (NUM_LAYERS, n_tiles)

    a_spec = (pl.BlockSpec(memory_space=pl.ANY) if a_resident
              else pl.BlockSpec((tile_m, n_pad), lambda l, i: (i, 0)))

    in_specs = [
        pl.BlockSpec(memory_space=pl.ANY),                     # x (HBM -> h0 once)
        a_spec,                                                # A (resident or streamed)
        pl.BlockSpec((g_pad, tile_m), lambda l, i: (0, i)),    # P^T stripe
        pl.BlockSpec((None, d, d), lambda l, i: (l, 0, 0)),    # W1 (BN folded)
        pl.BlockSpec((None, 1, d), lambda l, i: (l, 0, 0)),    # b1
        pl.BlockSpec((None, d, d), lambda l, i: (l, 0, 0)),    # W2
        pl.BlockSpec((None, 1, d), lambda l, i: (l, 0, 0)),    # b2
        pl.BlockSpec((d, d), lambda l, i: (0, 0)),             # head lin1 W
        pl.BlockSpec((1, d), lambda l, i: (0, 0)),             # head lin1 b
        pl.BlockSpec((d, c_pad), lambda l, i: (0, 0)),         # head lin2 W
        pl.BlockSpec((1, c_pad), lambda l, i: (0, 0)),         # head lin2 b
    ]
    out_spec = pl.BlockSpec((g_pad, c_pad), lambda l, i: (0, 0))

    scratch_shapes = [
        pltpu.VMEM((n_pad, d), jnp.bfloat16),      # h0 (resident node features)
        pltpu.VMEM((n_pad, d), jnp.bfloat16),      # h1
        pltpu.VMEM((g_pad, d), jnp.float32),       # pooled accumulator
    ]
    if a_resident:
        scratch_shapes.append(pltpu.VMEM((n_pad, n_pad), jnp.bfloat16))  # A resident
    scratch_shapes.append(pltpu.SemaphoreType.DMA((2,)))

    grid_spec = pltpu.PrefetchScalarGridSpec(
        num_scalar_prefetch=0,
        grid=grid,
        in_specs=in_specs,
        out_specs=out_spec,
        scratch_shapes=scratch_shapes,
    )

    a_fetches = 1 if a_resident else NUM_LAYERS
    flops = int(
        NUM_LAYERS * (2 * n_pad * n_pad * d + 4 * n_pad * d * d)
        + 2 * g_pad * n_pad * d + 2 * g_pad * d * d + 2 * g_pad * d * c_pad)
    bytes_accessed = int(
        a_fetches * n_pad * n_pad * 2                        # A
        + n_pad * d * 2 + g_pad * n_pad * 2                  # x + P^T
        + (2 * NUM_LAYERS * d * d + d * d + d * c_pad) * 2   # bf16 weights
        + (2 * NUM_LAYERS * d + d + c_pad) * 4               # f32 biases
        + g_pad * c_pad * 4)                                 # output
    cost = pl.CostEstimate(flops=flops,
                           transcendentals=int(g_pad * c_pad),
                           bytes_accessed=bytes_accessed)

    compiler_params = pltpu.CompilerParams(
        # Both axes 'arbitrary': the resident H scratch carries a dependency
        # from every row tile of layer k to every row tile of layer k+1.
        dimension_semantics=("arbitrary", "arbitrary"),
        vmem_limit_bytes=vmem_limit,
    )

    out = pl.pallas_call(
        _make_kernel(a_resident, tile_m),
        out_shape=jax.ShapeDtypeStruct((g_pad, c_pad), jnp.float32),
        grid_spec=grid_spec,
        compiler_params=compiler_params,
        cost_estimate=cost,
    )(x_p, a, pool_t, w1s, b1s, w2s, b2s, wl1, bl1, wl2, bl2)

    return out[:num_graphs, :n_classes]


# ---------------------------------------------------------------------------
# Pure-JAX f32 reference (matches the PyTorch module in eval mode)
# ---------------------------------------------------------------------------
def reference_forward(params, x, a_dense, batch, num_graphs):
    h = x
    for layer in params["gin"]:
        agg = h + a_dense @ h                               # eps = 0
        z = agg @ layer["lin1"]["w"] + layer["lin1"]["b"]
        bn = layer["bn"]
        z = (z - bn["mean"]) / jnp.sqrt(bn["var"] + BN_EPS) * bn["gamma"] + bn["beta"]
        z = jax.nn.relu(z)
        h = jax.nn.relu(z @ layer["lin2"]["w"] + layer["lin2"]["b"])
    g = jax.ops.segment_sum(h, batch, num_segments=num_graphs)
    y = jax.nn.relu(g @ params["lin1"]["w"] + params["lin1"]["b"])
    y = y @ params["lin2"]["w"] + params["lin2"]["b"]       # dropout(eval) = identity
    return jax.nn.log_softmax(y, axis=-1)


def init_params(key, num_features, nhid, num_classes):
    keys = iter(jax.random.split(key, 16))

    def linear(k, fin, fout, scale=0.15):
        kw, kb = jax.random.split(k)
        return {"w": scale * jax.random.normal(kw, (fin, fout), jnp.float32),
                "b": 0.05 * jax.random.normal(kb, (fout,), jnp.float32)}

    def batchnorm(k, nfeat):
        k1, k2, k3, k4 = jax.random.split(k, 4)
        return {"gamma": 1.0 + 0.1 * jax.random.normal(k1, (nfeat,), jnp.float32),
                "beta": 0.05 * jax.random.normal(k2, (nfeat,), jnp.float32),
                "mean": 0.1 * jax.random.normal(k3, (nfeat,), jnp.float32),
                "var": 0.8 + 0.4 * jax.random.uniform(k4, (nfeat,), jnp.float32)}

    gin, fin = [], num_features
    for _ in range(NUM_LAYERS):
        gin.append({"lin1": linear(next(keys), fin, nhid),
                    "bn": batchnorm(next(keys), nhid),
                    "lin2": linear(next(keys), nhid, nhid)})
        fin = nhid
    return {"gin": gin,
            "lin1": linear(next(keys), nhid, nhid),
            "lin2": linear(next(keys), nhid, num_classes)}


# ---------------------------------------------------------------------------
# Demo
# ---------------------------------------------------------------------------
if __name__ == "__main__":
    key = jax.random.PRNGKey(0)
    kx, kw, kp = jax.random.split(key, 3)

    num_features, nhid, num_classes = 16, 32, 6

    # Small 3-graph batch: weighted bidirectional ring graphs of 7 / 6 / 7 nodes.
    sizes = [7, 6, 7]
    n = sum(sizes)
    batch = jnp.concatenate(
        [jnp.full((s,), g, jnp.int32) for g, s in enumerate(sizes)])

    src, dst, offset = [], [], 0
    for s in sizes:
        for u in range(s):
            v = (u + 1) % s
            src += [offset + u, offset + v]
            dst += [offset + v, offset + u]
        offset += s
    edge_index = jnp.array([src, dst], jnp.int32)

    x = jax.random.normal(kx, (n, num_features), jnp.float32)
    edge_weight = 0.5 + 0.5 * jax.random.uniform(
        kw, (edge_index.shape[1],), jnp.float32)

    params = init_params(kp, num_features, nhid, num_classes)

    # f32 reference (kernel matmuls run in bf16 with f32 accumulation).
    a_ref = jnp.zeros((n, n), jnp.float32).at[
        edge_index[1], edge_index[0]].add(edge_weight)
    ref = reference_forward(params, x, a_ref, batch, len(sizes))

    # Default (A-resident fast path at this size) ...
    out = net_gin_w_forward(params, x, edge_index, edge_weight, batch,
                            num_graphs=len(sizes))
    out = jax.block_until_ready(out)
    # ... and the streamed-A fallback path, so both code paths are exercised.
    out_s = net_gin_w_forward(params, x, edge_index, edge_weight, batch,
                              num_graphs=len(sizes), _force_path="stream")
    out_s = jax.block_until_ready(out_s)

    err_r = float(jnp.max(jnp.abs(out - ref)))
    err_s = float(jnp.max(jnp.abs(out_s - ref)))
    ok = (err_r < 0.1 and err_s < 0.1
          and bool(jnp.all(jnp.isfinite(out)))
          and bool(jnp.all(jnp.isfinite(out_s))))
    if not ok:
        raise AssertionError(
            f"kernel/reference mismatch: resident_err={err_r} stream_err={err_s}")

    print("KERNEL_OK")
</pallas_src>

<mosaic_0001>
module attributes {stable_mosaic.version = 11 : i64} {
  func.func @kernel(%arg0: i32, %arg1: i32, %arg2: memref<128x128xbf16, #tpu.memory_space<any>>, %arg3: memref<128x128xbf16, #tpu.memory_space<any>>, %arg4: memref<16x128xbf16, #tpu.memory_space<vmem>>, %arg5: memref<1x128x128xbf16, #tpu.memory_space<vmem>>, %arg6: memref<1x1x128xf32, #tpu.memory_space<vmem>>, %arg7: memref<1x128x128xbf16, #tpu.memory_space<vmem>>, %arg8: memref<1x1x128xf32, #tpu.memory_space<vmem>>, %arg9: memref<128x128xbf16, #tpu.memory_space<vmem>>, %arg10: memref<1x128xf32, #tpu.memory_space<vmem>>, %arg11: memref<128x128xbf16, #tpu.memory_space<vmem>>, %arg12: memref<1x128xf32, #tpu.memory_space<vmem>>, %arg13: memref<16x128xf32, #tpu.memory_space<vmem>>, %arg14: memref<128x128xbf16, #tpu.memory_space<vmem>>, %arg15: memref<128x128xbf16, #tpu.memory_space<vmem>>, %arg16: memref<16x128xf32, #tpu.memory_space<vmem>>, %arg17: memref<128x128xbf16, #tpu.memory_space<vmem>>, %arg18: memref<2x!tpu.dma_semaphore, #tpu.memory_space<semaphore_mem>>) attributes {dimension_semantics = [#tpu.dimension_semantics<arbitrary>, #tpu.dimension_semantics<arbitrary>], iteration_bounds = array<i64: 3, 1>, scalar_prefetch = 0 : i64, scratch_operands = 5 : i64, tpu.core_type = #tpu.core_type<tc>, window_params = [{}, {}, {transform_indices = @transform_2, window_bounds = array<i64: 16, 128>}, {transform_indices = @transform_3, window_bounds = array<i64: 1, 128, 128>}, {transform_indices = @transform_4, window_bounds = array<i64: 1, 1, 128>}, {transform_indices = @transform_5, window_bounds = array<i64: 1, 128, 128>}, {transform_indices = @transform_6, window_bounds = array<i64: 1, 1, 128>}, {pipeline_mode = #tpu.pipeline_mode<synchronous>, transform_indices = @transform_7, window_bounds = array<i64: 128, 128>}, {pipeline_mode = #tpu.pipeline_mode<synchronous>, transform_indices = @transform_8, window_bounds = array<i64: 1, 128>}, {pipeline_mode = #tpu.pipeline_mode<synchronous>, transform_indices = @transform_9, window_bounds = array<i64: 128, 128>}, {pipeline_mode = #tpu.pipeline_mode<synchronous>, transform_indices = @transform_10, window_bounds = array<i64: 1, 128>}, {pipeline_mode = #tpu.pipeline_mode<synchronous>, transform_indices = @transform_11, window_bounds = array<i64: 16, 128>}]} {
    %c128_i32 = arith.constant 128 : i32
    %0 = arith.muli %arg1, %c128_i32 : i32
    %1 = tpu.assume_multiple %0, 128 : i32
    %c0_i32 = arith.constant 0 : i32
    %2 = arith.cmpi eq, %arg0, %c0_i32 : i32
    %c0_i32_0 = arith.constant 0 : i32
    %3 = arith.cmpi eq, %arg1, %c0_i32_0 : i32
    %4 = arith.andi %2, %3 : i1
    %5 = arith.extui %4 : i1 to i32
    %c0_i32_1 = arith.constant 0 : i32
    %6 = arith.cmpi ne, %5, %c0_i32_1 : i32
    scf.if %6 {
      %cst = arith.constant 0.000000e+00 : f32
      %21 = vector.broadcast %cst : f32 to vector<16x128xf32>
      %c0 = arith.constant 0 : index
      %c0_9 = arith.constant 0 : index
      %22 = vector.load %arg16[%c0, %c0_9] : memref<16x128xf32, #tpu.memory_space<vmem>>, vector<16x128xf32>
      tpu.vector_store %arg16[%c0, %c0_9], %21 {strides = array<i32>} : memref<16x128xf32, #tpu.memory_space<vmem>>, vector<16x128xf32>,
      %c0_i32_10 = arith.constant 0 : i32
      %23 = tpu.memref_slice %arg18[%c0_i32_10] : memref<2x!tpu.dma_semaphore, #tpu.memory_space<semaphore_mem>> -> memref<1x!tpu.dma_semaphore, #tpu.memory_space<semaphore_mem>>
      %24 = tpu.memref_squeeze %23 : memref<1x!tpu.dma_semaphore, #tpu.memory_space<semaphore_mem>> -> memref<!tpu.dma_semaphore, #tpu.memory_space<semaphore_mem>>
      tpu.enqueue_dma source(%arg2 : memref<128x128xbf16, #tpu.memory_space<any>>) target(%arg14 : memref<128x128xbf16, #tpu.memory_space<vmem>>) target_semaphore(%24 : memref<!tpu.dma_semaphore, #tpu.memory_space<semaphore_mem>>)
      %c1_i32_11 = arith.constant 1 : i32
      %25 = tpu.memref_slice %arg18[%c1_i32_11] : memref<2x!tpu.dma_semaphore, #tpu.memory_space<semaphore_mem>> -> memref<1x!tpu.dma_semaphore, #tpu.memory_space<semaphore_mem>>
      %26 = tpu.memref_squeeze %25 : memref<1x!tpu.dma_semaphore, #tpu.memory_space<semaphore_mem>> -> memref<!tpu.dma_semaphore, #tpu.memory_space<semaphore_mem>>
      tpu.enqueue_dma source(%arg3 : memref<128x128xbf16, #tpu.memory_space<any>>) target(%arg17 : memref<128x128xbf16, #tpu.memory_space<vmem>>) target_semaphore(%26 : memref<!tpu.dma_semaphore, #tpu.memory_space<semaphore_mem>>)
      %c1_i32_12 = arith.constant 1 : i32
      %27 = tpu.memref_slice %arg18[%c1_i32_12] : memref<2x!tpu.dma_semaphore, #tpu.memory_space<semaphore_mem>> -> memref<1x!tpu.dma_semaphore, #tpu.memory_space<semaphore_mem>>
      %28 = tpu.memref_squeeze %27 : memref<1x!tpu.dma_semaphore, #tpu.memory_space<semaphore_mem>> -> memref<!tpu.dma_semaphore, #tpu.memory_space<semaphore_mem>>
      tpu.wait_dma2 semaphore(%28 : memref<!tpu.dma_semaphore, #tpu.memory_space<semaphore_mem>>) src(%arg3 : memref<128x128xbf16, #tpu.memory_space<any>>) dst(%arg17 : memref<128x128xbf16, #tpu.memory_space<vmem>>)
      %c0_i32_13 = arith.constant 0 : i32
      %29 = tpu.memref_slice %arg18[%c0_i32_13] : memref<2x!tpu.dma_semaphore, #tpu.memory_space<semaphore_mem>> -> memref<1x!tpu.dma_semaphore, #tpu.memory_space<semaphore_mem>>
      %30 = tpu.memref_squeeze %29 : memref<1x!tpu.dma_semaphore, #tpu.memory_space<semaphore_mem>> -> memref<!tpu.dma_semaphore, #tpu.memory_space<semaphore_mem>>
      tpu.wait_dma2 semaphore(%30 : memref<!tpu.dma_semaphore, #tpu.memory_space<semaphore_mem>>) src(%arg2 : memref<128x128xbf16, #tpu.memory_space<any>>) dst(%arg14 : memref<128x128xbf16, #tpu.memory_space<vmem>>)
    } else {
    }
    %c0_i32_2 = arith.constant 0 : i32
    %7 = arith.cmpi eq, %arg0, %c0_i32_2 : i32
    %8 = arith.extui %7 : i1 to i32
    %c0_i32_3 = arith.constant 0 : i32
    %9 = arith.cmpi ne, %8, %c0_i32_3 : i32
    scf.if %9 {
      %21 = arith.index_cast %1 : i32 to index
      %c0 = arith.constant 0 : index
      %22 = vector.load %arg14[%21, %c0] : memref<128x128xbf16, #tpu.memory_space<vmem>>, vector<128x128xbf16>
      %23 = arith.extf %22 : vector<128x128xbf16> to vector<128x128xf32>
      %24 = arith.index_cast %1 : i32 to index
      %c0_9 = arith.constant 0 : index
      %25 = vector.load %arg17[%24, %c0_9] : memref<128x128xbf16, #tpu.memory_space<vmem>>, vector<128x128xbf16>
      %c0_10 = arith.constant 0 : index
      %c0_11 = arith.constant 0 : index
      %26 = vector.load %arg14[%c0_10, %c0_11] : memref<128x128xbf16, #tpu.memory_space<vmem>>, vector<128x128xbf16>
      %cst = arith.constant dense<0.000000e+00> : vector<128x128xf32>
      %27 = tpu.matmul %25, %26, %cst {dimension_numbers = #tpu.dot_dimension_numbers<[1], [0], [0], [1], [0, 0, 1, 1], [], []>} : vector<128x128xbf16>, vector<128x128xbf16>, vector<128x128xf32> -> vector<128x128xf32>
      %28 = arith.addf %23, %27 : vector<128x128xf32>
      %29 = arith.truncf %28 : vector<128x128xf32> to vector<128x128xbf16>
      %c0_12 = arith.constant 0 : index
      %c0_13 = arith.constant 0 : index
      %c0_14 = arith.constant 0 : index
      %30 = vector.load %arg5[%c0_12, %c0_13, %c0_14] : memref<1x128x128xbf16, #tpu.memory_space<vmem>>, vector<1x128x128xbf16>
      %31 = vector.shape_cast %30 : vector<1x128x128xbf16> to vector<128x128xbf16>
      %cst_15 = arith.constant dense<0.000000e+00> : vector<128x128xf32>
      %32 = tpu.matmul %29, %31, %cst_15 {dimension_numbers = #tpu.dot_dimension_numbers<[1], [0], [0], [1], [0, 0, 1, 1], [], []>} : vector<128x128xbf16>, vector<128x128xbf16>, vector<128x128xf32> -> vector<128x128xf32>
      %c0_16 = arith.constant 0 : index
      %c0_17 = arith.constant 0 : index
      %c0_18 = arith.constant 0 : index
      %33 = vector.load %arg6[%c0_16, %c0_17, %c0_18] : memref<1x1x128xf32, #tpu.memory_space<vmem>>, vector<1x1x128xf32>
      %34 = vector.shape_cast %33 : vector<1x1x128xf32> to vector<1x128xf32>
      %35 = vector.broadcast %34 : vector<1x128xf32> to vector<128x128xf32>
      %36 = arith.addf %32, %35 : vector<128x128xf32>
      %cst_19 = arith.constant 0.000000e+00 : f32
      %37 = vector.broadcast %cst_19 : f32 to vector<128x128xf32>
      %38 = arith.maximumf %36, %37 : vector<128x128xf32>
      %39 = arith.truncf %38 : vector<128x128xf32> to vector<128x128xbf16>
      %c0_20 = arith.constant 0 : index
      %c0_21 = arith.constant 0 : index
      %c0_22 = arith.constant 0 : index
      %40 = vector.load %arg7[%c0_20, %c0_21, %c0_22] : memref<1x128x128xbf16, #tpu.memory_space<vmem>>, vector<1x128x128xbf16>
      %41 = vector.shape_cast %40 : vector<1x128x128xbf16> to vector<128x128xbf16>
      %cst_23 = arith.constant dense<0.000000e+00> : vector<128x128xf32>
      %42 = tpu.matmul %39, %41, %cst_23 {dimension_numbers = #tpu.dot_dimension_numbers<[1], [0], [0], [1], [0, 0, 1, 1], [], []>} : vector<128x128xbf16>, vector<128x128xbf16>, vector<128x128xf32> -> vector<128x128xf32>
      %c0_24 = arith.constant 0 : index
      %c0_25 = arith.constant 0 : index
      %c0_26 = arith.constant 0 : index
      %43 = vector.load %arg8[%c0_24, %c0_25, %c0_26] : memref<1x1x128xf32, #tpu.memory_space<vmem>>, vector<1x1x128xf32>
      %44 = vector.shape_cast %43 : vector<1x1x128xf32> to vector<1x128xf32>
      %45 = vector.broadcast %44 : vector<1x128xf32> to vector<128x128xf32>
      %46 = arith.addf %42, %45 : vector<128x128xf32>
      %cst_27 = arith.constant 0.000000e+00 : f32
      %47 = vector.broadcast %cst_27 : f32 to vector<128x128xf32>
      %48 = arith.maximumf %46, %47 : vector<128x128xf32>
      %49 = arith.truncf %48 : vector<128x128xf32> to vector<128x128xbf16>
      %50 = arith.index_cast %1 : i32 to index
      %c0_28 = arith.constant 0 : index
      %51 = vector.load %arg15[%50, %c0_28] : memref<128x128xbf16, #tpu.memory_space<vmem>>, vector<128x128xbf16>
      tpu.vector_store %arg15[%50, %c0_28], %49 {strides = array<i32>} : memref<128x128xbf16, #tpu.memory_space<vmem>>, vector<128x128xbf16>,
    } else {
    }
    %c1_i32 = arith.constant 1 : i32
    %10 = arith.cmpi eq, %arg0, %c1_i32 : i32
    %11 = arith.extui %10 : i1 to i32
    %c0_i32_4 = arith.constant 0 : i32
    %12 = arith.cmpi ne, %11, %c0_i32_4 : i32
    scf.if %12 {
      %21 = arith.index_cast %1 : i32 to index
      %c0 = arith.constant 0 : index
      %22 = vector.load %arg15[%21, %c0] : memref<128x128xbf16, #tpu.memory_space<vmem>>, vector<128x128xbf16>
      %23 = arith.extf %22 : vector<128x128xbf16> to vector<128x128xf32>
      %24 = arith.index_cast %1 : i32 to index
      %c0_9 = arith.constant 0 : index
      %25 = vector.load %arg17[%24, %c0_9] : memref<128x128xbf16, #tpu.memory_space<vmem>>, vector<128x128xbf16>
      %c0_10 = arith.constant 0 : index
      %c0_11 = arith.constant 0 : index
      %26 = vector.load %arg15[%c0_10, %c0_11] : memref<128x128xbf16, #tpu.memory_space<vmem>>, vector<128x128xbf16>
      %cst = arith.constant dense<0.000000e+00> : vector<128x128xf32>
      %27 = tpu.matmul %25, %26, %cst {dimension_numbers = #tpu.dot_dimension_numbers<[1], [0], [0], [1], [0, 0, 1, 1], [], []>} : vector<128x128xbf16>, vector<128x128xbf16>, vector<128x128xf32> -> vector<128x128xf32>
      %28 = arith.addf %23, %27 : vector<128x128xf32>
      %29 = arith.truncf %28 : vector<128x128xf32> to vector<128x128xbf16>
      %c0_12 = arith.constant 0 : index
      %c0_13 = arith.constant 0 : index
      %c0_14 = arith.constant 0 : index
      %30 = vector.load %arg5[%c0_12, %c0_13, %c0_14] : memref<1x128x128xbf16, #tpu.memory_space<vmem>>, vector<1x128x128xbf16>
      %31 = vector.shape_cast %30 : vector<1x128x128xbf16> to vector<128x128xbf16>
      %cst_15 = arith.constant dense<0.000000e+00> : vector<128x128xf32>
      %32 = tpu.matmul %29, %31, %cst_15 {dimension_numbers = #tpu.dot_dimension_numbers<[1], [0], [0], [1], [0, 0, 1, 1], [], []>} : vector<128x128xbf16>, vector<128x128xbf16>, vector<128x128xf32> -> vector<128x128xf32>
      %c0_16 = arith.constant 0 : index
      %c0_17 = arith.constant 0 : index
      %c0_18 = arith.constant 0 : index
      %33 = vector.load %arg6[%c0_16, %c0_17, %c0_18] : memref<1x1x128xf32, #tpu.memory_space<vmem>>, vector<1x1x128xf32>
      %34 = vector.shape_cast %33 : vector<1x1x128xf32> to vector<1x128xf32>
      %35 = vector.broadcast %34 : vector<1x128xf32> to vector<128x128xf32>
      %36 = arith.addf %32, %35 : vector<128x128xf32>
      %cst_19 = arith.constant 0.000000e+00 : f32
      %37 = vector.broadcast %cst_19 : f32 to vector<128x128xf32>
      %38 = arith.maximumf %36, %37 : vector<128x128xf32>
      %39 = arith.truncf %38 : vector<128x128xf32> to vector<128x128xbf16>
      %c0_20 = arith.constant 0 : index
      %c0_21 = arith.constant 0 : index
      %c0_22 = arith.constant 0 : index
      %40 = vector.load %arg7[%c0_20, %c0_21, %c0_22] : memref<1x128x128xbf16, #tpu.memory_space<vmem>>, vector<1x128x128xbf16>
      %41 = vector.shape_cast %40 : vector<1x128x128xbf16> to vector<128x128xbf16>
      %cst_23 = arith.constant dense<0.000000e+00> : vector<128x128xf32>
      %42 = tpu.matmul %39, %41, %cst_23 {dimension_numbers = #tpu.dot_dimension_numbers<[1], [0], [0], [1], [0, 0, 1, 1], [], []>} : vector<128x128xbf16>, vector<128x128xbf16>, vector<128x128xf32> -> vector<128x128xf32>
      %c0_24 = arith.constant 0 : index
      %c0_25 = arith.constant 0 : index
      %c0_26 = arith.constant 0 : index
      %43 = vector.load %arg8[%c0_24, %c0_25, %c0_26] : memref<1x1x128xf32, #tpu.memory_space<vmem>>, vector<1x1x128xf32>
      %44 = vector.shape_cast %43 : vector<1x1x128xf32> to vector<1x128xf32>
      %45 = vector.broadcast %44 : vector<1x128xf32> to vector<128x128xf32>
      %46 = arith.addf %42, %45 : vector<128x128xf32>
      %cst_27 = arith.constant 0.000000e+00 : f32
      %47 = vector.broadcast %cst_27 : f32 to vector<128x128xf32>
      %48 = arith.maximumf %46, %47 : vector<128x128xf32>
      %49 = arith.truncf %48 : vector<128x128xf32> to vector<128x128xbf16>
      %50 = arith.index_cast %1 : i32 to index
      %c0_28 = arith.constant 0 : index
      %51 = vector.load %arg14[%50, %c0_28] : memref<128x128xbf16, #tpu.memory_space<vmem>>, vector<128x128xbf16>
      tpu.vector_store %arg14[%50, %c0_28], %49 {strides = array<i32>} : memref<128x128xbf16, #tpu.memory_space<vmem>>, vector<128x128xbf16>,
    } else {
    }
    %c2_i32 = arith.constant 2 : i32
    %13 = arith.cmpi eq, %arg0, %c2_i32 : i32
    %14 = arith.extui %13 : i1 to i32
    %c0_i32_5 = arith.constant 0 : i32
    %15 = arith.cmpi ne, %14, %c0_i32_5 : i32
    scf.if %15 {
      %21 = arith.index_cast %1 : i32 to index
      %c0 = arith.constant 0 : index
      %22 = vector.load %arg14[%21, %c0] : memref<128x128xbf16, #tpu.memory_space<vmem>>, vector<128x128xbf16>
      %23 = arith.extf %22 : vector<128x128xbf16> to vector<128x128xf32>
      %24 = arith.index_cast %1 : i32 to index
      %c0_9 = arith.constant 0 : index
      %25 = vector.load %arg17[%24, %c0_9] : memref<128x128xbf16, #tpu.memory_space<vmem>>, vector<128x128xbf16>
      %c0_10 = arith.constant 0 : index
      %c0_11 = arith.constant 0 : index
      %26 = vector.load %arg14[%c0_10, %c0_11] : memref<128x128xbf16, #tpu.memory_space<vmem>>, vector<128x128xbf16>
      %cst = arith.constant dense<0.000000e+00> : vector<128x128xf32>
      %27 = tpu.matmul %25, %26, %cst {dimension_numbers = #tpu.dot_dimension_numbers<[1], [0], [0], [1], [0, 0, 1, 1], [], []>} : vector<128x128xbf16>, vector<128x128xbf16>, vector<128x128xf32> -> vector<128x128xf32>
      %28 = arith.addf %23, %27 : vector<128x128xf32>
      %29 = arith.truncf %28 : vector<128x128xf32> to vector<128x128xbf16>
      %c0_12 = arith.constant 0 : index
      %c0_13 = arith.constant 0 : index
      %c0_14 = arith.constant 0 : index
      %30 = vector.load %arg5[%c0_12, %c0_13, %c0_14] : memref<1x128x128xbf16, #tpu.memory_space<vmem>>, vector<1x128x128xbf16>
      %31 = vector.shape_cast %30 : vector<1x128x128xbf16> to vector<128x128xbf16>
      %cst_15 = arith.constant dense<0.000000e+00> : vector<128x128xf32>
      %32 = tpu.matmul %29, %31, %cst_15 {dimension_numbers = #tpu.dot_dimension_numbers<[1], [0], [0], [1], [0, 0, 1, 1], [], []>} : vector<128x128xbf16>, vector<128x128xbf16>, vector<128x128xf32> -> vector<128x128xf32>
      %c0_16 = arith.constant 0 : index
      %c0_17 = arith.constant 0 : index
      %c0_18 = arith.constant 0 : index
      %33 = vector.load %arg6[%c0_16, %c0_17, %c0_18] : memref<1x1x128xf32, #tpu.memory_space<vmem>>, vector<1x1x128xf32>
      %34 = vector.shape_cast %33 : vector<1x1x128xf32> to vector<1x128xf32>
      %35 = vector.broadcast %34 : vector<1x128xf32> to vector<128x128xf32>
      %36 = arith.addf %32, %35 : vector<128x128xf32>
      %cst_19 = arith.constant 0.000000e+00 : f32
      %37 = vector.broadcast %cst_19 : f32 to vector<128x128xf32>
      %38 = arith.maximumf %36, %37 : vector<128x128xf32>
      %39 = arith.truncf %38 : vector<128x128xf32> to vector<128x128xbf16>
      %c0_20 = arith.constant 0 : index
      %c0_21 = arith.constant 0 : index
      %c0_22 = arith.constant 0 : index
      %40 = vector.load %arg7[%c0_20, %c0_21, %c0_22] : memref<1x128x128xbf16, #tpu.memory_space<vmem>>, vector<1x128x128xbf16>
      %41 = vector.shape_cast %40 : vector<1x128x128xbf16> to vector<128x128xbf16>
      %cst_23 = arith.constant dense<0.000000e+00> : vector<128x128xf32>
      %42 = tpu.matmul %39, %41, %cst_23 {dimension_numbers = #tpu.dot_dimension_numbers<[1], [0], [0], [1], [0, 0, 1, 1], [], []>} : vector<128x128xbf16>, vector<128x128xbf16>, vector<128x128xf32> -> vector<128x128xf32>
      %c0_24 = arith.constant 0 : index
      %c0_25 = arith.constant 0 : index
      %c0_26 = arith.constant 0 : index
      %43 = vector.load %arg8[%c0_24, %c0_25, %c0_26] : memref<1x1x128xf32, #tpu.memory_space<vmem>>, vector<1x1x128xf32>
      %44 = vector.shape_cast %43 : vector<1x1x128xf32> to vector<1x128xf32>
      %45 = vector.broadcast %44 : vector<1x128xf32> to vector<128x128xf32>
      %46 = arith.addf %42, %45 : vector<128x128xf32>
      %cst_27 = arith.constant 0.000000e+00 : f32
      %47 = vector.broadcast %cst_27 : f32 to vector<128x128xf32>
      %48 = arith.maximumf %46, %47 : vector<128x128xf32>
      %c0_28 = arith.constant 0 : index
      %c0_29 = arith.constant 0 : index
      %49 = vector.load %arg16[%c0_28, %c0_29] : memref<16x128xf32, #tpu.memory_space<vmem>>, vector<16x128xf32>
      %c0_30 = arith.constant 0 : index
      %c0_31 = arith.constant 0 : index
      %50 = vector.load %arg4[%c0_30, %c0_31] : memref<16x128xbf16, #tpu.memory_space<vmem>>, vector<16x128xbf16>
      %51 = arith.truncf %48 : vector<128x128xf32> to vector<128x128xbf16>
      %cst_32 = arith.constant dense<0.000000e+00> : vector<16x128xf32>
      %52 = tpu.matmul %50, %51, %cst_32 {dimension_numbers = #tpu.dot_dimension_numbers<[1], [0], [0], [1], [0, 0, 1, 1], [], []>} : vector<16x128xbf16>, vector<128x128xbf16>, vector<16x128xf32> -> vector<16x128xf32>
      %53 = arith.addf %49, %52 : vector<16x128xf32>
      %c0_33 = arith.constant 0 : index
      %c0_34 = arith.constant 0 : index
      %54 = vector.load %arg16[%c0_33, %c0_34] : memref<16x128xf32, #tpu.memory_space<vmem>>, vector<16x128xf32>
      tpu.vector_store %arg16[%c0_33, %c0_34], %53 {strides = array<i32>} : memref<16x128xf32, #tpu.memory_space<vmem>>, vector<16x128xf32>,
    } else {
    }
    %c2_i32_6 = arith.constant 2 : i32
    %16 = arith.cmpi eq, %arg0, %c2_i32_6 : i32
    %c0_i32_7 = arith.constant 0 : i32
    %17 = arith.cmpi eq, %arg1, %c0_i32_7 : i32
    %18 = arith.andi %16, %17 : i1
    %19 = arith.extui %18 : i1 to i32
    %c0_i32_8 = arith.constant 0 : i32
    %20 = arith.cmpi ne, %19, %c0_i32_8 : i32
    scf.if %20 {
      %c0 = arith.constant 0 : index
      %c0_9 = arith.constant 0 : index
      %21 = vector.load %arg16[%c0, %c0_9] : memref<16x128xf32, #tpu.memory_space<vmem>>, vector<16x128xf32>
      %22 = arith.truncf %21 : vector<16x128xf32> to vector<16x128xbf16>
      %c0_10 = arith.constant 0 : index
      %c0_11 = arith.constant 0 : index
      %23 = vector.load %arg9[%c0_10, %c0_11] : memref<128x128xbf16, #tpu.memory_space<vmem>>, vector<128x128xbf16>
      %cst = arith.constant dense<0.000000e+00> : vector<16x128xf32>
      %24 = tpu.matmul %22, %23, %cst {dimension_numbers = #tpu.dot_dimension_numbers<[1], [0], [0], [1], [0, 0, 1, 1], [], []>} : vector<16x128xbf16>, vector<128x128xbf16>, vector<16x128xf32> -> vector<16x128xf32>
      %c0_12 = arith.constant 0 : index
      %c0_13 = arith.constant 0 : index
      %25 = vector.load %arg10[%c0_12, %c0_13] : memref<1x128xf32, #tpu.memory_space<vmem>>, vector<1x128xf32>
      %26 = vector.broadcast %25 : vector<1x128xf32> to vector<16x128xf32>
      %27 = arith.addf %24, %26 : vector<16x128xf32>
      %cst_14 = arith.constant 0.000000e+00 : f32
      %28 = vector.broadcast %cst_14 : f32 to vector<16x128xf32>
      %29 = arith.maximumf %27, %28 : vector<16x128xf32>
      %30 = arith.truncf %29 : vector<16x128xf32> to vector<16x128xbf16>
      %c0_15 = arith.constant 0 : index
      %c0_16 = arith.constant 0 : index
      %31 = vector.load %arg11[%c0_15, %c0_16] : memref<128x128xbf16, #tpu.memory_space<vmem>>, vector<128x128xbf16>
      %cst_17 = arith.constant dense<0.000000e+00> : vector<16x128xf32>
      %32 = tpu.matmul %30, %31, %cst_17 {dimension_numbers = #tpu.dot_dimension_numbers<[1], [0], [0], [1], [0, 0, 1, 1], [], []>} : vector<16x128xbf16>, vector<128x128xbf16>, vector<16x128xf32> -> vector<16x128xf32>
      %c0_18 = arith.constant 0 : index
      %c0_19 = arith.constant 0 : index
      %33 = vector.load %arg12[%c0_18, %c0_19] : memref<1x128xf32, #tpu.memory_space<vmem>>, vector<1x128xf32>
      %34 = vector.broadcast %33 : vector<1x128xf32> to vector<16x128xf32>
      %35 = arith.addf %32, %34 : vector<16x128xf32>
      %cst_20 = arith.constant dense<0xFF800000> : vector<16xf32>
      %36 = vector.multi_reduction <maximumf>, %35, %cst_20 [1] : vector<16x128xf32> to vector<16xf32>
      %37 = vector.shape_cast %36 : vector<16xf32> to vector<16x1xf32>
      %38 = vector.broadcast %37 : vector<16x1xf32> to vector<16x128xf32>
      %39 = arith.subf %35, %38 : vector<16x128xf32>
      %40 = math.exp %39 : vector<16x128xf32>
      %cst_21 = arith.constant dense<0.000000e+00> : vector<16xf32>
      %41 = vector.multi_reduction <add>, %40, %cst_21 [1] : vector<16x128xf32> to vector<16xf32>
      %42 = vector.shape_cast %41 : vector<16xf32> to vector<16x1xf32>
      %43 = math.log %42 : vector<16x1xf32>
      %44 = vector.broadcast %43 : vector<16x1xf32> to vector<16x128xf32>
      %45 = arith.subf %39, %44 : vector<16x128xf32>
      %c0_22 = arith.constant 0 : index
      %c0_23 = arith.constant 0 : index
      %46 = vector.load %arg13[%c0_22, %c0_23] : memref<16x128xf32, #tpu.memory_space<vmem>>, vector<16x128xf32>
      tpu.vector_store %arg13[%c0_22, %c0_23], %45 {strides = array<i32>} : memref<16x128xf32, #tpu.memory_space<vmem>>, vector<16x128xf32>,
    } else {
    }
    return
  }
  func.func @transform_2(%arg0: i32, %arg1: i32) -> (i32, i32) {
    %c0_i32 = arith.constant 0 : i32
    %c0_i32_0 = arith.constant 0 : i32
    return %c0_i32, %arg1 : i32, i32
  }
  func.func @transform_3(%arg0: i32, %arg1: i32) -> (i32, i32, i32) {
    %c0_i32 = arith.constant 0 : i32
    %c0_i32_0 = arith.constant 0 : i32
    %c0_i32_1 = arith.constant 0 : i32
    return %arg0, %c0_i32, %c0_i32_0 : i32, i32, i32
  }
  func.func @transform_4(%arg0: i32, %arg1: i32) -> (i32, i32, i32) {
    %c0_i32 = arith.constant 0 : i32
    %c0_i32_0 = arith.constant 0 : i32
    %c0_i32_1 = arith.constant 0 : i32
    return %arg0, %c0_i32, %c0_i32_0 : i32, i32, i32
  }
  func.func @transform_5(%arg0: i32, %arg1: i32) -> (i32, i32, i32) {
    %c0_i32 = arith.constant 0 : i32
    %c0_i32_0 = arith.constant 0 : i32
    %c0_i32_1 = arith.constant 0 : i32
    return %arg0, %c0_i32, %c0_i32_0 : i32, i32, i32
  }
  func.func @transform_6(%arg0: i32, %arg1: i32) -> (i32, i32, i32) {
    %c0_i32 = arith.constant 0 : i32
    %c0_i32_0 = arith.constant 0 : i32
    %c0_i32_1 = arith.constant 0 : i32
    return %arg0, %c0_i32, %c0_i32_0 : i32, i32, i32
  }
  func.func @transform_7(%arg0: i32, %arg1: i32) -> (i32, i32) {
    %c0_i32 = arith.constant 0 : i32
    %c0_i32_0 = arith.constant 0 : i32
    %c0_i32_1 = arith.constant 0 : i32
    return %c0_i32, %c0_i32_0 : i32, i32
  }
  func.func @transform_8(%arg0: i32, %arg1: i32) -> (i32, i32) {
    %c0_i32 = arith.constant 0 : i32
    %c0_i32_0 = arith.constant 0 : i32
    %c0_i32_1 = arith.constant 0 : i32
    return %c0_i32, %c0_i32_0 : i32, i32
  }
  func.func @transform_9(%arg0: i32, %arg1: i32) -> (i32, i32) {
    %c0_i32 = arith.constant 0 : i32
    %c0_i32_0 = arith.constant 0 : i32
    %c0_i32_1 = arith.constant 0 : i32
    return %c0_i32, %c0_i32_0 : i32, i32
  }
  func.func @transform_10(%arg0: i32, %arg1: i32) -> (i32, i32) {
    %c0_i32 = arith.constant 0 : i32
    %c0_i32_0 = arith.constant 0 : i32
    %c0_i32_1 = arith.constant 0 : i32
    return %c0_i32, %c0_i32_0 : i32, i32
  }
  func.func @transform_11(%arg0: i32, %arg1: i32) -> (i32, i32) {
    %c0_i32 = arith.constant 0 : i32
    %c0_i32_0 = arith.constant 0 : i32
    %c0_i32_1 = arith.constant 0 : i32
    return %c0_i32, %c0_i32_0 : i32, i32
  }
}

</mosaic_0001>

<llo_original>
// kernel: tpu_custom_call.1
$region0: #{tpu_custom_call.1}
  #allocation0 [shape = 'u32[]', space=smem, size = 0x4, offset = 0x4, fixed_abs, tag = 'smem constant byte address 0x4 - core index']
  #allocation1 [shape = 'u32[144,128]{1,0:T(1,128)}', space=vmem, size = 0x12000, scoped, tag = 'internal scratch']
  #allocation2 [shape = 'bf16[128,128]{1,0:T(16,128)(2,1)}', space=vmem, size = 0x8000, scoped, tag = 'scratch operand']
  #allocation3 [shape = 'bf16[128,128]{1,0:T(16,128)(2,1)}', space=vmem, size = 0x8000, scoped, tag = 'scratch operand']
  #allocation4 [shape = 'f32[16,128]{1,0:T(8,128)}', space=vmem, size = 0x2000, scoped, tag = 'scratch operand']
  #allocation5 [shape = 'bf16[128,128]{1,0:T(16,128)(2,1)}', space=vmem, size = 0x8000, scoped, tag = 'scratch operand']
  #allocation6 [shape = 's32[2]{0}', space=sflag, size = 0x8, scoped, tag = 'scratch operand']
  #allocation17 [shape = 's32[]', space=sflag, size = 0x4, offset = 0, fixed_abs, tag = 'sflag constant byte address 0x0 - dummy sync flag']
  #allocation18 [shape = 's32[]', space=sflag, size = 0x4, offset = 0, fixed_abs, tag = 'sflag constant byte address 0x0 - dummy sync flag']
  #allocation19 [shape = 'u32[]', space=smem, size = 0x4, offset = 0x44, fixed_abs, tag = 'smem constant byte address 0x44 - assertion arg 0']
  #allocation20 [shape = 'u32[]', space=smem, size = 0x4, offset = 0x48, fixed_abs, tag = 'smem constant byte address 0x48 - assertion arg 1']
  #allocation21 [shape = 's32[]', space=sflag, size = 0x4, offset = 0, fixed_abs, tag = 'sflag constant byte address 0x0 - dummy sync flag']
  #allocation22 [shape = 's32[]', space=sflag, size = 0x4, offset = 0, fixed_abs, tag = 'sflag constant byte address 0x0 - dummy sync flag']
  %s0 = inlined_call_operand.hbm [shape: bf16[128,128], index: 0, kind: input, shape index: {}]
  %s1 = inlined_call_operand.hbm [shape: bf16[128,128], index: 1, kind: input, shape index: {}]
  %s2 = inlined_call_operand.hbm [shape: bf16[16,128], index: 2, kind: input, shape index: {}]
  %s3 = inlined_call_operand.hbm [shape: bf16[3,128,128], index: 3, kind: input, shape index: {}]
  %s4 = inlined_call_operand.vmem [shape: f32[3,1,128], index: 4, kind: input, shape index: {}]
  %s5 = inlined_call_operand.hbm [shape: bf16[3,128,128], index: 5, kind: input, shape index: {}]
  %s6 = inlined_call_operand.vmem [shape: f32[3,1,128], index: 6, kind: input, shape index: {}]
  %s7 = inlined_call_operand.hbm [shape: bf16[128,128], index: 7, kind: input, shape index: {}]
  %s8 = inlined_call_operand.vmem [shape: f32[1,128], index: 8, kind: input, shape index: {}]
  %s9 = inlined_call_operand.hbm [shape: bf16[128,128], index: 9, kind: input, shape index: {}]
  %s10 = inlined_call_operand.vmem [shape: f32[1,128], index: 10, kind: input, shape index: {}]
  %s11 = inlined_call_operand.hbm [shape: f32[16,128], index: 11, kind: output, shape index: {}]
  %s12 = sld [smem:[#allocation0]]
  $region117: #{tpu_custom_call.1} parent=0
    _
  %s14 = ssub.s32 1, %s12
  %s15 = scalar_select 0, %s14, %s12
  $region1: #{tpu_custom_call.1} parent=0
    #allocation7 [shape = 'u8[4096]{0}', space=vmem, size = 0x1000, scoped, tag = 'input window, operand 2, single buffered']
    #allocation8 [shape = 's32[2]{0}', space=sflag, size = 0x8, scoped, tag = 'scoped memory for tpu_custom_call.1']
    #allocation9 [shape = 's32[2]{0}', space=sflag, size = 0x8, scoped, tag = 'scoped memory for tpu_custom_call.1']
    #allocation10 [shape = 'u8[65536]{0}', space=vmem, size = 0x10000, scoped, tag = 'input window, operand 3']
    #allocation11 [shape = 's32[2]{0}', space=sflag, size = 0x8, scoped, tag = 'scoped memory for tpu_custom_call.1']
    #allocation12 [shape = 'u8[65536]{0}', space=vmem, size = 0x10000, scoped, tag = 'input window, operand 5']
    #allocation13 [shape = 'u8[32768]{0}', space=vmem, size = 0x8000, scoped, tag = 'input window, operand 7, single buffered']
    #allocation14 [shape = 's32[1]{0}', space=sflag, size = 0x4, scoped, tag = 'scoped memory for tpu_custom_call.1']
    #allocation15 [shape = 'u8[32768]{0}', space=vmem, size = 0x8000, scoped, tag = 'input window, operand 9, single buffered']
    #allocation16 [shape = 'u8[8192]{0}', space=vmem, size = 0x2000, scoped, tag = 'output window, operand 0, single buffered']
    %16 = vsyncpa [#allocation8], 0
    %17 = vsyncpa [#allocation11], 0
    %s18 = scalar_lea.sflag [#allocation11], 1
    %19 = vsyncpa %s18, 0
    %20 = vsyncpa [#allocation14], 0
    %21 = vsyncpa [#allocation9], 0
    loop: start=0, step=1, limit=5
    $region2: #{tpu_custom_call.1} parent=1 // loop_pre_header
      _
    $region3: #{tpu_custom_call.1} parent=1 // loop_header
      %s23 = sphi 0, %s27
      %p24 = scmp.ge.s32.totalorder %s23, 5
      %s30 = sphi 0, %s42
      %s31 = sphi 0, %s38
      %s32 = sphi 0, %s30
      %s33 = sphi 0, %s31
      %s34 = sphi 0, %s32
      %s35 = sphi 0, %s33
      %s45 = sphi 0, %s47
      %s48 = sphi 0, %s45
      %s49 = sphi 0, %s48
      %s65 = sphi 0, %s49
      %s71 = sphi 0, %s73
      %s74 = sphi 0, %s71
      %s75 = sphi 0, %s74
      %s91 = sphi 0, %s75
      %s97 = sphi 0, %s99
      %s100 = sphi 0, %s97
      %s101 = sphi 0, %s100
      %s117 = sphi 0, %s101
      %s123 = sphi 0, %s125
      %s126 = sphi 0, %s123
      %s127 = sphi 0, %s126
      %s143 = sphi 0, %s127
      %s149 = sphi 0, %s151
      %s152 = sphi 0, %s149
      %s153 = sphi 0, %s152
      %s169 = sphi 0, %s153
      %s173 = sphi 0, %s173
      %s175 = sphi 0, %s173
      %s176 = sphi 0, %s175
      %s190 = sphi 0, %s176
      %s194 = sphi 0, %s194
      %s196 = sphi 0, %s194
      %s197 = sphi 0, %s196
      %s211 = sphi 0, %s197
      %s215 = sphi 0, %s215
      %s217 = sphi 0, %s215
      %s218 = sphi 0, %s217
      %s232 = sphi 0, %s218
      %s236 = sphi 0, %s236
      %s238 = sphi 0, %s236
      %s239 = sphi 0, %s238
      %s253 = sphi 0, %s239
      %s257 = sphi 0, %s257
      %s259 = sphi 0, %s257
      %s260 = sphi 0, %s259
      %s274 = sphi 0, %s260
    $region4: #{tpu_custom_call.1} parent=1 // loop_header_branch
      %26 = sbr.rel (%p24) target = $region8
    $region5: #{tpu_custom_call.1} parent=1 // loop_body
      %s28 = ssub.s32 %s23, 1
      %s29 = ssub.s32 %s23, 2
      %s36 = sadd.s32 1, %s31
      %p37 = scmp.ge.s32.totalorder %s36, 1
      %s38 = scalar_select %p37, 0, %s36
      %s39 = sadd.s32 1, %s30
      %s40 = scalar_select %p37, %s39, %s30
      %p41 = scmp.ge.s32.totalorder %s40, 3
      %s42 = scalar_select %p41, 0, %s40
      %s43 = ssub.s32 %s31, %s38
      %p44 = scmp.eq.s32.totalorder %s43, 0
      %s46 = sadd.s32 %s45, 1
      %s47 = scalar_select %p44, %s45, %s46
      %p50 = pneg %p44
      %p51 = scmp.eq.s32.totalorder %s23, 2
      %p52 = por %p50, %p51
      %p53 = scmp.ne.s32.totalorder %s45, %s48
      %p54 = scmp.eq.s32.totalorder %s23, 0
      %p55 = por %p53, %p54
      %p56 = scmp.ne.s32.totalorder %s45, %s48
      %p57 = scmp.eq.s32.totalorder %s28, 2
      %p58 = por %p56, %p57
      %p59 = scmp.ne.s32.totalorder %s48, %s49
      %p60 = scmp.eq.s32.totalorder %s28, 0
      %p61 = por %p59, %p60
      %p62 = scmp.ne.s32.totalorder %s48, %s49
      %p63 = scmp.eq.s32.totalorder %s29, 2
      %p64 = por %p62, %p63
      %p66 = scmp.ne.s32.totalorder %s49, %s65
      %p67 = scmp.eq.s32.totalorder %s29, 0
      %p68 = por %p66, %p67
      %s69 = ssub.s32 %s30, %s42
      %p70 = scmp.eq.s32.totalorder %s69, 0
      %s72 = sadd.s32 %s71, 1
      %s73 = scalar_select %p70, %s71, %s72
      %p76 = pneg %p70
      %p77 = scmp.eq.s32.totalorder %s23, 2
      %p78 = por %p76, %p77
      %p79 = scmp.ne.s32.totalorder %s71, %s74
      %p80 = scmp.eq.s32.totalorder %s23, 0
      %p81 = por %p79, %p80
      %p82 = scmp.ne.s32.totalorder %s71, %s74
      %p83 = scmp.eq.s32.totalorder %s28, 2
      %p84 = por %p82, %p83
      %p85 = scmp.ne.s32.totalorder %s74, %s75
      %p86 = scmp.eq.s32.totalorder %s28, 0
      %p87 = por %p85, %p86
      %p88 = scmp.ne.s32.totalorder %s74, %s75
      %p89 = scmp.eq.s32.totalorder %s29, 2
      %p90 = por %p88, %p89
      %p92 = scmp.ne.s32.totalorder %s75, %s91
      %p93 = scmp.eq.s32.totalorder %s29, 0
      %p94 = por %p92, %p93
      %s95 = ssub.s32 %s30, %s42
      %p96 = scmp.eq.s32.totalorder %s95, 0
      %s98 = sadd.s32 %s97, 1
      %s99 = scalar_select %p96, %s97, %s98
      %p102 = pneg %p96
      %p103 = scmp.eq.s32.totalorder %s23, 2
      %p104 = por %p102, %p103
      %p105 = scmp.ne.s32.totalorder %s97, %s100
      %p106 = scmp.eq.s32.totalorder %s23, 0
      %p107 = por %p105, %p106
      %p108 = scmp.ne.s32.totalorder %s97, %s100
      %p109 = scmp.eq.s32.totalorder %s28, 2
      %p110 = por %p108, %p109
      %p111 = scmp.ne.s32.totalorder %s100, %s101
      %p112 = scmp.eq.s32.totalorder %s28, 0
      %p113 = por %p111, %p112
      %p114 = scmp.ne.s32.totalorder %s100, %s101
      %p115 = scmp.eq.s32.totalorder %s29, 2
      %p116 = por %p114, %p115
      %p118 = scmp.ne.s32.totalorder %s101, %s117
      %p119 = scmp.eq.s32.totalorder %s29, 0
      %p120 = por %p118, %p119
      %s121 = ssub.s32 %s30, %s42
      %p122 = scmp.eq.s32.totalorder %s121, 0
      %s124 = sadd.s32 %s123, 1
      %s125 = scalar_select %p122, %s123, %s124
      %p128 = pneg %p122
      %p129 = scmp.eq.s32.totalorder %s23, 2
      %p130 = por %p128, %p129
      %p131 = scmp.ne.s32.totalorder %s123, %s126
      %p132 = scmp.eq.s32.totalorder %s23, 0
      %p133 = por %p131, %p132
      %p134 = scmp.ne.s32.totalorder %s123, %s126
      %p135 = scmp.eq.s32.totalorder %s28, 2
      %p136 = por %p134, %p135
      %p137 = scmp.ne.s32.totalorder %s126, %s127
      %p138 = scmp.eq.s32.totalorder %s28, 0
      %p139 = por %p137, %p138
      %p140 = scmp.ne.s32.totalorder %s126, %s127
      %p141 = scmp.eq.s32.totalorder %s29, 2
      %p142 = por %p140, %p141
      %p144 = scmp.ne.s32.totalorder %s127, %s143
      %p145 = scmp.eq.s32.totalorder %s29, 0
      %p146 = por %p144, %p145
      %s147 = ssub.s32 %s30, %s42
      %p148 = scmp.eq.s32.totalorder %s147, 0
      %s150 = sadd.s32 %s149, 1
      %s151 = scalar_select %p148, %s149, %s150
      %p154 = pneg %p148
      %p155 = scmp.eq.s32.totalorder %s23, 2
      %p156 = por %p154, %p155
      %p157 = scmp.ne.s32.totalorder %s149, %s152
      %p158 = scmp.eq.s32.totalorder %s23, 0
      %p159 = por %p157, %p158
      %p160 = scmp.ne.s32.totalorder %s149, %s152
      %p161 = scmp.eq.s32.totalorder %s28, 2
      %p162 = por %p160, %p161
      %p163 = scmp.ne.s32.totalorder %s152, %s153
      %p164 = scmp.eq.s32.totalorder %s28, 0
      %p165 = por %p163, %p164
      %p166 = scmp.ne.s32.totalorder %s152, %s153
      %p167 = scmp.eq.s32.totalorder %s29, 2
      %p168 = por %p166, %p167
      %p170 = scmp.ne.s32.totalorder %s153, %s169
      %p171 = scmp.eq.s32.totalorder %s29, 0
      %p172 = por %p170, %p171
      %s174 = sadd.s32 %s173, 1
      %p177 = scmp.eq.s32.totalorder %s23, 2
      %p178 = scmp.ne.s32.totalorder %s173, %s175
      %p179 = scmp.eq.s32.totalorder %s23, 0
      %p180 = por %p178, %p179
      %p181 = scmp.ne.s32.totalorder %s173, %s175
      %p182 = scmp.eq.s32.totalorder %s28, 2
      %p183 = por %p181, %p182
      %p184 = scmp.ne.s32.totalorder %s175, %s176
      %p185 = scmp.eq.s32.totalorder %s28, 0
      %p186 = por %p184, %p185
      %p187 = scmp.ne.s32.totalorder %s175, %s176
      %p188 = scmp.eq.s32.totalorder %s29, 2
      %p189 = por %p187, %p188
      %p191 = scmp.ne.s32.totalorder %s176, %s190
      %p192 = scmp.eq.s32.totalorder %s29, 0
      %p193 = por %p191, %p192
      %s195 = sadd.s32 %s194, 1
      %p198 = scmp.eq.s32.totalorder %s23, 2
      %p199 = scmp.ne.s32.totalorder %s194, %s196
      %p200 = scmp.eq.s32.totalorder %s23, 0
      %p201 = por %p199, %p200
      %p202 = scmp.ne.s32.totalorder %s194, %s196
      %p203 = scmp.eq.s32.totalorder %s28, 2
      %p204 = por %p202, %p203
      %p205 = scmp.ne.s32.totalorder %s196, %s197
      %p206 = scmp.eq.s32.totalorder %s28, 0
      %p207 = por %p205, %p206
      %p208 = scmp.ne.s32.totalorder %s196, %s197
      %p209 = scmp.eq.s32.totalorder %s29, 2
      %p210 = por %p208, %p209
      %p212 = scmp.ne.s32.totalorder %s197, %s211
      %p213 = scmp.eq.s32.totalorder %s29, 0
      %p214 = por %p212, %p213
      %s216 = sadd.s32 %s215, 1
      %p219 = scmp.eq.s32.totalorder %s23, 2
      %p220 = scmp.ne.s32.totalorder %s215, %s217
      %p221 = scmp.eq.s32.totalorder %s23, 0
      %p222 = por %p220, %p221
      %p223 = scmp.ne.s32.totalorder %s215, %s217
      %p224 = scmp.eq.s32.totalorder %s28, 2
      %p225 = por %p223, %p224
      %p226 = scmp.ne.s32.totalorder %s217, %s218
      %p227 = scmp.eq.s32.totalorder %s28, 0
      %p228 = por %p226, %p227
      %p229 = scmp.ne.s32.totalorder %s217, %s218
      %p230 = scmp.eq.s32.totalorder %s29, 2
      %p231 = por %p229, %p230
      %p233 = scmp.ne.s32.totalorder %s218, %s232
      %p234 = scmp.eq.s32.totalorder %s29, 0
      %p235 = por %p233, %p234
      %s237 = sadd.s32 %s236, 1
      %p240 = scmp.eq.s32.totalorder %s23, 2
      %p241 = scmp.ne.s32.totalorder %s236, %s238
      %p242 = scmp.eq.s32.totalorder %s23, 0
      %p243 = por %p241, %p242
      %p244 = scmp.ne.s32.totalorder %s236, %s238
      %p245 = scmp.eq.s32.totalorder %s28, 2
      %p246 = por %p244, %p245
      %p247 = scmp.ne.s32.totalorder %s238, %s239
      %p248 = scmp.eq.s32.totalorder %s28, 0
      %p249 = por %p247, %p248
      %p250 = scmp.ne.s32.totalorder %s238, %s239
      %p251 = scmp.eq.s32.totalorder %s29, 2
      %p252 = por %p250, %p251
      %p254 = scmp.ne.s32.totalorder %s239, %s253
      %p255 = scmp.eq.s32.totalorder %s29, 0
      %p256 = por %p254, %p255
      %s258 = sadd.s32 %s257, 1
      %p261 = scmp.eq.s32.totalorder %s23, 2
      %p262 = scmp.ne.s32.totalorder %s257, %s259
      %p263 = scmp.eq.s32.totalorder %s23, 0
      %p264 = por %p262, %p263
      %p265 = scmp.ne.s32.totalorder %s257, %s259
      %p266 = scmp.eq.s32.totalorder %s28, 2
      %p267 = por %p265, %p266
      %p268 = scmp.ne.s32.totalorder %s259, %s260
      %p269 = scmp.eq.s32.totalorder %s28, 0
      %p270 = por %p268, %p269
      %p271 = scmp.ne.s32.totalorder %s259, %s260
      %p272 = scmp.eq.s32.totalorder %s29, 2
      %p273 = por %p271, %p272
      %p275 = scmp.ne.s32.totalorder %s260, %s274
      %p276 = scmp.eq.s32.totalorder %s29, 0
      %p277 = por %p275, %p276
      %p278 = scmp.le.s32.totalorder 1, %s23
      %p279 = scmp.lt.s32.totalorder %s23, 4
      %p280 = pnand %p278, %p279
      %p281 = pneg %p280
      // Predicated region
      $region9: #{tpu_custom_call.1} parent=5 // pred_check
        _
      $region10: #{tpu_custom_call.1} parent=5 // pred_check_branch
        %283 = sbr.rel (%p280) target = $region12
      $region11: #{tpu_custom_call.1} parent=5 // pred_region
        %s284 = ssub.s32 %s23, 1
        // Predicated region
        $region13: #{tpu_custom_call.1} parent=11 // pred_check
          %p285 = pneg %p61
        $region14: #{tpu_custom_call.1} parent=11 // pred_check_branch
          %287 = sbr.rel (%p285) target = $region16
        $region15: #{tpu_custom_call.1} parent=11 // pred_region
          %s289 = ssub.s32 128, 128
          %290 = vsyncadd [#allocation8], %s289
          %s291 = smul.addr %s33, 64
          %s292 = scalar_lea.hbm %s2, %s291
          %s293 = sshll.u32 [#allocation7], 4
          %s294 = int_to_ptr.vmem [resolvable:$true] %s293
          %299 = dma.hbm_to_vmem [thread:$0]  %s292, 128, %s294, [#allocation8], 64, 64, 4
        $region16: #{tpu_custom_call.1} parent=11 // pred_fallthru
          _
        // Predicated region
        $region17: #{tpu_custom_call.1} parent=11 // pred_check
          %p300 = pneg %p186
        $region18: #{tpu_custom_call.1} parent=11 // pred_check_branch
          %302 = sbr.rel (%p300) target = $region20
        $region19: #{tpu_custom_call.1} parent=11 // pred_region
          %s304 = ssub.s32 1024, 1024
          %305 = vsyncadd [#allocation14], %s304
          %s306 = sshll.u32 [#allocation13], 4
          %s307 = int_to_ptr.vmem [resolvable:$true] %s306
          %312 = dma.hbm_to_vmem [thread:$0]  %s7, 1024, %s307, [#allocation14], 64, 64, 4
        $region20: #{tpu_custom_call.1} parent=11 // pred_fallthru
          _
        // Predicated region
        $region21: #{tpu_custom_call.1} parent=11 // pred_check
          %p313 = pneg %p207
        $region22: #{tpu_custom_call.1} parent=11 // pred_check_branch
          %315 = sbr.rel (%p313) target = $region24
        $region23: #{tpu_custom_call.1} parent=11 // pred_region
          _
        $region24: #{tpu_custom_call.1} parent=11 // pred_fallthru
          _
        // Predicated region
        $region25: #{tpu_custom_call.1} parent=11 // pred_check
          %p316 = pneg %p228
        $region26: #{tpu_custom_call.1} parent=11 // pred_check_branch
          %318 = sbr.rel (%p316) target = $region28
        $region27: #{tpu_custom_call.1} parent=11 // pred_region
          %s320 = ssub.s32 1024, 1024
          %321 = vsyncadd [#allocation14], %s320
          %s322 = sshll.u32 [#allocation15], 4
          %s323 = int_to_ptr.vmem [resolvable:$true] %s322
          %328 = dma.hbm_to_vmem [thread:$0]  %s9, 1024, %s323, [#allocation14], 64, 64, 4
        $region28: #{tpu_custom_call.1} parent=11 // pred_fallthru
          _
        // Predicated region
        $region29: #{tpu_custom_call.1} parent=11 // pred_check
          %p329 = pneg %p249
        $region30: #{tpu_custom_call.1} parent=11 // pred_check_branch
          %331 = sbr.rel (%p329) target = $region32
        $region31: #{tpu_custom_call.1} parent=11 // pred_region
          _
        $region32: #{tpu_custom_call.1} parent=11 // pred_fallthru
          _
      $region12: #{tpu_custom_call.1} parent=5 // pred_fallthru
        _
      %p332 = scmp.lt.s32.totalorder %s23, 3
      // Predicated region
      $region33: #{tpu_custom_call.1} parent=5 // pred_check
        %p333 = pneg %p332
      $region34: #{tpu_custom_call.1} parent=5 // pred_check_branch
        %335 = sbr.rel (%p333) target = $region36
      $region35: #{tpu_custom_call.1} parent=5 // pred_region
        // Predicated region
        $region37: #{tpu_custom_call.1} parent=35 // pred_check
          %p336 = pneg %p81
        $region38: #{tpu_custom_call.1} parent=35 // pred_check_branch
          %338 = sbr.rel (%p336) target = $region40
        $region39: #{tpu_custom_call.1} parent=35 // pred_region
          %s339 = sand.u32 %s23, 1
          %s340 = scalar_lea.sflag [#allocation11], %s339
          %s341 = sand.u32 %s71, 1
          %s342 = smul.addr %s341, 64
          %s343 = scalar_lea.vmem [#allocation10], %s342
          %s345 = ssub.s32 1024, 1024
          %346 = vsyncadd %s340, %s345
          %s347 = smul.addr %s30, 16
          %s348 = smul.addr %s347, 64
          %s349 = scalar_lea.hbm %s3, %s348
          %s350 = sshll.u32 %s343, 4
          %s351 = int_to_ptr.vmem [resolvable:$true] %s350
          %356 = dma.hbm_to_vmem [thread:$0]  %s349, 1024, %s351, %s340, 64, 64, 4
        $region40: #{tpu_custom_call.1} parent=35 // pred_fallthru
          _
        // Predicated region
        $region41: #{tpu_custom_call.1} parent=35 // pred_check
          %p357 = pneg %p107
        $region42: #{tpu_custom_call.1} parent=35 // pred_check_branch
          %359 = sbr.rel (%p357) target = $region44
        $region43: #{tpu_custom_call.1} parent=35 // pred_region
          %p360 = scmp.lt.s32.totalorder %s30, 2
          %s361 = scalar_select %p360, %s30, 2
          %s362 = scalar_lea.vmem %s4, %s361
        $region44: #{tpu_custom_call.1} parent=35 // pred_fallthru
          _
        // Predicated region
        $region45: #{tpu_custom_call.1} parent=35 // pred_check
          %p363 = pneg %p133
        $region46: #{tpu_custom_call.1} parent=35 // pred_check_branch
          %365 = sbr.rel (%p363) target = $region48
        $region47: #{tpu_custom_call.1} parent=35 // pred_region
          %s366 = sand.u32 %s23, 1
          %s367 = scalar_lea.sflag [#allocation11], %s366
          %s368 = sand.u32 %s123, 1
          %s369 = smul.addr %s368, 64
          %s370 = scalar_lea.vmem [#allocation12], %s369
          %s372 = ssub.s32 1024, 1024
          %373 = vsyncadd %s367, %s372
          %s374 = smul.addr %s30, 16
          %s375 = smul.addr %s374, 64
          %s376 = scalar_lea.hbm %s5, %s375
          %s377 = sshll.u32 %s370, 4
          %s378 = int_to_ptr.vmem [resolvable:$true] %s377
          %383 = dma.hbm_to_vmem [thread:$0]  %s376, 1024, %s378, %s367, 64, 64, 4
        $region48: #{tpu_custom_call.1} parent=35 // pred_fallthru
          _
        // Predicated region
        $region49: #{tpu_custom_call.1} parent=35 // pred_check
          %p384 = pneg %p159
        $region50: #{tpu_custom_call.1} parent=35 // pred_check_branch
          %386 = sbr.rel (%p384) target = $region52
        $region51: #{tpu_custom_call.1} parent=35 // pred_region
          %p387 = scmp.lt.s32.totalorder %s30, 2
          %s388 = scalar_select %p387, %s30, 2
          %s389 = scalar_lea.vmem %s6, %s388
        $region52: #{tpu_custom_call.1} parent=35 // pred_fallthru
          _
      $region36: #{tpu_custom_call.1} parent=5 // pred_fallthru
        _
      %p390 = scmp.le.s32.totalorder 1, %s23
      %p391 = scmp.lt.s32.totalorder %s23, 4
      %p392 = pnand %p390, %p391
      %p393 = pneg %p392
      // Predicated region
      $region53: #{tpu_custom_call.1} parent=5 // pred_check
        _
      $region54: #{tpu_custom_call.1} parent=5 // pred_check_branch
        %395 = sbr.rel (%p392) target = $region56
      $region55: #{tpu_custom_call.1} parent=5 // pred_region
        %s396 = ssub.s32 %s23, 1
        // Predicated region
        $region57: #{tpu_custom_call.1} parent=55 // pred_check
          %p397 = pneg %p61
        $region58: #{tpu_custom_call.1} parent=55 // pred_check_branch
          %399 = sbr.rel (%p397) target = $region60
        $region59: #{tpu_custom_call.1} parent=55 // pred_region
          %400 = dma.done [#allocation8], 128
        $region60: #{tpu_custom_call.1} parent=55 // pred_fallthru
          _
        %s401 = sand.u32 %s28, 1
        %s402 = scalar_lea.sflag [#allocation11], %s401
        %s403 = sand.u32 %s74, 1
        %s404 = smul.addr %s403, 64
        %s405 = scalar_lea.vmem [#allocation10], %s404
        // Predicated region
        $region61: #{tpu_custom_call.1} parent=55 // pred_check
          %p406 = pneg %p87
        $region62: #{tpu_custom_call.1} parent=55 // pred_check_branch
          %408 = sbr.rel (%p406) target = $region64
        $region63: #{tpu_custom_call.1} parent=55 // pred_region
          %409 = dma.done %s402, 1024
        $region64: #{tpu_custom_call.1} parent=55 // pred_fallthru
          _
        %s410 = sand.u32 %s28, 1
        %s411 = scalar_lea.sflag [#allocation11], %s410
        %s412 = sand.u32 %s126, 1
        %s413 = smul.addr %s412, 64
        %s414 = scalar_lea.vmem [#allocation12], %s413
        // Predicated region
        $region65: #{tpu_custom_call.1} parent=55 // pred_check
          %p415 = pneg %p139
        $region66: #{tpu_custom_call.1} parent=55 // pred_check_branch
          %417 = sbr.rel (%p415) target = $region68
        $region67: #{tpu_custom_call.1} parent=55 // pred_region
          %418 = dma.done %s411, 1024
        $region68: #{tpu_custom_call.1} parent=55 // pred_fallthru
          _
        // Predicated region
        $region69: #{tpu_custom_call.1} parent=55 // pred_check
          %p419 = pneg %p186
        $region70: #{tpu_custom_call.1} parent=55 // pred_check_branch
          %421 = sbr.rel (%p419) target = $region72
        $region71: #{tpu_custom_call.1} parent=55 // pred_region
          %422 = dma.done [#allocation14], 1024
        $region72: #{tpu_custom_call.1} parent=55 // pred_fallthru
          _
        // Predicated region
        $region73: #{tpu_custom_call.1} parent=55 // pred_check
          %p423 = pneg %p228
        $region74: #{tpu_custom_call.1} parent=55 // pred_check_branch
          %425 = sbr.rel (%p423) target = $region76
        $region75: #{tpu_custom_call.1} parent=55 // pred_region
          %426 = dma.done [#allocation14], 1024
        $region76: #{tpu_custom_call.1} parent=55 // pred_fallthru
          _
        %p427 = pneg %p61
        %p428 = pneg %p58
        %s429 = sand.u32 %s28, 1
        %s430 = scalar_lea.sflag [#allocation11], %s429
        %s431 = sand.u32 %s74, 1
        %s432 = smul.addr %s431, 64
        %s433 = scalar_lea.vmem [#allocation10], %s432
        %p434 = pneg %p87
        %p435 = pneg %p84
        %p436 = scmp.lt.s32.totalorder %s32, 2
        %s437 = scalar_select %p436, %s32, 2
        %s438 = scalar_lea.vmem %s4, %s437
        %p439 = pneg %p113
        %p440 = pneg %p110
        %s441 = sand.u32 %s28, 1
        %s442 = scalar_lea.sflag [#allocation11], %s441
        %s443 = sand.u32 %s126, 1
        %s444 = smul.addr %s443, 64
        %s445 = scalar_lea.vmem [#allocation12], %s444
        %p446 = pneg %p139
        %p447 = pneg %p136
        %p448 = scmp.lt.s32.totalorder %s32, 2
        %s449 = scalar_select %p448, %s32, 2
        %s450 = scalar_lea.vmem %s6, %s449
        %p451 = pneg %p165
        %p452 = pneg %p162
        %p453 = pneg %p186
        %p454 = pneg %p183
        %p455 = pneg %p207
        %p456 = pneg %p204
        %p457 = pneg %p228
        %p458 = pneg %p225
        %p459 = pneg %p249
        %p460 = pneg %p246
        %p461 = pneg %p270
        %p462 = pneg %p267
        %p463 = scmp.lt.s32.totalorder %s32, 2
        %s464 = scalar_select %p463, %s32, 2
        %s465 = scalar_lea.vmem %s4, %s464
        %p466 = scmp.lt.s32.totalorder %s32, 2
        %s467 = scalar_select %p466, %s32, 2
        %s468 = scalar_lea.vmem %s6, %s467
        %s470 = smul.u32 %s33, 128
        %p471 = scmp.eq.s32.totalorder %s32, 0
        %p472 = scmp.eq.s32.totalorder %s33, 0
        %p473 = pnand %p471, %p472
        %p474 = pneg %p473
        // Predicated region
        $region77: #{tpu_custom_call.1} parent=55 // pred_check
          _
        $region78: #{tpu_custom_call.1} parent=55 // pred_check_branch
          %476 = sbr.rel (%p473) target = $region80
        $region79: #{tpu_custom_call.1} parent=55 // pred_region
          %477 = vst [vmem:[#allocation4] sm:$0xff] 0.0
          %478 = vst [vmem:[#allocation4 + $0x8] sm:$0xff] 0.0
          // Predicated region
          $region81: #{tpu_custom_call.1} parent=79 // pred_check
            _
          $region82: #{tpu_custom_call.1} parent=79 // pred_check_branch
            %480 = sbr.rel target = $region84
          $region83: #{tpu_custom_call.1} parent=79 // pred_region
            %481 = sst [smem:[#allocation19]] [#allocation18]
            %482 = sst [smem:[#allocation20]] [#allocation17]
          $region84: #{tpu_custom_call.1} parent=79 // pred_fallthru
            _
          %484 = shalt.err (0)
          %s486 = sshll.u32 [#allocation2], 4
          %s487 = int_to_ptr.vmem [resolvable:$true] %s486
          %489 = dma.hbm_to_vmem [thread:$0]  %s0, 1024, %s487, [#allocation6]
          %s490 = scalar_lea.sflag [#allocation6], 1
          // Predicated region
          $region85: #{tpu_custom_call.1} parent=79 // pred_check
            _
          $region86: #{tpu_custom_call.1} parent=79 // pred_check_branch
            %492 = sbr.rel target = $region88
          $region87: #{tpu_custom_call.1} parent=79 // pred_region
            %493 = sst [smem:[#allocation19]] [#allocation22]
            %494 = sst [smem:[#allocation20]] [#allocation21]
          $region88: #{tpu_custom_call.1} parent=79 // pred_fallthru
            _
          %496 = shalt.err (0)
          %s498 = sshll.u32 [#allocation5], 4
          %s499 = int_to_ptr.vmem [resolvable:$true] %s498
          %501 = dma.hbm_to_vmem [thread:$0]  %s1, 1024, %s499, %s490
          %s502 = smul.u32 4, 16
          %s503 = smul.u32 %s502, 1
          %s504 = sshll.u32 %s503, 4
          %505 = dma.done %s490, %s504
          %s506 = sshll.u32 %s503, 4
          %507 = dma.done [#allocation6], %s506
        $region80: #{tpu_custom_call.1} parent=55 // pred_fallthru
          _
        // Predicated region
        $region89: #{tpu_custom_call.1} parent=55 // pred_check
          %p508 = pneg %p471
        $region90: #{tpu_custom_call.1} parent=55 // pred_check_branch
          %510 = sbr.rel (%p508) target = $region92
        $region91: #{tpu_custom_call.1} parent=55 // pred_region
          %s511 = sshra.s32 %s470, 4
          %s512 = sand.u32 %s470, 15
          %s513 = smul.addr %s511, 8
          %s514 = scalar_lea.vmem [#allocation2], %s513
          %v515 = vld [vmem:[%s514] sm:$0xff]
          %v516 = vld [vmem:[%s514 + $0x8] sm:$0xff]
          %v517 = vld [vmem:[%s514 + $0x10] sm:$0xff]
          %v518 = vld [vmem:[%s514 + $0x18] sm:$0xff]
          %v519 = vld [vmem:[%s514 + $0x20] sm:$0xff]
          %v520 = vld [vmem:[%s514 + $0x28] sm:$0xff]
          %v521 = vld [vmem:[%s514 + $0x30] sm:$0xff]
          %v522 = vld [vmem:[%s514 + $0x38] sm:$0xff]
          %v523 = vunpack.c.l.bf16 %v515
          %v524 = vunpack.c.h.bf16 %v515
          %v525 = vunpack.c.l.bf16 %v516
          %v526 = vunpack.c.h.bf16 %v516
          %v527 = vunpack.c.l.bf16 %v517
          %v528 = vunpack.c.h.bf16 %v517
          %v529 = vunpack.c.l.bf16 %v518
          %v530 = vunpack.c.h.bf16 %v518
          %v531 = vunpack.c.l.bf16 %v519
          %v532 = vunpack.c.h.bf16 %v519
          %v533 = vunpack.c.l.bf16 %v520
          %v534 = vunpack.c.h.bf16 %v520
          %v535 = vunpack.c.l.bf16 %v521
          %v536 = vunpack.c.h.bf16 %v521
          %v537 = vunpack.c.l.bf16 %v522
          %v538 = vunpack.c.h.bf16 %v522
          %s539 = smul.addr %s511, 8
          %s540 = scalar_lea.vmem [#allocation5], %s539
          %v541 = vld [vmem:[%s540] sm:$0xff]
          %v542 = vld [vmem:[%s540 + $0x8] sm:$0xff]
          %v543 = vld [vmem:[%s540 + $0x10] sm:$0xff]
          %v544 = vld [vmem:[%s540 + $0x18] sm:$0xff]
          %v545 = vld [vmem:[%s540 + $0x20] sm:$0xff]
          %v546 = vld [vmem:[%s540 + $0x28] sm:$0xff]
          %v547 = vld [vmem:[%s540 + $0x30] sm:$0xff]
          %v548 = vld [vmem:[%s540 + $0x38] sm:$0xff]
          %v549 = vld [vmem:[#allocation2] sm:$0xff]
          %v550 = vld [vmem:[#allocation2 + $0x8] sm:$0xff]
          %v551 = vld [vmem:[#allocation2 + $0x10] sm:$0xff]
          %v552 = vld [vmem:[#allocation2 + $0x18] sm:$0xff]
          %v553 = vld [vmem:[#allocation2 + $0x20] sm:$0xff]
          %v554 = vld [vmem:[#allocation2 + $0x28] sm:$0xff]
          %v555 = vld [vmem:[#allocation2 + $0x30] sm:$0xff]
          %v556 = vld [vmem:[#allocation2 + $0x38] sm:$0xff]
          %557 = vmatprep.subr.bf16.mxu0 0
          %558 = vmatpush1.bf16.msra.mxu0 %v549
          %559 = vmatprep.subr.bf16.mxu0 0
          %560 = vmatpush1.bf16.msra.mxu0 %v550
          %561 = vmatprep.subr.bf16.mxu0 0
          %562 = vmatpush1.bf16.msra.mxu0 %v551
          %563 = vmatprep.subr.bf16.mxu0 0
          %564 = vmatpush1.bf16.msra.mxu0 %v552
          %565 = vmatprep.subr.bf16.mxu0 0
          %566 = vmatpush1.bf16.msra.mxu0 %v553
          %567 = vmatprep.subr.bf16.mxu0 0
          %568 = vmatpush1.bf16.msra.mxu0 %v554
          %569 = vmatprep.subr.bf16.mxu0 0
          %570 = vmatpush1.bf16.msra.mxu0 %v555
          %571 = vmatprep.subr.bf16.mxu0 0
          %572 = vmatpush1.bf16.msra.mxu0 %v556
          %573 = vmatprep.subr.bf16.mxu0 0
          %574 = vmatpush1.bf16.msra.mxu0 0
          %575 = vmatprep.subr.bf16.mxu0 0
          %576 = vmatpush1.bf16.msra.mxu0 0
          %577 = vmatprep.subr.bf16.mxu0 0
          %578 = vmatpush1.bf16.msra.mxu0 0
          %579 = vmatprep.subr.bf16.mxu0 0
          %580 = vmatpush1.bf16.msra.mxu0 0
          %581 = vmatprep.subr.bf16.mxu0 0
          %582 = vmatpush1.bf16.msra.mxu0 0
          %583 = vmatprep.subr.bf16.mxu0 0
          %584 = vmatpush1.bf16.msra.mxu0 0
          %585 = vmatprep.subr.bf16.mxu0 0
          %586 = vmatpush1.bf16.msra.mxu0 0
          %587 = vmatprep.subr.bf16.mxu0 0
          %588 = vmatpush1.bf16.msra.mxu0 0
          %589 = vmatprep.mubr.bf16.mxu0 0
          %590 = vmatmul.mubr.bf16.gmra.mrb[0].mxu0 %v541
          %v591 = vpop.f32.mrb[0].mxu0
          %v592 = vadd.f32 0.0, %v591
          %v593 = vpop.f32.mrb[0].mxu0
          %v594 = vpop.f32.mrb[0].mxu0
          %v595 = vadd.f32 0.0, %v594
          %v596 = vpop.f32.mrb[0].mxu0
          %597 = vmatprep.mubr.bf16.mxu0 0
          %598 = vmatmul.mubr.bf16.gmra.mrb[0].mxu0 %v542
          %v599 = vpop.f32.mrb[0].mxu0
          %v600 = vadd.f32 0.0, %v599
          %v601 = vpop.f32.mrb[0].mxu0
          %v602 = vpop.f32.mrb[0].mxu0
          %v603 = vadd.f32 0.0, %v602
          %v604 = vpop.f32.mrb[0].mxu0
          %605 = vmatprep.mubr.bf16.mxu0 0
          %606 = vmatmul.mubr.bf16.gmra.mrb[0].mxu0 %v543
          %v607 = vpop.f32.mrb[0].mxu0
          %v608 = vadd.f32 0.0, %v607
          %v609 = vpop.f32.mrb[0].mxu0
          %v610 = vpop.f32.mrb[0].mxu0
          %v611 = vadd.f32 0.0, %v610
          %v612 = vpop.f32.mrb[0].mxu0
          %613 = vmatprep.mubr.bf16.mxu0 0
          %614 = vmatmul.mubr.bf16.gmra.mrb[0].mxu0 %v544
          %v615 = vpop.f32.mrb[0].mxu0
          %v616 = vadd.f32 0.0, %v615
          %v617 = vpop.f32.mrb[0].mxu0
          %v618 = vpop.f32.mrb[0].mxu0
          %v619 = vadd.f32 0.0, %v618
          %v620 = vpop.f32.mrb[0].mxu0
          %621 = vmatprep.mubr.bf16.mxu0 0
          %622 = vmatmul.mubr.bf16.gmra.mrb[0].mxu0 %v545
          %v623 = vpop.f32.mrb[0].mxu0
          %v624 = vadd.f32 0.0, %v623
          %v625 = vpop.f32.mrb[0].mxu0
          %v626 = vpop.f32.mrb[0].mxu0
          %v627 = vadd.f32 0.0, %v626
          %v628 = vpop.f32.mrb[0].mxu0
          %629 = vmatprep.mubr.bf16.mxu0 0
          %630 = vmatmul.mubr.bf16.gmra.mrb[0].mxu0 %v546
          %v631 = vpop.f32.mrb[0].mxu0
          %v632 = vadd.f32 0.0, %v631
          %v633 = vpop.f32.mrb[0].mxu0
          %v634 = vpop.f32.mrb[0].mxu0
          %v635 = vadd.f32 0.0, %v634
          %v636 = vpop.f32.mrb[0].mxu0
          %637 = vmatprep.mubr.bf16.mxu0 0
          %638 = vmatmul.mubr.bf16.gmra.mrb[0].mxu0 %v547
          %v639 = vpop.f32.mrb[0].mxu0
          %v640 = vadd.f32 0.0, %v639
          %v641 = vpop.f32.mrb[0].mxu0
          %v642 = vpop.f32.mrb[0].mxu0
          %v643 = vadd.f32 0.0, %v642
          %v644 = vpop.f32.mrb[0].mxu0
          %645 = vmatprep.mubr.bf16.mxu0 0
          %646 = vmatmul.mubr.bf16.gmra.mrb[0].mxu0 %v548
          %v647 = vpop.f32.mrb[0].mxu0
          %v648 = vadd.f32 0.0, %v647
          %v649 = vpop.f32.mrb[0].mxu0
          %v650 = vpop.f32.mrb[0].mxu0
          %v651 = vadd.f32 0.0, %v650
          %v652 = vpop.f32.mrb[0].mxu0
          %653 = vdwg.mxu0
          %v654 = vadd.f32 %v523, %v592
          %v655 = vadd.f32 %v524, %v595
          %v656 = vadd.f32 %v525, %v600
          %v657 = vadd.f32 %v526, %v603
          %v658 = vadd.f32 %v527, %v608
          %v659 = vadd.f32 %v528, %v611
          %v660 = vadd.f32 %v529, %v616
          %v661 = vadd.f32 %v530, %v619
          %v662 = vadd.f32 %v531, %v624
          %v663 = vadd.f32 %v532, %v627
          %v664 = vadd.f32 %v533, %v632
          %v665 = vadd.f32 %v534, %v635
          %v666 = vadd.f32 %v535, %v640
          %v667 = vadd.f32 %v536, %v643
          %v668 = vadd.f32 %v537, %v648
          %v669 = vadd.f32 %v538, %v651
          %v670 = vpack.c.bf16 %v655, %v654
          %v671 = vpack.c.bf16 %v657, %v656
          %v672 = vpack.c.bf16 %v659, %v658
          %v673 = vpack.c.bf16 %v661, %v660
          %v674 = vpack.c.bf16 %v663, %v662
          %v675 = vpack.c.bf16 %v665, %v664
          %v676 = vpack.c.bf16 %v667, %v666
          %v677 = vpack.c.bf16 %v669, %v668
          %v678 = vld [vmem:[%s405] sm:$0xf]
          %v679 = vld [vmem:[%s405 + $0x4] sm:$0xf]
          %v680 = vld [vmem:[%s405 + $0x8] sm:$0xf]
          %v681 = vld [vmem:[%s405 + $0xc] sm:$0xf]
          %v682 = vld [vmem:[%s405 + $0x10] sm:$0xf]
          %v683 = vld [vmem:[%s405 + $0x14] sm:$0xf]
          %v684 = vld [vmem:[%s405 + $0x18] sm:$0xf]
          %v685 = vld [vmem:[%s405 + $0x1c] sm:$0xf]
          %v686 = vld [vmem:[%s405 + $0x20] sm:$0xf]
          %v687 = vld [vmem:[%s405 + $0x24] sm:$0xf]
          %v688 = vld [vmem:[%s405 + $0x28] sm:$0xf]
          %v689 = vld [vmem:[%s405 + $0x2c] sm:$0xf]
          %v690 = vld [vmem:[%s405 + $0x30] sm:$0xf]
          %v691 = vld [vmem:[%s405 + $0x34] sm:$0xf]
          %v692 = vld [vmem:[%s405 + $0x38] sm:$0xf]
          %v693 = vld [vmem:[%s405 + $0x3c] sm:$0xf]
          %v694 = vld [vmem:[%s465] sm:$0x1]
          %v696 = vlaneseq
          %v697 = vshrl.u32 %v696, 7
          %v698 = vsub.s32 0, %v697
          %v699 = vrot.slane %v694, %v698
          %v717 = vunpack.c.l.b16 %v678
          %v718 = vunpack.c.l.b16 %v679
          %v719 = vunpack.c.l.b16 %v680
          %v720 = vunpack.c.l.b16 %v681
          %v721 = vunpack.c.l.b16 %v682
          %v722 = vunpack.c.l.b16 %v683
          %v723 = vunpack.c.l.b16 %v684
          %v724 = vunpack.c.l.b16 %v685
          %v725 = vunpack.c.l.b16 %v686
          %v726 = vunpack.c.l.b16 %v687
          %v727 = vunpack.c.l.b16 %v688
          %v728 = vunpack.c.l.b16 %v689
          %v729 = vunpack.c.l.b16 %v690
          %v730 = vunpack.c.l.b16 %v691
          %v731 = vunpack.c.l.b16 %v692
          %v732 = vunpack.c.l.b16 %v693
          %v733 = vpack.c.b16 %v718, %v717
          %v734 = vpack.c.b16 %v720, %v719
          %v735 = vpack.c.b16 %v722, %v721
          %v736 = vpack.c.b16 %v724, %v723
          %v737 = vpack.c.b16 %v726, %v725
          %v738 = vpack.c.b16 %v728, %v727
          %v739 = vpack.c.b16 %v730, %v729
          %v740 = vpack.c.b16 %v732, %v731
          %749 = vmatprep.subr.bf16.mxu0 0
          %750 = vmatpush1.bf16.msra.mxu0 %v733
          %751 = vmatprep.subr.bf16.mxu0 0
          %752 = vmatpush1.bf16.msra.mxu0 %v734
          %753 = vmatprep.subr.bf16.mxu0 0
          %754 = vmatpush1.bf16.msra.mxu0 %v735
          %755 = vmatprep.subr.bf16.mxu0 0
          %756 = vmatpush1.bf16.msra.mxu0 %v736
          %757 = vmatprep.subr.bf16.mxu0 0
          %758 = vmatpush1.bf16.msra.mxu0 %v737
          %759 = vmatprep.subr.bf16.mxu0 0
          %760 = vmatpush1.bf16.msra.mxu0 %v738
          %761 = vmatprep.subr.bf16.mxu0 0
          %762 = vmatpush1.bf16.msra.mxu0 %v739
          %763 = vmatprep.subr.bf16.mxu0 0
          %764 = vmatpush1.bf16.msra.mxu0 %v740
          %765 = vmatprep.subr.bf16.mxu0 0
          %766 = vmatpush1.bf16.msra.mxu0 0
          %767 = vmatprep.subr.bf16.mxu0 0
          %768 = vmatpush1.bf16.msra.mxu0 0
          %769 = vmatprep.subr.bf16.mxu0 0
          %770 = vmatpush1.bf16.msra.mxu0 0
          %771 = vmatprep.subr.bf16.mxu0 0
          %772 = vmatpush1.bf16.msra.mxu0 0
          %773 = vmatprep.subr.bf16.mxu0 0
          %774 = vmatpush1.bf16.msra.mxu0 0
          %775 = vmatprep.subr.bf16.mxu0 0
          %776 = vmatpush1.bf16.msra.mxu0 0
          %777 = vmatprep.subr.bf16.mxu0 0
          %778 = vmatpush1.bf16.msra.mxu0 0
          %779 = vmatprep.subr.bf16.mxu0 0
          %780 = vmatpush1.bf16.msra.mxu0 0
          %781 = vmatprep.mubr.bf16.mxu0 0
          %782 = vmatmul.mubr.bf16.gmra.mrb[0].mxu0 %v670
          %v783 = vpop.f32.mrb[0].mxu0
          %v784 = vadd.f32 %v699, %v783
          %v785 = vpop.f32.mrb[0].mxu0
          %v786 = vpop.f32.mrb[0].mxu0
          %v787 = vadd.f32 %v699, %v786
          %v788 = vpop.f32.mrb[0].mxu0
          %789 = vmatprep.mubr.bf16.mxu0 0
          %790 = vmatmul.mubr.bf16.gmra.mrb[0].mxu0 %v671
          %v791 = vpop.f32.mrb[0].mxu0
          %v792 = vadd.f32 %v699, %v791
          %v793 = vpop.f32.mrb[0].mxu0
          %v794 = vpop.f32.mrb[0].mxu0
          %v795 = vadd.f32 %v699, %v794
          %v796 = vpop.f32.mrb[0].mxu0
          %797 = vmatprep.mubr.bf16.mxu0 0
          %798 = vmatmul.mubr.bf16.gmra.mrb[0].mxu0 %v672
          %v799 = vpop.f32.mrb[0].mxu0
          %v800 = vadd.f32 %v699, %v799
          %v801 = vpop.f32.mrb[0].mxu0
          %v802 = vpop.f32.mrb[0].mxu0
          %v803 = vadd.f32 %v699, %v802
          %v804 = vpop.f32.mrb[0].mxu0
          %805 = vmatprep.mubr.bf16.mxu0 0
          %806 = vmatmul.mubr.bf16.gmra.mrb[0].mxu0 %v673
          %v807 = vpop.f32.mrb[0].mxu0
          %v808 = vadd.f32 %v699, %v807
          %v809 = vpop.f32.mrb[0].mxu0
          %v810 = vpop.f32.mrb[0].mxu0
          %v811 = vadd.f32 %v699, %v810
          %v812 = vpop.f32.mrb[0].mxu0
          %813 = vmatprep.mubr.bf16.mxu0 0
          %814 = vmatmul.mubr.bf16.gmra.mrb[0].mxu0 %v674
          %v815 = vpop.f32.mrb[0].mxu0
          %v816 = vadd.f32 %v699, %v815
          %v817 = vpop.f32.mrb[0].mxu0
          %v818 = vpop.f32.mrb[0].mxu0
          %v819 = vadd.f32 %v699, %v818
          %v820 = vpop.f32.mrb[0].mxu0
          %821 = vmatprep.mubr.bf16.mxu0 0
          %822 = vmatmul.mubr.bf16.gmra.mrb[0].mxu0 %v675
          %v823 = vpop.f32.mrb[0].mxu0
          %v824 = vadd.f32 %v699, %v823
          %v825 = vpop.f32.mrb[0].mxu0
          %v826 = vpop.f32.mrb[0].mxu0
          %v827 = vadd.f32 %v699, %v826
          %v828 = vpop.f32.mrb[0].mxu0
          %829 = vmatprep.mubr.bf16.mxu0 0
          %830 = vmatmul.mubr.bf16.gmra.mrb[0].mxu0 %v676
          %v831 = vpop.f32.mrb[0].mxu0
          %v832 = vadd.f32 %v699, %v831
          %v833 = vpop.f32.mrb[0].mxu0
          %v834 = vpop.f32.mrb[0].mxu0
          %v835 = vadd.f32 %v699, %v834
          %v836 = vpop.f32.mrb[0].mxu0
          %837 = vmatprep.mubr.bf16.mxu0 0
          %838 = vmatmul.mubr.bf16.gmra.mrb[0].mxu0 %v677
          %v839 = vpop.f32.mrb[0].mxu0
          %v840 = vadd.f32 %v699, %v839
          %v841 = vpop.f32.mrb[0].mxu0
          %v842 = vpop.f32.mrb[0].mxu0
          %v843 = vadd.f32 %v699, %v842
          %v844 = vpop.f32.mrb[0].mxu0
          %845 = vdwg.mxu0
          %v846 = vmax.f32 %v784, 0.0
          %v847 = vmax.f32 %v787, 0.0
          %v848 = vmax.f32 %v792, 0.0
          %v849 = vmax.f32 %v795, 0.0
          %v850 = vmax.f32 %v800, 0.0
          %v851 = vmax.f32 %v803, 0.0
          %v852 = vmax.f32 %v808, 0.0
          %v853 = vmax.f32 %v811, 0.0
          %v854 = vmax.f32 %v816, 0.0
          %v855 = vmax.f32 %v819, 0.0
          %v856 = vmax.f32 %v824, 0.0
          %v857 = vmax.f32 %v827, 0.0
          %v858 = vmax.f32 %v832, 0.0
          %v859 = vmax.f32 %v835, 0.0
          %v860 = vmax.f32 %v840, 0.0
          %v861 = vmax.f32 %v843, 0.0
          %v862 = vpack.c.bf16 %v847, %v846
          %v863 = vpack.c.bf16 %v849, %v848
          %v864 = vpack.c.bf16 %v851, %v850
          %v865 = vpack.c.bf16 %v853, %v852
          %v866 = vpack.c.bf16 %v855, %v854
          %v867 = vpack.c.bf16 %v857, %v856
          %v868 = vpack.c.bf16 %v859, %v858
          %v869 = vpack.c.bf16 %v861, %v860
          %v870 = vld [vmem:[%s414] sm:$0xf]
          %v871 = vld [vmem:[%s414 + $0x4] sm:$0xf]
          %v872 = vld [vmem:[%s414 + $0x8] sm:$0xf]
          %v873 = vld [vmem:[%s414 + $0xc] sm:$0xf]
          %v874 = vld [vmem:[%s414 + $0x10] sm:$0xf]
          %v875 = vld [vmem:[%s414 + $0x14] sm:$0xf]
          %v876 = vld [vmem:[%s414 + $0x18] sm:$0xf]
          %v877 = vld [vmem:[%s414 + $0x1c] sm:$0xf]
          %v878 = vld [vmem:[%s414 + $0x20] sm:$0xf]
          %v879 = vld [vmem:[%s414 + $0x24] sm:$0xf]
          %v880 = vld [vmem:[%s414 + $0x28] sm:$0xf]
          %v881 = vld [vmem:[%s414 + $0x2c] sm:$0xf]
          %v882 = vld [vmem:[%s414 + $0x30] sm:$0xf]
          %v883 = vld [vmem:[%s414 + $0x34] sm:$0xf]
          %v884 = vld [vmem:[%s414 + $0x38] sm:$0xf]
          %v885 = vld [vmem:[%s414 + $0x3c] sm:$0xf]
          %v886 = vld [vmem:[%s468] sm:$0x1]
          %v888 = vlaneseq
          %v889 = vshrl.u32 %v888, 7
          %v890 = vsub.s32 0, %v889
          %v891 = vrot.slane %v886, %v890
          %v909 = vunpack.c.l.b16 %v870
          %v910 = vunpack.c.l.b16 %v871
          %v911 = vunpack.c.l.b16 %v872
          %v912 = vunpack.c.l.b16 %v873
          %v913 = vunpack.c.l.b16 %v874
          %v914 = vunpack.c.l.b16 %v875
          %v915 = vunpack.c.l.b16 %v876
          %v916 = vunpack.c.l.b16 %v877
          %v917 = vunpack.c.l.b16 %v878
          %v918 = vunpack.c.l.b16 %v879
          %v919 = vunpack.c.l.b16 %v880
          %v920 = vunpack.c.l.b16 %v881
          %v921 = vunpack.c.l.b16 %v882
          %v922 = vunpack.c.l.b16 %v883
          %v923 = vunpack.c.l.b16 %v884
          %v924 = vunpack.c.l.b16 %v885
          %v925 = vpack.c.b16 %v910, %v909
          %v926 = vpack.c.b16 %v912, %v911
          %v927 = vpack.c.b16 %v914, %v913
          %v928 = vpack.c.b16 %v916, %v915
          %v929 = vpack.c.b16 %v918, %v917
          %v930 = vpack.c.b16 %v920, %v919
          %v931 = vpack.c.b16 %v922, %v921
          %v932 = vpack.c.b16 %v924, %v923
          %941 = vmatprep.subr.bf16.mxu0 0
          %942 = vmatpush1.bf16.msra.mxu0 %v925
          %943 = vmatprep.subr.bf16.mxu0 0
          %944 = vmatpush1.bf16.msra.mxu0 %v926
          %945 = vmatprep.subr.bf16.mxu0 0
          %946 = vmatpush1.bf16.msra.mxu0 %v927
          %947 = vmatprep.subr.bf16.mxu0 0
          %948 = vmatpush1.bf16.msra.mxu0 %v928
          %949 = vmatprep.subr.bf16.mxu0 0
          %950 = vmatpush1.bf16.msra.mxu0 %v929
          %951 = vmatprep.subr.bf16.mxu0 0
          %952 = vmatpush1.bf16.msra.mxu0 %v930
          %953 = vmatprep.subr.bf16.mxu0 0
          %954 = vmatpush1.bf16.msra.mxu0 %v931
          %955 = vmatprep.subr.bf16.mxu0 0
          %956 = vmatpush1.bf16.msra.mxu0 %v932
          %957 = vmatprep.subr.bf16.mxu0 0
          %958 = vmatpush1.bf16.msra.mxu0 0
          %959 = vmatprep.subr.bf16.mxu0 0
          %960 = vmatpush1.bf16.msra.mxu0 0
          %961 = vmatprep.subr.bf16.mxu0 0
          %962 = vmatpush1.bf16.msra.mxu0 0
          %963 = vmatprep.subr.bf16.mxu0 0
          %964 = vmatpush1.bf16.msra.mxu0 0
          %965 = vmatprep.subr.bf16.mxu0 0
          %966 = vmatpush1.bf16.msra.mxu0 0
          %967 = vmatprep.subr.bf16.mxu0 0
          %968 = vmatpush1.bf16.msra.mxu0 0
          %969 = vmatprep.subr.bf16.mxu0 0
          %970 = vmatpush1.bf16.msra.mxu0 0
          %971 = vmatprep.subr.bf16.mxu0 0
          %972 = vmatpush1.bf16.msra.mxu0 0
          %973 = vmatprep.mubr.bf16.mxu0 0
          %974 = vmatmul.mubr.bf16.gmra.mrb[0].mxu0 %v862
          %v975 = vpop.f32.mrb[0].mxu0
          %v976 = vadd.f32 %v891, %v975
          %v977 = vpop.f32.mrb[0].mxu0
          %v978 = vpop.f32.mrb[0].mxu0
          %v979 = vadd.f32 %v891, %v978
          %v980 = vpop.f32.mrb[0].mxu0
          %981 = vmatprep.mubr.bf16.mxu0 0
          %982 = vmatmul.mubr.bf16.gmra.mrb[0].mxu0 %v863
          %v983 = vpop.f32.mrb[0].mxu0
          %v984 = vadd.f32 %v891, %v983
          %v985 = vpop.f32.mrb[0].mxu0
          %v986 = vpop.f32.mrb[0].mxu0
          %v987 = vadd.f32 %v891, %v986
          %v988 = vpop.f32.mrb[0].mxu0
          %989 = vmatprep.mubr.bf16.mxu0 0
          %990 = vmatmul.mubr.bf16.gmra.mrb[0].mxu0 %v864
          %v991 = vpop.f32.mrb[0].mxu0
          %v992 = vadd.f32 %v891, %v991
          %v993 = vpop.f32.mrb[0].mxu0
          %v994 = vpop.f32.mrb[0].mxu0
          %v995 = vadd.f32 %v891, %v994
          %v996 = vpop.f32.mrb[0].mxu0
          %997 = vmatprep.mubr.bf16.mxu0 0
          %998 = vmatmul.mubr.bf16.gmra.mrb[0].mxu0 %v865
          %v999 = vpop.f32.mrb[0].mxu0
          %v1000 = vadd.f32 %v891, %v999
          %v1001 = vpop.f32.mrb[0].mxu0
          %v1002 = vpop.f32.mrb[0].mxu0
          %v1003 = vadd.f32 %v891, %v1002
          %v1004 = vpop.f32.mrb[0].mxu0
          %1005 = vmatprep.mubr.bf16.mxu0 0
          %1006 = vmatmul.mubr.bf16.gmra.mrb[0].mxu0 %v866
          %v1007 = vpop.f32.mrb[0].mxu0
          %v1008 = vadd.f32 %v891, %v1007
          %v1009 = vpop.f32.mrb[0].mxu0
          %v1010 = vpop.f32.mrb[0].mxu0
          %v1011 = vadd.f32 %v891, %v1010
          %v1012 = vpop.f32.mrb[0].mxu0
          %1013 = vmatprep.mubr.bf16.mxu0 0
          %1014 = vmatmul.mubr.bf16.gmra.mrb[0].mxu0 %v867
          %v1015 = vpop.f32.mrb[0].mxu0
          %v1016 = vadd.f32 %v891, %v1015
          %v1017 = vpop.f32.mrb[0].mxu0
          %v1018 = vpop.f32.mrb[0].mxu0
          %v1019 = vadd.f32 %v891, %v1018
          %v1020 = vpop.f32.mrb[0].mxu0
          %1021 = vmatprep.mubr.bf16.mxu0 0
          %1022 = vmatmul.mubr.bf16.gmra.mrb[0].mxu0 %v868
          %v1023 = vpop.f32.mrb[0].mxu0
          %v1024 = vadd.f32 %v891, %v1023
          %v1025 = vpop.f32.mrb[0].mxu0
          %v1026 = vpop.f32.mrb[0].mxu0
          %v1027 = vadd.f32 %v891, %v1026
          %v1028 = vpop.f32.mrb[0].mxu0
          %1029 = vmatprep.mubr.bf16.mxu0 0
          %1030 = vmatmul.mubr.bf16.gmra.mrb[0].mxu0 %v869
          %v1031 = vpop.f32.mrb[0].mxu0
          %v1032 = vadd.f32 %v891, %v1031
          %v1033 = vpop.f32.mrb[0].mxu0
          %v1034 = vpop.f32.mrb[0].mxu0
          %v1035 = vadd.f32 %v891, %v1034
          %v1036 = vpop.f32.mrb[0].mxu0
          %1037 = vdwg.mxu0
          %v1038 = vmax.f32 %v976, 0.0
          %v1039 = vmax.f32 %v979, 0.0
          %v1040 = vmax.f32 %v984, 0.0
          %v1041 = vmax.f32 %v987, 0.0
          %v1042 = vmax.f32 %v992, 0.0
          %v1043 = vmax.f32 %v995, 0.0
          %v1044 = vmax.f32 %v1000, 0.0
          %v1045 = vmax.f32 %v1003, 0.0
          %v1046 = vmax.f32 %v1008, 0.0
          %v1047 = vmax.f32 %v1011, 0.0
          %v1048 = vmax.f32 %v1016, 0.0
          %v1049 = vmax.f32 %v1019, 0.0
          %v1050 = vmax.f32 %v1024, 0.0
          %v1051 = vmax.f32 %v1027, 0.0
          %v1052 = vmax.f32 %v1032, 0.0
          %v1053 = vmax.f32 %v1035, 0.0
          %v1054 = vpack.c.bf16 %v1039, %v1038
          %v1055 = vpack.c.bf16 %v1041, %v1040
          %v1056 = vpack.c.bf16 %v1043, %v1042
          %v1057 = vpack.c.bf16 %v1045, %v1044
          %v1058 = vpack.c.bf16 %v1047, %v1046
          %v1059 = vpack.c.bf16 %v1049, %v1048
          %v1060 = vpack.c.bf16 %v1051, %v1050
          %v1061 = vpack.c.bf16 %v1053, %v1052
          %s1062 = smul.addr %s511, 8
          %s1063 = scalar_lea.vmem [#allocation3], %s1062
          %1064 = vst [vmem:[%s1063] sm:$0xff] %v1054
          %1065 = vst [vmem:[%s1063 + $0x8] sm:$0xff] %v1055
          %1066 = vst [vmem:[%s1063 + $0x10] sm:$0xff] %v1056
          %1067 = vst [vmem:[%s1063 + $0x18] sm:$0xff] %v1057
          %1068 = vst [vmem:[%s1063 + $0x20] sm:$0xff] %v1058
          %1069 = vst [vmem:[%s1063 + $0x28] sm:$0xff] %v1059
          %1070 = vst [vmem:[%s1063 + $0x30] sm:$0xff] %v1060
          %1071 = vst [vmem:[%s1063 + $0x38] sm:$0xff] %v1061
        $region92: #{tpu_custom_call.1} parent=55 // pred_fallthru
          _
        %p1072 = scmp.eq.s32.totalorder %s32, 1
        // Predicated region
        $region93: #{tpu_custom_call.1} parent=55 // pred_check
          %p1073 = pneg %p1072
        $region94: #{tpu_custom_call.1} parent=55 // pred_check_branch
          %1075 = sbr.rel (%p1073) target = $region96
        $region95: #{tpu_custom_call.1} parent=55 // pred_region
          %s1076 = sshra.s32 %s470, 4
          %s1077 = sand.u32 %s470, 15
          %s1078 = smul.addr %s1076, 8
          %s1079 = scalar_lea.vmem [#allocation3], %s1078
          %v1080 = vld [vmem:[%s1079] sm:$0xff]
          %v1081 = vld [vmem:[%s1079 + $0x8] sm:$0xff]
          %v1082 = vld [vmem:[%s1079 + $0x10] sm:$0xff]
          %v1083 = vld [vmem:[%s1079 + $0x18] sm:$0xff]
          %v1084 = vld [vmem:[%s1079 + $0x20] sm:$0xff]
          %v1085 = vld [vmem:[%s1079 + $0x28] sm:$0xff]
          %v1086 = vld [vmem:[%s1079 + $0x30] sm:$0xff]
          %v1087 = vld [vmem:[%s1079 + $0x38] sm:$0xff]
          %v1088 = vunpack.c.l.bf16 %v1080
          %v1089 = vunpack.c.h.bf16 %v1080
          %v1090 = vunpack.c.l.bf16 %v1081
          %v1091 = vunpack.c.h.bf16 %v1081
          %v1092 = vunpack.c.l.bf16 %v1082
          %v1093 = vunpack.c.h.bf16 %v1082
          %v1094 = vunpack.c.l.bf16 %v1083
          %v1095 = vunpack.c.h.bf16 %v1083
          %v1096 = vunpack.c.l.bf16 %v1084
          %v1097 = vunpack.c.h.bf16 %v1084
          %v1098 = vunpack.c.l.bf16 %v1085
          %v1099 = vunpack.c.h.bf16 %v1085
          %v1100 = vunpack.c.l.bf16 %v1086
          %v1101 = vunpack.c.h.bf16 %v1086
          %v1102 = vunpack.c.l.bf16 %v1087
          %v1103 = vunpack.c.h.bf16 %v1087
          %s1104 = smul.addr %s1076, 8
          %s1105 = scalar_lea.vmem [#allocation5], %s1104
          %v1106 = vld [vmem:[%s1105] sm:$0xff]
          %v1107 = vld [vmem:[%s1105 + $0x8] sm:$0xff]
          %v1108 = vld [vmem:[%s1105 + $0x10] sm:$0xff]
          %v1109 = vld [vmem:[%s1105 + $0x18] sm:$0xff]
          %v1110 = vld [vmem:[%s1105 + $0x20] sm:$0xff]
          %v1111 = vld [vmem:[%s1105 + $0x28] sm:$0xff]
          %v1112 = vld [vmem:[%s1105 + $0x30] sm:$0xff]
          %v1113 = vld [vmem:[%s1105 + $0x38] sm:$0xff]
          %v1114 = vld [vmem:[#allocation3] sm:$0xff]
          %v1115 = vld [vmem:[#allocation3 + $0x8] sm:$0xff]
          %v1116 = vld [vmem:[#allocation3 + $0x10] sm:$0xff]
          %v1117 = vld [vmem:[#allocation3 + $0x18] sm:$0xff]
          %v1118 = vld [vmem:[#allocation3 + $0x20] sm:$0xff]
          %v1119 = vld [vmem:[#allocation3 + $0x28] sm:$0xff]
          %v1120 = vld [vmem:[#allocation3 + $0x30] sm:$0xff]
          %v1121 = vld [vmem:[#allocation3 + $0x38] sm:$0xff]
          %1122 = vmatprep.subr.bf16.mxu0 0
          %1123 = vmatpush1.bf16.msra.mxu0 %v1114
          %1124 = vmatprep.subr.bf16.mxu0 0
          %1125 = vmatpush1.bf16.msra.mxu0 %v1115
          %1126 = vmatprep.subr.bf16.mxu0 0
          %1127 = vmatpush1.bf16.msra.mxu0 %v1116
          %1128 = vmatprep.subr.bf16.mxu0 0
          %1129 = vmatpush1.bf16.msra.mxu0 %v1117
          %1130 = vmatprep.subr.bf16.mxu0 0
          %1131 = vmatpush1.bf16.msra.mxu0 %v1118
          %1132 = vmatprep.subr.bf16.mxu0 0
          %1133 = vmatpush1.bf16.msra.mxu0 %v1119
          %1134 = vmatprep.subr.bf16.mxu0 0
          %1135 = vmatpush1.bf16.msra.mxu0 %v1120
          %1136 = vmatprep.subr.bf16.mxu0 0
          %1137 = vmatpush1.bf16.msra.mxu0 %v1121
          %1138 = vmatprep.subr.bf16.mxu0 0
          %1139 = vmatpush1.bf16.msra.mxu0 0
          %1140 = vmatprep.subr.bf16.mxu0 0
          %1141 = vmatpush1.bf16.msra.mxu0 0
          %1142 = vmatprep.subr.bf16.mxu0 0
          %1143 = vmatpush1.bf16.msra.mxu0 0
          %1144 = vmatprep.subr.bf16.mxu0 0
          %1145 = vmatpush1.bf16.msra.mxu0 0
          %1146 = vmatprep.subr.bf16.mxu0 0
          %1147 = vmatpush1.bf16.msra.mxu0 0
          %1148 = vmatprep.subr.bf16.mxu0 0
          %1149 = vmatpush1.bf16.msra.mxu0 0
          %1150 = vmatprep.subr.bf16.mxu0 0
          %1151 = vmatpush1.bf16.msra.mxu0 0
          %1152 = vmatprep.subr.bf16.mxu0 0
          %1153 = vmatpush1.bf16.msra.mxu0 0
          %1154 = vmatprep.mubr.bf16.mxu0 0
          %1155 = vmatmul.mubr.bf16.gmra.mrb[0].mxu0 %v1106
          %v1156 = vpop.f32.mrb[0].mxu0
          %v1157 = vadd.f32 0.0, %v1156
          %v1158 = vpop.f32.mrb[0].mxu0
          %v1159 = vpop.f32.mrb[0].mxu0
          %v1160 = vadd.f32 0.0, %v1159
          %v1161 = vpop.f32.mrb[0].mxu0
          %1162 = vmatprep.mubr.bf16.mxu0 0
          %1163 = vmatmul.mubr.bf16.gmra.mrb[0].mxu0 %v1107
          %v1164 = vpop.f32.mrb[0].mxu0
          %v1165 = vadd.f32 0.0, %v1164
          %v1166 = vpop.f32.mrb[0].mxu0
          %v1167 = vpop.f32.mrb[0].mxu0
          %v1168 = vadd.f32 0.0, %v1167
          %v1169 = vpop.f32.mrb[0].mxu0
          %1170 = vmatprep.mubr.bf16.mxu0 0
          %1171 = vmatmul.mubr.bf16.gmra.mrb[0].mxu0 %v1108
          %v1172 = vpop.f32.mrb[0].mxu0
          %v1173 = vadd.f32 0.0, %v1172
          %v1174 = vpop.f32.mrb[0].mxu0
          %v1175 = vpop.f32.mrb[0].mxu0
          %v1176 = vadd.f32 0.0, %v1175
          %v1177 = vpop.f32.mrb[0].mxu0
          %1178 = vmatprep.mubr.bf16.mxu0 0
          %1179 = vmatmul.mubr.bf16.gmra.mrb[0].mxu0 %v1109
          %v1180 = vpop.f32.mrb[0].mxu0
          %v1181 = vadd.f32 0.0, %v1180
          %v1182 = vpop.f32.mrb[0].mxu0
          %v1183 = vpop.f32.mrb[0].mxu0
          %v1184 = vadd.f32 0.0, %v1183
          %v1185 = vpop.f32.mrb[0].mxu0
          %1186 = vmatprep.mubr.bf16.mxu0 0
          %1187 = vmatmul.mubr.bf16.gmra.mrb[0].mxu0 %v1110
          %v1188 = vpop.f32.mrb[0].mxu0
          %v1189 = vadd.f32 0.0, %v1188
          %v1190 = vpop.f32.mrb[0].mxu0
          %v1191 = vpop.f32.mrb[0].mxu0
          %v1192 = vadd.f32 0.0, %v1191
          %v1193 = vpop.f32.mrb[0].mxu0
          %1194 = vmatprep.mubr.bf16.mxu0 0
          %1195 = vmatmul.mubr.bf16.gmra.mrb[0].mxu0 %v1111
          %v1196 = vpop.f32.mrb[0].mxu0
          %v1197 = vadd.f32 0.0, %v1196
          %v1198 = vpop.f32.mrb[0].mxu0
          %v1199 = vpop.f32.mrb[0].mxu0
          %v1200 = vadd.f32 0.0, %v1199
          %v1201 = vpop.f32.mrb[0].mxu0
          %1202 = vmatprep.mubr.bf16.mxu0 0
          %1203 = vmatmul.mubr.bf16.gmra.mrb[0].mxu0 %v1112
          %v1204 = vpop.f32.mrb[0].mxu0
          %v1205 = vadd.f32 0.0, %v1204
          %v1206 = vpop.f32.mrb[0].mxu0
          %v1207 = vpop.f32.mrb[0].mxu0
          %v1208 = vadd.f32 0.0, %v1207
          %v1209 = vpop.f32.mrb[0].mxu0
          %1210 = vmatprep.mubr.bf16.mxu0 0
          %1211 = vmatmul.mubr.bf16.gmra.mrb[0].mxu0 %v1113
          %v1212 = vpop.f32.mrb[0].mxu0
          %v1213 = vadd.f32 0.0, %v1212
          %v1214 = vpop.f32.mrb[0].mxu0
          %v1215 = vpop.f32.mrb[0].mxu0
          %v1216 = vadd.f32 0.0, %v1215
          %v1217 = vpop.f32.mrb[0].mxu0
          %1218 = vdwg.mxu0
          %v1219 = vadd.f32 %v1088, %v1157
          %v1220 = vadd.f32 %v1089, %v1160
          %v1221 = vadd.f32 %v1090, %v1165
          %v1222 = vadd.f32 %v1091, %v1168
          %v1223 = vadd.f32 %v1092, %v1173
          %v1224 = vadd.f32 %v1093, %v1176
          %v1225 = vadd.f32 %v1094, %v1181
          %v1226 = vadd.f32 %v1095, %v1184
          %v1227 = vadd.f32 %v1096, %v1189
          %v1228 = vadd.f32 %v1097, %v1192
          %v1229 = vadd.f32 %v1098, %v1197
          %v1230 = vadd.f32 %v1099, %v1200
          %v1231 = vadd.f32 %v1100, %v1205
          %v1232 = vadd.f32 %v1101, %v1208
          %v1233 = vadd.f32 %v1102, %v1213
          %v1234 = vadd.f32 %v1103, %v1216
          %v1235 = vpack.c.bf16 %v1220, %v1219
          %v1236 = vpack.c.bf16 %v1222, %v1221
          %v1237 = vpack.c.bf16 %v1224, %v1223
          %v1238 = vpack.c.bf16 %v1226, %v1225
          %v1239 = vpack.c.bf16 %v1228, %v1227
          %v1240 = vpack.c.bf16 %v1230, %v1229
          %v1241 = vpack.c.bf16 %v1232, %v1231
          %v1242 = vpack.c.bf16 %v1234, %v1233
          %v1243 = vld [vmem:[%s405] sm:$0xf]
          %v1244 = vld [vmem:[%s405 + $0x4] sm:$0xf]
          %v1245 = vld [vmem:[%s405 + $0x8] sm:$0xf]
          %v1246 = vld [vmem:[%s405 + $0xc] sm:$0xf]
          %v1247 = vld [vmem:[%s405 + $0x10] sm:$0xf]
          %v1248 = vld [vmem:[%s405 + $0x14] sm:$0xf]
          %v1249 = vld [vmem:[%s405 + $0x18] sm:$0xf]
          %v1250 = vld [vmem:[%s405 + $0x1c] sm:$0xf]
          %v1251 = vld [vmem:[%s405 + $0x20] sm:$0xf]
          %v1252 = vld [vmem:[%s405 + $0x24] sm:$0xf]
          %v1253 = vld [vmem:[%s405 + $0x28] sm:$0xf]
          %v1254 = vld [vmem:[%s405 + $0x2c] sm:$0xf]
          %v1255 = vld [vmem:[%s405 + $0x30] sm:$0xf]
          %v1256 = vld [vmem:[%s405 + $0x34] sm:$0xf]
          %v1257 = vld [vmem:[%s405 + $0x38] sm:$0xf]
          %v1258 = vld [vmem:[%s405 + $0x3c] sm:$0xf]
          %v1259 = vld [vmem:[%s465] sm:$0x1]
          %v1261 = vlaneseq
          %v1262 = vshrl.u32 %v1261, 7
          %v1263 = vsub.s32 0, %v1262
          %v1264 = vrot.slane %v1259, %v1263
          %v1282 = vunpack.c.l.b16 %v1243
          %v1283 = vunpack.c.l.b16 %v1244
          %v1284 = vunpack.c.l.b16 %v1245
          %v1285 = vunpack.c.l.b16 %v1246
          %v1286 = vunpack.c.l.b16 %v1247
          %v1287 = vunpack.c.l.b16 %v1248
          %v1288 = vunpack.c.l.b16 %v1249
          %v1289 = vunpack.c.l.b16 %v1250
          %v1290 = vunpack.c.l.b16 %v1251
          %v1291 = vunpack.c.l.b16 %v1252
          %v1292 = vunpack.c.l.b16 %v1253
          %v1293 = vunpack.c.l.b16 %v1254
          %v1294 = vunpack.c.l.b16 %v1255
          %v1295 = vunpack.c.l.b16 %v1256
          %v1296 = vunpack.c.l.b16 %v1257
          %v1297 = vunpack.c.l.b16 %v1258
          %v1298 = vpack.c.b16 %v1283, %v1282
          %v1299 = vpack.c.b16 %v1285, %v1284
          %v1300 = vpack.c.b16 %v1287, %v1286
          %v1301 = vpack.c.b16 %v1289, %v1288
          %v1302 = vpack.c.b16 %v1291, %v1290
          %v1303 = vpack.c.b16 %v1293, %v1292
          %v1304 = vpack.c.b16 %v1295, %v1294
          %v1305 = vpack.c.b16 %v1297, %v1296
          %1314 = vmatprep.subr.bf16.mxu0 0
          %1315 = vmatpush1.bf16.msra.mxu0 %v1298
          %1316 = vmatprep.subr.bf16.mxu0 0
          %1317 = vmatpush1.bf16.msra.mxu0 %v1299
          %1318 = vmatprep.subr.bf16.mxu0 0
          %1319 = vmatpush1.bf16.msra.mxu0 %v1300
          %1320 = vmatprep.subr.bf16.mxu0 0
          %1321 = vmatpush1.bf16.msra.mxu0 %v1301
          %1322 = vmatprep.subr.bf16.mxu0 0
          %1323 = vmatpush1.bf16.msra.mxu0 %v1302
          %1324 = vmatprep.subr.bf16.mxu0 0
          %1325 = vmatpush1.bf16.msra.mxu0 %v1303
          %1326 = vmatprep.subr.bf16.mxu0 0
          %1327 = vmatpush1.bf16.msra.mxu0 %v1304
          %1328 = vmatprep.subr.bf16.mxu0 0
          %1329 = vmatpush1.bf16.msra.mxu0 %v1305
          %1330 = vmatprep.subr.bf16.mxu0 0
          %1331 = vmatpush1.bf16.msra.mxu0 0
          %1332 = vmatprep.subr.bf16.mxu0 0
          %1333 = vmatpush1.bf16.msra.mxu0 0
          %1334 = vmatprep.subr.bf16.mxu0 0
          %1335 = vmatpush1.bf16.msra.mxu0 0
          %1336 = vmatprep.subr.bf16.mxu0 0
          %1337 = vmatpush1.bf16.msra.mxu0 0
          %1338 = vmatprep.subr.bf16.mxu0 0
          %1339 = vmatpush1.bf16.msra.mxu0 0
          %1340 = vmatprep.subr.bf16.mxu0 0
          %1341 = vmatpush1.bf16.msra.mxu0 0
          %1342 = vmatprep.subr.bf16.mxu0 0
          %1343 = vmatpush1.bf16.msra.mxu0 0
          %1344 = vmatprep.subr.bf16.mxu0 0
          %1345 = vmatpush1.bf16.msra.mxu0 0
          %1346 = vmatprep.mubr.bf16.mxu0 0
          %1347 = vmatmul.mubr.bf16.gmra.mrb[0].mxu0 %v1235
          %v1348 = vpop.f32.mrb[0].mxu0
          %v1349 = vadd.f32 %v1264, %v1348
          %v1350 = vpop.f32.mrb[0].mxu0
          %v1351 = vpop.f32.mrb[0].mxu0
          %v1352 = vadd.f32 %v1264, %v1351
          %v1353 = vpop.f32.mrb[0].mxu0
          %1354 = vmatprep.mubr.bf16.mxu0 0
          %1355 = vmatmul.mubr.bf16.gmra.mrb[0].mxu0 %v1236
          %v1356 = vpop.f32.mrb[0].mxu0
          %v1357 = vadd.f32 %v1264, %v1356
          %v1358 = vpop.f32.mrb[0].mxu0
          %v1359 = vpop.f32.mrb[0].mxu0
          %v1360 = vadd.f32 %v1264, %v1359
          %v1361 = vpop.f32.mrb[0].mxu0
          %1362 = vmatprep.mubr.bf16.mxu0 0
          %1363 = vmatmul.mubr.bf16.gmra.mrb[0].mxu0 %v1237
          %v1364 = vpop.f32.mrb[0].mxu0
          %v1365 = vadd.f32 %v1264, %v1364
          %v1366 = vpop.f32.mrb[0].mxu0
          %v1367 = vpop.f32.mrb[0].mxu0
          %v1368 = vadd.f32 %v1264, %v1367
          %v1369 = vpop.f32.mrb[0].mxu0
          %1370 = vmatprep.mubr.bf16.mxu0 0
          %1371 = vmatmul.mubr.bf16.gmra.mrb[0].mxu0 %v1238
          %v1372 = vpop.f32.mrb[0].mxu0
          %v1373 = vadd.f32 %v1264, %v1372
          %v1374 = vpop.f32.mrb[0].mxu0
          %v1375 = vpop.f32.mrb[0].mxu0
          %v1376 = vadd.f32 %v1264, %v1375
          %v1377 = vpop.f32.mrb[0].mxu0
          %1378 = vmatprep.mubr.bf16.mxu0 0
          %1379 = vmatmul.mubr.bf16.gmra.mrb[0].mxu0 %v1239
          %v1380 = vpop.f32.mrb[0].mxu0
          %v1381 = vadd.f32 %v1264, %v1380
          %v1382 = vpop.f32.mrb[0].mxu0
          %v1383 = vpop.f32.mrb[0].mxu0
          %v1384 = vadd.f32 %v1264, %v1383
          %v1385 = vpop.f32.mrb[0].mxu0
          %1386 = vmatprep.mubr.bf16.mxu0 0
          %1387 = vmatmul.mubr.bf16.gmra.mrb[0].mxu0 %v1240
          %v1388 = vpop.f32.mrb[0].mxu0
          %v1389 = vadd.f32 %v1264, %v1388
          %v1390 = vpop.f32.mrb[0].mxu0
          %v1391 = vpop.f32.mrb[0].mxu0
          %v1392 = vadd.f32 %v1264, %v1391
          %v1393 = vpop.f32.mrb[0].mxu0
          %1394 = vmatprep.mubr.bf16.mxu0 0
          %1395 = vmatmul.mubr.bf16.gmra.mrb[0].mxu0 %v1241
          %v1396 = vpop.f32.mrb[0].mxu0
          %v1397 = vadd.f32 %v1264, %v1396
          %v1398 = vpop.f32.mrb[0].mxu0
          %v1399 = vpop.f32.mrb[0].mxu0
          %v1400 = vadd.f32 %v1264, %v1399
          %v1401 = vpop.f32.mrb[0].mxu0
          %1402 = vmatprep.mubr.bf16.mxu0 0
          %1403 = vmatmul.mubr.bf16.gmra.mrb[0].mxu0 %v1242
          %v1404 = vpop.f32.mrb[0].mxu0
          %v1405 = vadd.f32 %v1264, %v1404
          %v1406 = vpop.f32.mrb[0].mxu0
          %v1407 = vpop.f32.mrb[0].mxu0
          %v1408 = vadd.f32 %v1264, %v1407
          %v1409 = vpop.f32.mrb[0].mxu0
          %1410 = vdwg.mxu0
          %v1411 = vmax.f32 %v1349, 0.0
          %v1412 = vmax.f32 %v1352, 0.0
          %v1413 = vmax.f32 %v1357, 0.0
          %v1414 = vmax.f32 %v1360, 0.0
          %v1415 = vmax.f32 %v1365, 0.0
          %v1416 = vmax.f32 %v1368, 0.0
          %v1417 = vmax.f32 %v1373, 0.0
          %v1418 = vmax.f32 %v1376, 0.0
          %v1419 = vmax.f32 %v1381, 0.0
          %v1420 = vmax.f32 %v1384, 0.0
          %v1421 = vmax.f32 %v1389, 0.0
          %v1422 = vmax.f32 %v1392, 0.0
          %v1423 = vmax.f32 %v1397, 0.0
          %v1424 = vmax.f32 %v1400, 0.0
          %v1425 = vmax.f32 %v1405, 0.0
          %v1426 = vmax.f32 %v1408, 0.0
          %v1427 = vpack.c.bf16 %v1412, %v1411
          %v1428 = vpack.c.bf16 %v1414, %v1413
          %v1429 = vpack.c.bf16 %v1416, %v1415
          %v1430 = vpack.c.bf16 %v1418, %v1417
          %v1431 = vpack.c.bf16 %v1420, %v1419
          %v1432 = vpack.c.bf16 %v1422, %v1421
          %v1433 = vpack.c.bf16 %v1424, %v1423
          %v1434 = vpack.c.bf16 %v1426, %v1425
          %v1435 = vld [vmem:[%s414] sm:$0xf]
          %v1436 = vld [vmem:[%s414 + $0x4] sm:$0xf]
          %v1437 = vld [vmem:[%s414 + $0x8] sm:$0xf]
          %v1438 = vld [vmem:[%s414 + $0xc] sm:$0xf]
          %v1439 = vld [vmem:[%s414 + $0x10] sm:$0xf]
          %v1440 = vld [vmem:[%s414 + $0x14] sm:$0xf]
          %v1441 = vld [vmem:[%s414 + $0x18] sm:$0xf]
          %v1442 = vld [vmem:[%s414 + $0x1c] sm:$0xf]
          %v1443 = vld [vmem:[%s414 + $0x20] sm:$0xf]
          %v1444 = vld [vmem:[%s414 + $0x24] sm:$0xf]
          %v1445 = vld [vmem:[%s414 + $0x28] sm:$0xf]
          %v1446 = vld [vmem:[%s414 + $0x2c] sm:$0xf]
          %v1447 = vld [vmem:[%s414 + $0x30] sm:$0xf]
          %v1448 = vld [vmem:[%s414 + $0x34] sm:$0xf]
          %v1449 = vld [vmem:[%s414 + $0x38] sm:$0xf]
          %v1450 = vld [vmem:[%s414 + $0x3c] sm:$0xf]
          %v1451 = vld [vmem:[%s468] sm:$0x1]
          %v1453 = vlaneseq
          %v1454 = vshrl.u32 %v1453, 7
          %v1455 = vsub.s32 0, %v1454
          %v1456 = vrot.slane %v1451, %v1455
          %v1474 = vunpack.c.l.b16 %v1435
          %v1475 = vunpack.c.l.b16 %v1436
          %v1476 = vunpack.c.l.b16 %v1437
          %v1477 = vunpack.c.l.b16 %v1438
          %v1478 = vunpack.c.l.b16 %v1439
          %v1479 = vunpack.c.l.b16 %v1440
          %v1480 = vunpack.c.l.b16 %v1441
          %v1481 = vunpack.c.l.b16 %v1442
          %v1482 = vunpack.c.l.b16 %v1443
          %v1483 = vunpack.c.l.b16 %v1444
          %v1484 = vunpack.c.l.b16 %v1445
          %v1485 = vunpack.c.l.b16 %v1446
          %v1486 = vunpack.c.l.b16 %v1447
          %v1487 = vunpack.c.l.b16 %v1448
          %v1488 = vunpack.c.l.b16 %v1449
          %v1489 = vunpack.c.l.b16 %v1450
          %v1490 = vpack.c.b16 %v1475, %v1474
          %v1491 = vpack.c.b16 %v1477, %v1476
          %v1492 = vpack.c.b16 %v1479, %v1478
          %v1493 = vpack.c.b16 %v1481, %v1480
          %v1494 = vpack.c.b16 %v1483, %v1482
          %v1495 = vpack.c.b16 %v1485, %v1484
          %v1496 = vpack.c.b16 %v1487, %v1486
          %v1497 = vpack.c.b16 %v1489, %v1488
          %1506 = vmatprep.subr.bf16.mxu0 0
          %1507 = vmatpush1.bf16.msra.mxu0 %v1490
          %1508 = vmatprep.subr.bf16.mxu0 0
          %1509 = vmatpush1.bf16.msra.mxu0 %v1491
          %1510 = vmatprep.subr.bf16.mxu0 0
          %1511 = vmatpush1.bf16.msra.mxu0 %v1492
          %1512 = vmatprep.subr.bf16.mxu0 0
          %1513 = vmatpush1.bf16.msra.mxu0 %v1493
          %1514 = vmatprep.subr.bf16.mxu0 0
          %1515 = vmatpush1.bf16.msra.mxu0 %v1494
          %1516 = vmatprep.subr.bf16.mxu0 0
          %1517 = vmatpush1.bf16.msra.mxu0 %v1495
          %1518 = vmatprep.subr.bf16.mxu0 0
          %1519 = vmatpush1.bf16.msra.mxu0 %v1496
          %1520 = vmatprep.subr.bf16.mxu0 0
          %1521 = vmatpush1.bf16.msra.mxu0 %v1497
          %1522 = vmatprep.subr.bf16.mxu0 0
          %1523 = vmatpush1.bf16.msra.mxu0 0
          %1524 = vmatprep.subr.bf16.mxu0 0
          %1525 = vmatpush1.bf16.msra.mxu0 0
          %1526 = vmatprep.subr.bf16.mxu0 0
          %1527 = vmatpush1.bf16.msra.mxu0 0
          %1528 = vmatprep.subr.bf16.mxu0 0
          %1529 = vmatpush1.bf16.msra.mxu0 0
          %1530 = vmatprep.subr.bf16.mxu0 0
          %1531 = vmatpush1.bf16.msra.mxu0 0
          %1532 = vmatprep.subr.bf16.mxu0 0
          %1533 = vmatpush1.bf16.msra.mxu0 0
          %1534 = vmatprep.subr.bf16.mxu0 0
          %1535 = vmatpush1.bf16.msra.mxu0 0
          %1536 = vmatprep.subr.bf16.mxu0 0
          %1537 = vmatpush1.bf16.msra.mxu0 0
          %1538 = vmatprep.mubr.bf16.mxu0 0
          %1539 = vmatmul.mubr.bf16.gmra.mrb[0].mxu0 %v1427
          %v1540 = vpop.f32.mrb[0].mxu0
          %v1541 = vadd.f32 %v1456, %v1540
          %v1542 = vpop.f32.mrb[0].mxu0
          %v1543 = vpop.f32.mrb[0].mxu0
          %v1544 = vadd.f32 %v1456, %v1543
          %v1545 = vpop.f32.mrb[0].mxu0
          %1546 = vmatprep.mubr.bf16.mxu0 0
          %1547 = vmatmul.mubr.bf16.gmra.mrb[0].mxu0 %v1428
          %v1548 = vpop.f32.mrb[0].mxu0
          %v1549 = vadd.f32 %v1456, %v1548
          %v1550 = vpop.f32.mrb[0].mxu0
          %v1551 = vpop.f32.mrb[0].mxu0
          %v1552 = vadd.f32 %v1456, %v1551
          %v1553 = vpop.f32.mrb[0].mxu0
          %1554 = vmatprep.mubr.bf16.mxu0 0
          %1555 = vmatmul.mubr.bf16.gmra.mrb[0].mxu0 %v1429
          %v1556 = vpop.f32.mrb[0].mxu0
          %v1557 = vadd.f32 %v1456, %v1556
          %v1558 = vpop.f32.mrb[0].mxu0
          %v1559 = vpop.f32.mrb[0].mxu0
          %v1560 = vadd.f32 %v1456, %v1559
          %v1561 = vpop.f32.mrb[0].mxu0
          %1562 = vmatprep.mubr.bf16.mxu0 0
          %1563 = vmatmul.mubr.bf16.gmra.mrb[0].mxu0 %v1430
          %v1564 = vpop.f32.mrb[0].mxu0
          %v1565 = vadd.f32 %v1456, %v1564
          %v1566 = vpop.f32.mrb[0].mxu0
          %v1567 = vpop.f32.mrb[0].mxu0
          %v1568 = vadd.f32 %v1456, %v1567
          %v1569 = vpop.f32.mrb[0].mxu0
          %1570 = vmatprep.mubr.bf16.mxu0 0
          %1571 = vmatmul.mubr.bf16.gmra.mrb[0].mxu0 %v1431
          %v1572 = vpop.f32.mrb[0].mxu0
          %v1573 = vadd.f32 %v1456, %v1572
          %v1574 = vpop.f32.mrb[0].mxu0
          %v1575 = vpop.f32.mrb[0].mxu0
          %v1576 = vadd.f32 %v1456, %v1575
          %v1577 = vpop.f32.mrb[0].mxu0
          %1578 = vmatprep.mubr.bf16.mxu0 0
          %1579 = vmatmul.mubr.bf16.gmra.mrb[0].mxu0 %v1432
          %v1580 = vpop.f32.mrb[0].mxu0
          %v1581 = vadd.f32 %v1456, %v1580
          %v1582 = vpop.f32.mrb[0].mxu0
          %v1583 = vpop.f32.mrb[0].mxu0
          %v1584 = vadd.f32 %v1456, %v1583
          %v1585 = vpop.f32.mrb[0].mxu0
          %1586 = vmatprep.mubr.bf16.mxu0 0
          %1587 = vmatmul.mubr.bf16.gmra.mrb[0].mxu0 %v1433
          %v1588 = vpop.f32.mrb[0].mxu0
          %v1589 = vadd.f32 %v1456, %v1588
          %v1590 = vpop.f32.mrb[0].mxu0
          %v1591 = vpop.f32.mrb[0].mxu0
          %v1592 = vadd.f32 %v1456, %v1591
          %v1593 = vpop.f32.mrb[0].mxu0
          %1594 = vmatprep.mubr.bf16.mxu0 0
          %1595 = vmatmul.mubr.bf16.gmra.mrb[0].mxu0 %v1434
          %v1596 = vpop.f32.mrb[0].mxu0
          %v1597 = vadd.f32 %v1456, %v1596
          %v1598 = vpop.f32.mrb[0].mxu0
          %v1599 = vpop.f32.mrb[0].mxu0
          %v1600 = vadd.f32 %v1456, %v1599
          %v1601 = vpop.f32.mrb[0].mxu0
          %1602 = vdwg.mxu0
          %v1603 = vmax.f32 %v1541, 0.0
          %v1604 = vmax.f32 %v1544, 0.0
          %v1605 = vmax.f32 %v1549, 0.0
          %v1606 = vmax.f32 %v1552, 0.0
          %v1607 = vmax.f32 %v1557, 0.0
          %v1608 = vmax.f32 %v1560, 0.0
          %v1609 = vmax.f32 %v1565, 0.0
          %v1610 = vmax.f32 %v1568, 0.0
          %v1611 = vmax.f32 %v1573, 0.0
          %v1612 = vmax.f32 %v1576, 0.0
          %v1613 = vmax.f32 %v1581, 0.0
          %v1614 = vmax.f32 %v1584, 0.0
          %v1615 = vmax.f32 %v1589, 0.0
          %v1616 = vmax.f32 %v1592, 0.0
          %v1617 = vmax.f32 %v1597, 0.0
          %v1618 = vmax.f32 %v1600, 0.0
          %v1619 = vpack.c.bf16 %v1604, %v1603
          %v1620 = vpack.c.bf16 %v1606, %v1605
          %v1621 = vpack.c.bf16 %v1608, %v1607
          %v1622 = vpack.c.bf16 %v1610, %v1609
          %v1623 = vpack.c.bf16 %v1612, %v1611
          %v1624 = vpack.c.bf16 %v1614, %v1613
          %v1625 = vpack.c.bf16 %v1616, %v1615
          %v1626 = vpack.c.bf16 %v1618, %v1617
          %s1627 = smul.addr %s1076, 8
          %s1628 = scalar_lea.vmem [#allocation2], %s1627
          %1629 = vst [vmem:[%s1628] sm:$0xff] %v1619
          %1630 = vst [vmem:[%s1628 + $0x8] sm:$0xff] %v1620
          %1631 = vst [vmem:[%s1628 + $0x10] sm:$0xff] %v1621
          %1632 = vst [vmem:[%s1628 + $0x18] sm:$0xff] %v1622
          %1633 = vst [vmem:[%s1628 + $0x20] sm:$0xff] %v1623
          %1634 = vst [vmem:[%s1628 + $0x28] sm:$0xff] %v1624
          %1635 = vst [vmem:[%s1628 + $0x30] sm:$0xff] %v1625
          %1636 = vst [vmem:[%s1628 + $0x38] sm:$0xff] %v1626
        $region96: #{tpu_custom_call.1} parent=55 // pred_fallthru
          _
        %p1637 = scmp.eq.s32.totalorder %s32, 2
        // Predicated region
        $region97: #{tpu_custom_call.1} parent=55 // pred_check
          %p1638 = pneg %p1637
        $region98: #{tpu_custom_call.1} parent=55 // pred_check_branch
          %1640 = sbr.rel (%p1638) target = $region100
        $region99: #{tpu_custom_call.1} parent=55 // pred_region
          %s1641 = sshra.s32 %s470, 4
          %s1642 = sand.u32 %s470, 15
          %s1643 = smul.addr %s1641, 8
          %s1644 = scalar_lea.vmem [#allocation2], %s1643
          %v1645 = vld [vmem:[%s1644] sm:$0xff]
          %v1646 = vld [vmem:[%s1644 + $0x8] sm:$0xff]
          %v1647 = vld [vmem:[%s1644 + $0x10] sm:$0xff]
          %v1648 = vld [vmem:[%s1644 + $0x18] sm:$0xff]
          %v1649 = vld [vmem:[%s1644 + $0x20] sm:$0xff]
          %v1650 = vld [vmem:[%s1644 + $0x28] sm:$0xff]
          %v1651 = vld [vmem:[%s1644 + $0x30] sm:$0xff]
          %v1652 = vld [vmem:[%s1644 + $0x38] sm:$0xff]
          %v1653 = vunpack.c.l.bf16 %v1645
          %v1654 = vunpack.c.h.bf16 %v1645
          %v1655 = vunpack.c.l.bf16 %v1646
          %v1656 = vunpack.c.h.bf16 %v1646
          %v1657 = vunpack.c.l.bf16 %v1647
          %v1658 = vunpack.c.h.bf16 %v1647
          %v1659 = vunpack.c.l.bf16 %v1648
          %v1660 = vunpack.c.h.bf16 %v1648
          %v1661 = vunpack.c.l.bf16 %v1649
          %v1662 = vunpack.c.h.bf16 %v1649
          %v1663 = vunpack.c.l.bf16 %v1650
          %v1664 = vunpack.c.h.bf16 %v1650
          %v1665 = vunpack.c.l.bf16 %v1651
          %v1666 = vunpack.c.h.bf16 %v1651
          %v1667 = vunpack.c.l.bf16 %v1652
          %v1668 = vunpack.c.h.bf16 %v1652
          %s1669 = smul.addr %s1641, 8
          %s1670 = scalar_lea.vmem [#allocation5], %s1669
          %v1671 = vld [vmem:[%s1670] sm:$0xff]
          %v1672 = vld [vmem:[%s1670 + $0x8] sm:$0xff]
          %v1673 = vld [vmem:[%s1670 + $0x10] sm:$0xff]
          %v1674 = vld [vmem:[%s1670 + $0x18] sm:$0xff]
          %v1675 = vld [vmem:[%s1670 + $0x20] sm:$0xff]
          %v1676 = vld [vmem:[%s1670 + $0x28] sm:$0xff]
          %v1677 = vld [vmem:[%s1670 + $0x30] sm:$0xff]
          %v1678 = vld [vmem:[%s1670 + $0x38] sm:$0xff]
          %v1679 = vld [vmem:[#allocation2] sm:$0xff]
          %v1680 = vld [vmem:[#allocation2 + $0x8] sm:$0xff]
          %v1681 = vld [vmem:[#allocation2 + $0x10] sm:$0xff]
          %v1682 = vld [vmem:[#allocation2 + $0x18] sm:$0xff]
          %v1683 = vld [vmem:[#allocation2 + $0x20] sm:$0xff]
          %v1684 = vld [vmem:[#allocation2 + $0x28] sm:$0xff]
          %v1685 = vld [vmem:[#allocation2 + $0x30] sm:$0xff]
          %v1686 = vld [vmem:[#allocation2 + $0x38] sm:$0xff]
          %1687 = vmatprep.subr.bf16.mxu0 0
          %1688 = vmatpush1.bf16.msra.mxu0 %v1679
          %1689 = vmatprep.subr.bf16.mxu0 0
          %1690 = vmatpush1.bf16.msra.mxu0 %v1680
          %1691 = vmatprep.subr.bf16.mxu0 0
          %1692 = vmatpush1.bf16.msra.mxu0 %v1681
          %1693 = vmatprep.subr.bf16.mxu0 0
          %1694 = vmatpush1.bf16.msra.mxu0 %v1682
          %1695 = vmatprep.subr.bf16.mxu0 0
          %1696 = vmatpush1.bf16.msra.mxu0 %v1683
          %1697 = vmatprep.subr.bf16.mxu0 0
          %1698 = vmatpush1.bf16.msra.mxu0 %v1684
          %1699 = vmatprep.subr.bf16.mxu0 0
          %1700 = vmatpush1.bf16.msra.mxu0 %v1685
          %1701 = vmatprep.subr.bf16.mxu0 0
          %1702 = vmatpush1.bf16.msra.mxu0 %v1686
          %1703 = vmatprep.subr.bf16.mxu0 0
          %1704 = vmatpush1.bf16.msra.mxu0 0
          %1705 = vmatprep.subr.bf16.mxu0 0
          %1706 = vmatpush1.bf16.msra.mxu0 0
          %1707 = vmatprep.subr.bf16.mxu0 0
          %1708 = vmatpush1.bf16.msra.mxu0 0
          %1709 = vmatprep.subr.bf16.mxu0 0
          %1710 = vmatpush1.bf16.msra.mxu0 0
          %1711 = vmatprep.subr.bf16.mxu0 0
          %1712 = vmatpush1.bf16.msra.mxu0 0
          %1713 = vmatprep.subr.bf16.mxu0 0
          %1714 = vmatpush1.bf16.msra.mxu0 0
          %1715 = vmatprep.subr.bf16.mxu0 0
          %1716 = vmatpush1.bf16.msra.mxu0 0
          %1717 = vmatprep.subr.bf16.mxu0 0
          %1718 = vmatpush1.bf16.msra.mxu0 0
          %1719 = vmatprep.mubr.bf16.mxu0 0
          %1720 = vmatmul.mubr.bf16.gmra.mrb[0].mxu0 %v1671
          %v1721 = vpop.f32.mrb[0].mxu0
          %v1722 = vadd.f32 0.0, %v1721
          %v1723 = vpop.f32.mrb[0].mxu0
          %v1724 = vpop.f32.mrb[0].mxu0
          %v1725 = vadd.f32 0.0, %v1724
          %v1726 = vpop.f32.mrb[0].mxu0
          %1727 = vmatprep.mubr.bf16.mxu0 0
          %1728 = vmatmul.mubr.bf16.gmra.mrb[0].mxu0 %v1672
          %v1729 = vpop.f32.mrb[0].mxu0
          %v1730 = vadd.f32 0.0, %v1729
          %v1731 = vpop.f32.mrb[0].mxu0
          %v1732 = vpop.f32.mrb[0].mxu0
          %v1733 = vadd.f32 0.0, %v1732
          %v1734 = vpop.f32.mrb[0].mxu0
          %1735 = vmatprep.mubr.bf16.mxu0 0
          %1736 = vmatmul.mubr.bf16.gmra.mrb[0].mxu0 %v1673
          %v1737 = vpop.f32.mrb[0].mxu0
          %v1738 = vadd.f32 0.0, %v1737
          %v1739 = vpop.f32.mrb[0].mxu0
          %v1740 = vpop.f32.mrb[0].mxu0
          %v1741 = vadd.f32 0.0, %v1740
          %v1742 = vpop.f32.mrb[0].mxu0
          %1743 = vmatprep.mubr.bf16.mxu0 0
          %1744 = vmatmul.mubr.bf16.gmra.mrb[0].mxu0 %v1674
          %v1745 = vpop.f32.mrb[0].mxu0
          %v1746 = vadd.f32 0.0, %v1745
          %v1747 = vpop.f32.mrb[0].mxu0
          %v1748 = vpop.f32.mrb[0].mxu0
          %v1749 = vadd.f32 0.0, %v1748
          %v1750 = vpop.f32.mrb[0].mxu0
          %1751 = vmatprep.mubr.bf16.mxu0 0
          %1752 = vmatmul.mubr.bf16.gmra.mrb[0].mxu0 %v1675
          %v1753 = vpop.f32.mrb[0].mxu0
          %v1754 = vadd.f32 0.0, %v1753
          %v1755 = vpop.f32.mrb[0].mxu0
          %v1756 = vpop.f32.mrb[0].mxu0
          %v1757 = vadd.f32 0.0, %v1756
          %v1758 = vpop.f32.mrb[0].mxu0
          %1759 = vmatprep.mubr.bf16.mxu0 0
          %1760 = vmatmul.mubr.bf16.gmra.mrb[0].mxu0 %v1676
          %v1761 = vpop.f32.mrb[0].mxu0
          %v1762 = vadd.f32 0.0, %v1761
          %v1763 = vpop.f32.mrb[0].mxu0
          %v1764 = vpop.f32.mrb[0].mxu0
          %v1765 = vadd.f32 0.0, %v1764
          %v1766 = vpop.f32.mrb[0].mxu0
          %1767 = vmatprep.mubr.bf16.mxu0 0
          %1768 = vmatmul.mubr.bf16.gmra.mrb[0].mxu0 %v1677
          %v1769 = vpop.f32.mrb[0].mxu0
          %v1770 = vadd.f32 0.0, %v1769
          %v1771 = vpop.f32.mrb[0].mxu0
          %v1772 = vpop.f32.mrb[0].mxu0
          %v1773 = vadd.f32 0.0, %v1772
          %v1774 = vpop.f32.mrb[0].mxu0
          %1775 = vmatprep.mubr.bf16.mxu0 0
          %1776 = vmatmul.mubr.bf16.gmra.mrb[0].mxu0 %v1678
          %v1777 = vpop.f32.mrb[0].mxu0
          %v1778 = vadd.f32 0.0, %v1777
          %v1779 = vpop.f32.mrb[0].mxu0
          %v1780 = vpop.f32.mrb[0].mxu0
          %v1781 = vadd.f32 0.0, %v1780
          %v1782 = vpop.f32.mrb[0].mxu0
          %1783 = vdwg.mxu0
          %v1784 = vadd.f32 %v1653, %v1722
          %v1785 = vadd.f32 %v1654, %v1725
          %v1786 = vadd.f32 %v1655, %v1730
          %v1787 = vadd.f32 %v1656, %v1733
          %v1788 = vadd.f32 %v1657, %v1738
          %v1789 = vadd.f32 %v1658, %v1741
          %v1790 = vadd.f32 %v1659, %v1746
          %v1791 = vadd.f32 %v1660, %v1749
          %v1792 = vadd.f32 %v1661, %v1754
          %v1793 = vadd.f32 %v1662, %v1757
          %v1794 = vadd.f32 %v1663, %v1762
          %v1795 = vadd.f32 %v1664, %v1765
          %v1796 = vadd.f32 %v1665, %v1770
          %v1797 = vadd.f32 %v1666, %v1773
          %v1798 = vadd.f32 %v1667, %v1778
          %v1799 = vadd.f32 %v1668, %v1781
          %v1800 = vpack.c.bf16 %v1785, %v1784
          %v1801 = vpack.c.bf16 %v1787, %v1786
          %v1802 = vpack.c.bf16 %v1789, %v1788
          %v1803 = vpack.c.bf16 %v1791, %v1790
          %v1804 = vpack.c.bf16 %v1793, %v1792
          %v1805 = vpack.c.bf16 %v1795, %v1794
          %v1806 = vpack.c.bf16 %v1797, %v1796
          %v1807 = vpack.c.bf16 %v1799, %v1798
          %v1808 = vld [vmem:[%s405] sm:$0xf]
          %v1809 = vld [vmem:[%s405 + $0x4] sm:$0xf]
          %v1810 = vld [vmem:[%s405 + $0x8] sm:$0xf]
          %v1811 = vld [vmem:[%s405 + $0xc] sm:$0xf]
          %v1812 = vld [vmem:[%s405 + $0x10] sm:$0xf]
          %v1813 = vld [vmem:[%s405 + $0x14] sm:$0xf]
          %v1814 = vld [vmem:[%s405 + $0x18] sm:$0xf]
          %v1815 = vld [vmem:[%s405 + $0x1c] sm:$0xf]
          %v1816 = vld [vmem:[%s405 + $0x20] sm:$0xf]
          %v1817 = vld [vmem:[%s405 + $0x24] sm:$0xf]
          %v1818 = vld [vmem:[%s405 + $0x28] sm:$0xf]
          %v1819 = vld [vmem:[%s405 + $0x2c] sm:$0xf]
          %v1820 = vld [vmem:[%s405 + $0x30] sm:$0xf]
          %v1821 = vld [vmem:[%s405 + $0x34] sm:$0xf]
          %v1822 = vld [vmem:[%s405 + $0x38] sm:$0xf]
          %v1823 = vld [vmem:[%s405 + $0x3c] sm:$0xf]
          %v1824 = vld [vmem:[%s465] sm:$0x1]
          %v1826 = vlaneseq
          %v1827 = vshrl.u32 %v1826, 7
          %v1828 = vsub.s32 0, %v1827
          %v1829 = vrot.slane %v1824, %v1828
          %v1847 = vunpack.c.l.b16 %v1808
          %v1848 = vunpack.c.l.b16 %v1809
          %v1849 = vunpack.c.l.b16 %v1810
          %v1850 = vunpack.c.l.b16 %v1811
          %v1851 = vunpack.c.l.b16 %v1812
          %v1852 = vunpack.c.l.b16 %v1813
          %v1853 = vunpack.c.l.b16 %v1814
          %v1854 = vunpack.c.l.b16 %v1815
          %v1855 = vunpack.c.l.b16 %v1816
          %v1856 = vunpack.c.l.b16 %v1817
          %v1857 = vunpack.c.l.b16 %v1818
          %v1858 = vunpack.c.l.b16 %v1819
          %v1859 = vunpack.c.l.b16 %v1820
          %v1860 = vunpack.c.l.b16 %v1821
          %v1861 = vunpack.c.l.b16 %v1822
          %v1862 = vunpack.c.l.b16 %v1823
          %v1863 = vpack.c.b16 %v1848, %v1847
          %v1864 = vpack.c.b16 %v1850, %v1849
          %v1865 = vpack.c.b16 %v1852, %v1851
          %v1866 = vpack.c.b16 %v1854, %v1853
          %v1867 = vpack.c.b16 %v1856, %v1855
          %v1868 = vpack.c.b16 %v1858, %v1857
          %v1869 = vpack.c.b16 %v1860, %v1859
          %v1870 = vpack.c.b16 %v1862, %v1861
          %1879 = vmatprep.subr.bf16.mxu0 0
          %1880 = vmatpush1.bf16.msra.mxu0 %v1863
          %1881 = vmatprep.subr.bf16.mxu0 0
          %1882 = vmatpush1.bf16.msra.mxu0 %v1864
          %1883 = vmatprep.subr.bf16.mxu0 0
          %1884 = vmatpush1.bf16.msra.mxu0 %v1865
          %1885 = vmatprep.subr.bf16.mxu0 0
          %1886 = vmatpush1.bf16.msra.mxu0 %v1866
          %1887 = vmatprep.subr.bf16.mxu0 0
          %1888 = vmatpush1.bf16.msra.mxu0 %v1867
          %1889 = vmatprep.subr.bf16.mxu0 0
          %1890 = vmatpush1.bf16.msra.mxu0 %v1868
          %1891 = vmatprep.subr.bf16.mxu0 0
          %1892 = vmatpush1.bf16.msra.mxu0 %v1869
          %1893 = vmatprep.subr.bf16.mxu0 0
          %1894 = vmatpush1.bf16.msra.mxu0 %v1870
          %1895 = vmatprep.subr.bf16.mxu0 0
          %1896 = vmatpush1.bf16.msra.mxu0 0
          %1897 = vmatprep.subr.bf16.mxu0 0
          %1898 = vmatpush1.bf16.msra.mxu0 0
          %1899 = vmatprep.subr.bf16.mxu0 0
          %1900 = vmatpush1.bf16.msra.mxu0 0
          %1901 = vmatprep.subr.bf16.mxu0 0
          %1902 = vmatpush1.bf16.msra.mxu0 0
          %1903 = vmatprep.subr.bf16.mxu0 0
          %1904 = vmatpush1.bf16.msra.mxu0 0
          %1905 = vmatprep.subr.bf16.mxu0 0
          %1906 = vmatpush1.bf16.msra.mxu0 0
          %1907 = vmatprep.subr.bf16.mxu0 0
          %1908 = vmatpush1.bf16.msra.mxu0 0
          %1909 = vmatprep.subr.bf16.mxu0 0
          %1910 = vmatpush1.bf16.msra.mxu0 0
          %1911 = vmatprep.mubr.bf16.mxu0 0
          %1912 = vmatmul.mubr.bf16.gmra.mrb[0].mxu0 %v1800
          %v1913 = vpop.f32.mrb[0].mxu0
          %v1914 = vadd.f32 %v1829, %v1913
          %v1915 = vpop.f32.mrb[0].mxu0
          %v1916 = vpop.f32.mrb[0].mxu0
          %v1917 = vadd.f32 %v1829, %v1916
          %v1918 = vpop.f32.mrb[0].mxu0
          %1919 = vmatprep.mubr.bf16.mxu0 0
          %1920 = vmatmul.mubr.bf16.gmra.mrb[0].mxu0 %v1801
          %v1921 = vpop.f32.mrb[0].mxu0
          %v1922 = vadd.f32 %v1829, %v1921
          %v1923 = vpop.f32.mrb[0].mxu0
          %v1924 = vpop.f32.mrb[0].mxu0
          %v1925 = vadd.f32 %v1829, %v1924
          %v1926 = vpop.f32.mrb[0].mxu0
          %1927 = vmatprep.mubr.bf16.mxu0 0
          %1928 = vmatmul.mubr.bf16.gmra.mrb[0].mxu0 %v1802
          %v1929 = vpop.f32.mrb[0].mxu0
          %v1930 = vadd.f32 %v1829, %v1929
          %v1931 = vpop.f32.mrb[0].mxu0
          %v1932 = vpop.f32.mrb[0].mxu0
          %v1933 = vadd.f32 %v1829, %v1932
          %v1934 = vpop.f32.mrb[0].mxu0
          %1935 = vmatprep.mubr.bf16.mxu0 0
          %1936 = vmatmul.mubr.bf16.gmra.mrb[0].mxu0 %v1803
          %v1937 = vpop.f32.mrb[0].mxu0
          %v1938 = vadd.f32 %v1829, %v1937
          %v1939 = vpop.f32.mrb[0].mxu0
          %v1940 = vpop.f32.mrb[0].mxu0
          %v1941 = vadd.f32 %v1829, %v1940
          %v1942 = vpop.f32.mrb[0].mxu0
          %1943 = vmatprep.mubr.bf16.mxu0 0
          %1944 = vmatmul.mubr.bf16.gmra.mrb[0].mxu0 %v1804
          %v1945 = vpop.f32.mrb[0].mxu0
          %v1946 = vadd.f32 %v1829, %v1945
          %v1947 = vpop.f32.mrb[0].mxu0
          %v1948 = vpop.f32.mrb[0].mxu0
          %v1949 = vadd.f32 %v1829, %v1948
          %v1950 = vpop.f32.mrb[0].mxu0
          %1951 = vmatprep.mubr.bf16.mxu0 0
          %1952 = vmatmul.mubr.bf16.gmra.mrb[0].mxu0 %v1805
          %v1953 = vpop.f32.mrb[0].mxu0
          %v1954 = vadd.f32 %v1829, %v1953
          %v1955 = vpop.f32.mrb[0].mxu0
          %v1956 = vpop.f32.mrb[0].mxu0
          %v1957 = vadd.f32 %v1829, %v1956
          %v1958 = vpop.f32.mrb[0].mxu0
          %1959 = vmatprep.mubr.bf16.mxu0 0
          %1960 = vmatmul.mubr.bf16.gmra.mrb[0].mxu0 %v1806
          %v1961 = vpop.f32.mrb[0].mxu0
          %v1962 = vadd.f32 %v1829, %v1961
          %v1963 = vpop.f32.mrb[0].mxu0
          %v1964 = vpop.f32.mrb[0].mxu0
          %v1965 = vadd.f32 %v1829, %v1964
          %v1966 = vpop.f32.mrb[0].mxu0
          %1967 = vmatprep.mubr.bf16.mxu0 0
          %1968 = vmatmul.mubr.bf16.gmra.mrb[0].mxu0 %v1807
          %v1969 = vpop.f32.mrb[0].mxu0
          %v1970 = vadd.f32 %v1829, %v1969
          %v1971 = vpop.f32.mrb[0].mxu0
          %v1972 = vpop.f32.mrb[0].mxu0
          %v1973 = vadd.f32 %v1829, %v1972
          %v1974 = vpop.f32.mrb[0].mxu0
          %1975 = vdwg.mxu0
          %v1976 = vmax.f32 %v1914, 0.0
          %v1977 = vmax.f32 %v1917, 0.0
          %v1978 = vmax.f32 %v1922, 0.0
          %v1979 = vmax.f32 %v1925, 0.0
          %v1980 = vmax.f32 %v1930, 0.0
          %v1981 = vmax.f32 %v1933, 0.0
          %v1982 = vmax.f32 %v1938, 0.0
          %v1983 = vmax.f32 %v1941, 0.0
          %v1984 = vmax.f32 %v1946, 0.0
          %v1985 = vmax.f32 %v1949, 0.0
          %v1986 = vmax.f32 %v1954, 0.0
          %v1987 = vmax.f32 %v1957, 0.0
          %v1988 = vmax.f32 %v1962, 0.0
          %v1989 = vmax.f32 %v1965, 0.0
          %v1990 = vmax.f32 %v1970, 0.0
          %v1991 = vmax.f32 %v1973, 0.0
          %v1992 = vpack.c.bf16 %v1977, %v1976
          %v1993 = vpack.c.bf16 %v1979, %v1978
          %v1994 = vpack.c.bf16 %v1981, %v1980
          %v1995 = vpack.c.bf16 %v1983, %v1982
          %v1996 = vpack.c.bf16 %v1985, %v1984
          %v1997 = vpack.c.bf16 %v1987, %v1986
          %v1998 = vpack.c.bf16 %v1989, %v1988
          %v1999 = vpack.c.bf16 %v1991, %v1990
          %v2000 = vld [vmem:[%s414] sm:$0xf]
          %v2001 = vld [vmem:[%s414 + $0x4] sm:$0xf]
          %v2002 = vld [vmem:[%s414 + $0x8] sm:$0xf]
          %v2003 = vld [vmem:[%s414 + $0xc] sm:$0xf]
          %v2004 = vld [vmem:[%s414 + $0x10] sm:$0xf]
          %v2005 = vld [vmem:[%s414 + $0x14] sm:$0xf]
          %v2006 = vld [vmem:[%s414 + $0x18] sm:$0xf]
          %v2007 = vld [vmem:[%s414 + $0x1c] sm:$0xf]
          %v2008 = vld [vmem:[%s414 + $0x20] sm:$0xf]
          %v2009 = vld [vmem:[%s414 + $0x24] sm:$0xf]
          %v2010 = vld [vmem:[%s414 + $0x28] sm:$0xf]
          %v2011 = vld [vmem:[%s414 + $0x2c] sm:$0xf]
          %v2012 = vld [vmem:[%s414 + $0x30] sm:$0xf]
          %v2013 = vld [vmem:[%s414 + $0x34] sm:$0xf]
          %v2014 = vld [vmem:[%s414 + $0x38] sm:$0xf]
          %v2015 = vld [vmem:[%s414 + $0x3c] sm:$0xf]
          %v2016 = vld [vmem:[%s468] sm:$0x1]
          %v2018 = vlaneseq
          %v2019 = vshrl.u32 %v2018, 7
          %v2020 = vsub.s32 0, %v2019
          %v2021 = vrot.slane %v2016, %v2020
          %v2039 = vunpack.c.l.b16 %v2000
          %v2040 = vunpack.c.l.b16 %v2001
          %v2041 = vunpack.c.l.b16 %v2002
          %v2042 = vunpack.c.l.b16 %v2003
          %v2043 = vunpack.c.l.b16 %v2004
          %v2044 = vunpack.c.l.b16 %v2005
          %v2045 = vunpack.c.l.b16 %v2006
          %v2046 = vunpack.c.l.b16 %v2007
          %v2047 = vunpack.c.l.b16 %v2008
          %v2048 = vunpack.c.l.b16 %v2009
          %v2049 = vunpack.c.l.b16 %v2010
          %v2050 = vunpack.c.l.b16 %v2011
          %v2051 = vunpack.c.l.b16 %v2012
          %v2052 = vunpack.c.l.b16 %v2013
          %v2053 = vunpack.c.l.b16 %v2014
          %v2054 = vunpack.c.l.b16 %v2015
          %v2055 = vpack.c.b16 %v2040, %v2039
          %v2056 = vpack.c.b16 %v2042, %v2041
          %v2057 = vpack.c.b16 %v2044, %v2043
          %v2058 = vpack.c.b16 %v2046, %v2045
          %v2059 = vpack.c.b16 %v2048, %v2047
          %v2060 = vpack.c.b16 %v2050, %v2049
          %v2061 = vpack.c.b16 %v2052, %v2051
          %v2062 = vpack.c.b16 %v2054, %v2053
          %2071 = vmatprep.subr.bf16.mxu0 0
          %2072 = vmatpush1.bf16.msra.mxu0 %v2055
          %2073 = vmatprep.subr.bf16.mxu0 0
          %2074 = vmatpush1.bf16.msra.mxu0 %v2056
          %2075 = vmatprep.subr.bf16.mxu0 0
          %2076 = vmatpush1.bf16.msra.mxu0 %v2057
          %2077 = vmatprep.subr.bf16.mxu0 0
          %2078 = vmatpush1.bf16.msra.mxu0 %v2058
          %2079 = vmatprep.subr.bf16.mxu0 0
          %2080 = vmatpush1.bf16.msra.mxu0 %v2059
          %2081 = vmatprep.subr.bf16.mxu0 0
          %2082 = vmatpush1.bf16.msra.mxu0 %v2060
          %2083 = vmatprep.subr.bf16.mxu0 0
          %2084 = vmatpush1.bf16.msra.mxu0 %v2061
          %2085 = vmatprep.subr.bf16.mxu0 0
          %2086 = vmatpush1.bf16.msra.mxu0 %v2062
          %2087 = vmatprep.subr.bf16.mxu0 0
          %2088 = vmatpush1.bf16.msra.mxu0 0
          %2089 = vmatprep.subr.bf16.mxu0 0
          %2090 = vmatpush1.bf16.msra.mxu0 0
          %2091 = vmatprep.subr.bf16.mxu0 0
          %2092 = vmatpush1.bf16.msra.mxu0 0
          %2093 = vmatprep.subr.bf16.mxu0 0
          %2094 = vmatpush1.bf16.msra.mxu0 0
          %2095 = vmatprep.subr.bf16.mxu0 0
          %2096 = vmatpush1.bf16.msra.mxu0 0
          %2097 = vmatprep.subr.bf16.mxu0 0
          %2098 = vmatpush1.bf16.msra.mxu0 0
          %2099 = vmatprep.subr.bf16.mxu0 0
          %2100 = vmatpush1.bf16.msra.mxu0 0
          %2101 = vmatprep.subr.bf16.mxu0 0
          %2102 = vmatpush1.bf16.msra.mxu0 0
          %2103 = vmatprep.mubr.bf16.mxu0 0
          %2104 = vmatmul.mubr.bf16.gmra.mrb[0].mxu0 %v1992
          %v2105 = vpop.f32.mrb[0].mxu0
          %v2106 = vadd.f32 %v2021, %v2105
          %v2107 = vpop.f32.mrb[0].mxu0
          %v2108 = vpop.f32.mrb[0].mxu0
          %v2109 = vadd.f32 %v2021, %v2108
          %v2110 = vpop.f32.mrb[0].mxu0
          %2111 = vmatprep.mubr.bf16.mxu0 0
          %2112 = vmatmul.mubr.bf16.gmra.mrb[0].mxu0 %v1993
          %v2113 = vpop.f32.mrb[0].mxu0
          %v2114 = vadd.f32 %v2021, %v2113
          %v2115 = vpop.f32.mrb[0].mxu0
          %v2116 = vpop.f32.mrb[0].mxu0
          %v2117 = vadd.f32 %v2021, %v2116
          %v2118 = vpop.f32.mrb[0].mxu0
          %2119 = vmatprep.mubr.bf16.mxu0 0
          %2120 = vmatmul.mubr.bf16.gmra.mrb[0].mxu0 %v1994
          %v2121 = vpop.f32.mrb[0].mxu0
          %v2122 = vadd.f32 %v2021, %v2121
          %v2123 = vpop.f32.mrb[0].mxu0
          %v2124 = vpop.f32.mrb[0].mxu0
          %v2125 = vadd.f32 %v2021, %v2124
          %v2126 = vpop.f32.mrb[0].mxu0
          %2127 = vmatprep.mubr.bf16.mxu0 0
          %2128 = vmatmul.mubr.bf16.gmra.mrb[0].mxu0 %v1995
          %v2129 = vpop.f32.mrb[0].mxu0
          %v2130 = vadd.f32 %v2021, %v2129
          %v2131 = vpop.f32.mrb[0].mxu0
          %v2132 = vpop.f32.mrb[0].mxu0
          %v2133 = vadd.f32 %v2021, %v2132
          %v2134 = vpop.f32.mrb[0].mxu0
          %2135 = vmatprep.mubr.bf16.mxu0 0
          %2136 = vmatmul.mubr.bf16.gmra.mrb[0].mxu0 %v1996
          %v2137 = vpop.f32.mrb[0].mxu0
          %v2138 = vadd.f32 %v2021, %v2137
          %v2139 = vpop.f32.mrb[0].mxu0
          %v2140 = vpop.f32.mrb[0].mxu0
          %v2141 = vadd.f32 %v2021, %v2140
          %v2142 = vpop.f32.mrb[0].mxu0
          %2143 = vmatprep.mubr.bf16.mxu0 0
          %2144 = vmatmul.mubr.bf16.gmra.mrb[0].mxu0 %v1997
          %v2145 = vpop.f32.mrb[0].mxu0
          %v2146 = vadd.f32 %v2021, %v2145
          %v2147 = vpop.f32.mrb[0].mxu0
          %v2148 = vpop.f32.mrb[0].mxu0
          %v2149 = vadd.f32 %v2021, %v2148
          %v2150 = vpop.f32.mrb[0].mxu0
          %2151 = vmatprep.mubr.bf16.mxu0 0
          %2152 = vmatmul.mubr.bf16.gmra.mrb[0].mxu0 %v1998
          %v2153 = vpop.f32.mrb[0].mxu0
          %v2154 = vadd.f32 %v2021, %v2153
          %v2155 = vpop.f32.mrb[0].mxu0
          %v2156 = vpop.f32.mrb[0].mxu0
          %v2157 = vadd.f32 %v2021, %v2156
          %v2158 = vpop.f32.mrb[0].mxu0
          %2159 = vmatprep.mubr.bf16.mxu0 0
          %2160 = vmatmul.mubr.bf16.gmra.mrb[0].mxu0 %v1999
          %v2161 = vpop.f32.mrb[0].mxu0
          %v2162 = vadd.f32 %v2021, %v2161
          %v2163 = vpop.f32.mrb[0].mxu0
          %v2164 = vpop.f32.mrb[0].mxu0
          %v2165 = vadd.f32 %v2021, %v2164
          %v2166 = vpop.f32.mrb[0].mxu0
          %2167 = vdwg.mxu0
          %v2168 = vmax.f32 %v2106, 0.0
          %v2169 = vmax.f32 %v2109, 0.0
          %v2170 = vmax.f32 %v2114, 0.0
          %v2171 = vmax.f32 %v2117, 0.0
          %v2172 = vmax.f32 %v2122, 0.0
          %v2173 = vmax.f32 %v2125, 0.0
          %v2174 = vmax.f32 %v2130, 0.0
          %v2175 = vmax.f32 %v2133, 0.0
          %v2176 = vmax.f32 %v2138, 0.0
          %v2177 = vmax.f32 %v2141, 0.0
          %v2178 = vmax.f32 %v2146, 0.0
          %v2179 = vmax.f32 %v2149, 0.0
          %v2180 = vmax.f32 %v2154, 0.0
          %v2181 = vmax.f32 %v2157, 0.0
          %v2182 = vmax.f32 %v2162, 0.0
          %v2183 = vmax.f32 %v2165, 0.0
          %v2184 = vld [vmem:[#allocation4] sm:$0xff]
          %v2185 = vld [vmem:[#allocation4 + $0x8] sm:$0xff]
          %v2186 = vld [vmem:[#allocation7] sm:$0xf]
          %v2187 = vld [vmem:[#allocation7 + $0x4] sm:$0xf]
          %v2188 = vpack.c.bf16 %v2169, %v2168
          %v2189 = vpack.c.bf16 %v2171, %v2170
          %v2190 = vpack.c.bf16 %v2173, %v2172
          %v2191 = vpack.c.bf16 %v2175, %v2174
          %v2192 = vpack.c.bf16 %v2177, %v2176
          %v2193 = vpack.c.bf16 %v2179, %v2178
          %v2194 = vpack.c.bf16 %v2181, %v2180
          %v2195 = vpack.c.bf16 %v2183, %v2182
          %v2198 = vunpack.c.l.b16 %v2186
          %v2199 = vunpack.c.l.b16 %v2187
          %v2200 = vpack.c.b16 %v2199, %v2198
          %2202 = vmatprep.subr.bf16.mxu0 0
          %2203 = vmatpush1.bf16.msra.mxu0 %v2188
          %2204 = vmatprep.subr.bf16.mxu0 0
          %2205 = vmatpush1.bf16.msra.mxu0 %v2189
          %2206 = vmatprep.subr.bf16.mxu0 0
          %2207 = vmatpush1.bf16.msra.mxu0 %v2190
          %2208 = vmatprep.subr.bf16.mxu0 0
          %2209 = vmatpush1.bf16.msra.mxu0 %v2191
          %2210 = vmatprep.subr.bf16.mxu0 0
          %2211 = vmatpush1.bf16.msra.mxu0 %v2192
          %2212 = vmatprep.subr.bf16.mxu0 0
          %2213 = vmatpush1.bf16.msra.mxu0 %v2193
          %2214 = vmatprep.subr.bf16.mxu0 0
          %2215 = vmatpush1.bf16.msra.mxu0 %v2194
          %2216 = vmatprep.subr.bf16.mxu0 0
          %2217 = vmatpush1.bf16.msra.mxu0 %v2195
          %2218 = vmatprep.subr.bf16.mxu0 0
          %2219 = vmatpush1.bf16.msra.mxu0 0
          %2220 = vmatprep.subr.bf16.mxu0 0
          %2221 = vmatpush1.bf16.msra.mxu0 0
          %2222 = vmatprep.subr.bf16.mxu0 0
          %2223 = vmatpush1.bf16.msra.mxu0 0
          %2224 = vmatprep.subr.bf16.mxu0 0
          %2225 = vmatpush1.bf16.msra.mxu0 0
          %2226 = vmatprep.subr.bf16.mxu0 0
          %2227 = vmatpush1.bf16.msra.mxu0 0
          %2228 = vmatprep.subr.bf16.mxu0 0
          %2229 = vmatpush1.bf16.msra.mxu0 0
          %2230 = vmatprep.subr.bf16.mxu0 0
          %2231 = vmatpush1.bf16.msra.mxu0 0
          %2232 = vmatprep.subr.bf16.mxu0 0
          %2233 = vmatpush1.bf16.msra.mxu0 0
          %2234 = vmatprep.mubr.bf16.mxu0 0
          %2235 = vmatmul.mubr.bf16.gmra.mrb[0].mxu0 %v2200
          %v2236 = vpop.f32.mrb[0].mxu0
          %v2237 = vadd.f32 0.0, %v2236
          %v2238 = vpop.f32.mrb[0].mxu0
          %v2239 = vpop.f32.mrb[0].mxu0
          %v2240 = vadd.f32 0.0, %v2239
          %v2241 = vpop.f32.mrb[0].mxu0
          %2242 = vdwg.mxu0
          %v2243 = vadd.f32 %v2184, %v2237
          %v2244 = vadd.f32 %v2185, %v2240
          %2245 = vst [vmem:[#allocation4] sm:$0xff] %v2243
          %2246 = vst [vmem:[#allocation4 + $0x8] sm:$0xff] %v2244
        $region100: #{tpu_custom_call.1} parent=55 // pred_fallthru
          _
        %p2247 = pnand %p1637, %p472
        %p2248 = pneg %p2247
        // Predicated region
        $region101: #{tpu_custom_call.1} parent=55 // pred_check
          _
        $region102: #{tpu_custom_call.1} parent=55 // pred_check_branch
          %2250 = sbr.rel (%p2247) target = $region104
        $region103: #{tpu_custom_call.1} parent=55 // pred_region
          %v2251 = vld [vmem:[#allocation4] sm:$0xff]
          %v2252 = vld [vmem:[#allocation4 + $0x8] sm:$0xff]
          %v2253 = vpack.c.bf16 %v2252, %v2251
          %v2254 = vld [vmem:[#allocation13] sm:$0xf]
          %v2255 = vld [vmem:[#allocation13 + $0x4] sm:$0xf]
          %v2256 = vld [vmem:[#allocation13 + $0x8] sm:$0xf]
          %v2257 = vld [vmem:[#allocation13 + $0xc] sm:$0xf]
          %v2258 = vld [vmem:[#allocation13 + $0x10] sm:$0xf]
          %v2259 = vld [vmem:[#allocation13 + $0x14] sm:$0xf]
          %v2260 = vld [vmem:[#allocation13 + $0x18] sm:$0xf]
          %v2261 = vld [vmem:[#allocation13 + $0x1c] sm:$0xf]
          %v2262 = vld [vmem:[#allocation13 + $0x20] sm:$0xf]
          %v2263 = vld [vmem:[#allocation13 + $0x24] sm:$0xf]
          %v2264 = vld [vmem:[#allocation13 + $0x28] sm:$0xf]
          %v2265 = vld [vmem:[#allocation13 + $0x2c] sm:$0xf]
          %v2266 = vld [vmem:[#allocation13 + $0x30] sm:$0xf]
          %v2267 = vld [vmem:[#allocation13 + $0x34] sm:$0xf]
          %v2268 = vld [vmem:[#allocation13 + $0x38] sm:$0xf]
          %v2269 = vld [vmem:[#allocation13 + $0x3c] sm:$0xf]
          %v2270 = vld [vmem:[%s8] sm:$0x1]
          %v2272 = vlaneseq
          %v2273 = vshrl.u32 %v2272, 7
          %v2274 = vsub.s32 0, %v2273
          %v2275 = vrot.slane %v2270, %v2274
          %v2293 = vunpack.c.l.b16 %v2254
          %v2294 = vunpack.c.l.b16 %v2255
          %v2295 = vunpack.c.l.b16 %v2256
          %v2296 = vunpack.c.l.b16 %v2257
          %v2297 = vunpack.c.l.b16 %v2258
          %v2298 = vunpack.c.l.b16 %v2259
          %v2299 = vunpack.c.l.b16 %v2260
          %v2300 = vunpack.c.l.b16 %v2261
          %v2301 = vunpack.c.l.b16 %v2262
          %v2302 = vunpack.c.l.b16 %v2263
          %v2303 = vunpack.c.l.b16 %v2264
          %v2304 = vunpack.c.l.b16 %v2265
          %v2305 = vunpack.c.l.b16 %v2266
          %v2306 = vunpack.c.l.b16 %v2267
          %v2307 = vunpack.c.l.b16 %v2268
          %v2308 = vunpack.c.l.b16 %v2269
          %v2309 = vpack.c.b16 %v2294, %v2293
          %v2310 = vpack.c.b16 %v2296, %v2295
          %v2311 = vpack.c.b16 %v2298, %v2297
          %v2312 = vpack.c.b16 %v2300, %v2299
          %v2313 = vpack.c.b16 %v2302, %v2301
          %v2314 = vpack.c.b16 %v2304, %v2303
          %v2315 = vpack.c.b16 %v2306, %v2305
          %v2316 = vpack.c.b16 %v2308, %v2307
          %2325 = vmatprep.subr.bf16.mxu0 0
          %2326 = vmatpush1.bf16.msra.mxu0 %v2309
          %2327 = vmatprep.subr.bf16.mxu0 0
          %2328 = vmatpush1.bf16.msra.mxu0 %v2310
          %2329 = vmatprep.subr.bf16.mxu0 0
          %2330 = vmatpush1.bf16.msra.mxu0 %v2311
          %2331 = vmatprep.subr.bf16.mxu0 0
          %2332 = vmatpush1.bf16.msra.mxu0 %v2312
          %2333 = vmatprep.subr.bf16.mxu0 0
          %2334 = vmatpush1.bf16.msra.mxu0 %v2313
          %2335 = vmatprep.subr.bf16.mxu0 0
          %2336 = vmatpush1.bf16.msra.mxu0 %v2314
          %2337 = vmatprep.subr.bf16.mxu0 0
          %2338 = vmatpush1.bf16.msra.mxu0 %v2315
          %2339 = vmatprep.subr.bf16.mxu0 0
          %2340 = vmatpush1.bf16.msra.mxu0 %v2316
          %2341 = vmatprep.subr.bf16.mxu0 0
          %2342 = vmatpush1.bf16.msra.mxu0 0
          %2343 = vmatprep.subr.bf16.mxu0 0
          %2344 = vmatpush1.bf16.msra.mxu0 0
          %2345 = vmatprep.subr.bf16.mxu0 0
          %2346 = vmatpush1.bf16.msra.mxu0 0
          %2347 = vmatprep.subr.bf16.mxu0 0
          %2348 = vmatpush1.bf16.msra.mxu0 0
          %2349 = vmatprep.subr.bf16.mxu0 0
          %2350 = vmatpush1.bf16.msra.mxu0 0
          %2351 = vmatprep.subr.bf16.mxu0 0
          %2352 = vmatpush1.bf16.msra.mxu0 0
          %2353 = vmatprep.subr.bf16.mxu0 0
          %2354 = vmatpush1.bf16.msra.mxu0 0
          %2355 = vmatprep.subr.bf16.mxu0 0
          %2356 = vmatpush1.bf16.msra.mxu0 0
          %2357 = vmatprep.mubr.bf16.mxu0 0
          %2358 = vmatmul.mubr.bf16.gmra.mrb[0].mxu0 %v2253
          %v2359 = vpop.f32.mrb[0].mxu0
          %v2360 = vadd.f32 %v2275, %v2359
          %v2361 = vpop.f32.mrb[0].mxu0
          %v2362 = vpop.f32.mrb[0].mxu0
          %v2363 = vadd.f32 %v2275, %v2362
          %v2364 = vpop.f32.mrb[0].mxu0
          %2365 = vdwg.mxu0
          %v2366 = vmax.f32 %v2360, 0.0
          %v2367 = vmax.f32 %v2363, 0.0
          %v2368 = vpack.c.bf16 %v2367, %v2366
          %v2369 = vld [vmem:[#allocation15] sm:$0xf]
          %v2370 = vld [vmem:[#allocation15 + $0x4] sm:$0xf]
          %v2371 = vld [vmem:[#allocation15 + $0x8] sm:$0xf]
          %v2372 = vld [vmem:[#allocation15 + $0xc] sm:$0xf]
          %v2373 = vld [vmem:[#allocation15 + $0x10] sm:$0xf]
          %v2374 = vld [vmem:[#allocation15 + $0x14] sm:$0xf]
          %v2375 = vld [vmem:[#allocation15 + $0x18] sm:$0xf]
          %v2376 = vld [vmem:[#allocation15 + $0x1c] sm:$0xf]
          %v2377 = vld [vmem:[#allocation15 + $0x20] sm:$0xf]
          %v2378 = vld [vmem:[#allocation15 + $0x24] sm:$0xf]
          %v2379 = vld [vmem:[#allocation15 + $0x28] sm:$0xf]
          %v2380 = vld [vmem:[#allocation15 + $0x2c] sm:$0xf]
          %v2381 = vld [vmem:[#allocation15 + $0x30] sm:$0xf]
          %v2382 = vld [vmem:[#allocation15 + $0x34] sm:$0xf]
          %v2383 = vld [vmem:[#allocation15 + $0x38] sm:$0xf]
          %v2384 = vld [vmem:[#allocation15 + $0x3c] sm:$0xf]
          %v2385 = vld [vmem:[%s10] sm:$0x1]
          %v2387 = vlaneseq
          %v2388 = vshrl.u32 %v2387, 7
          %v2389 = vsub.s32 0, %v2388
          %v2390 = vrot.slane %v2385, %v2389
          %v2408 = vunpack.c.l.b16 %v2369
          %v2409 = vunpack.c.l.b16 %v2370
          %v2410 = vunpack.c.l.b16 %v2371
          %v2411 = vunpack.c.l.b16 %v2372
          %v2412 = vunpack.c.l.b16 %v2373
          %v2413 = vunpack.c.l.b16 %v2374
          %v2414 = vunpack.c.l.b16 %v2375
          %v2415 = vunpack.c.l.b16 %v2376
          %v2416 = vunpack.c.l.b16 %v2377
          %v2417 = vunpack.c.l.b16 %v2378
          %v2418 = vunpack.c.l.b16 %v2379
          %v2419 = vunpack.c.l.b16 %v2380
          %v2420 = vunpack.c.l.b16 %v2381
          %v2421 = vunpack.c.l.b16 %v2382
          %v2422 = vunpack.c.l.b16 %v2383
          %v2423 = vunpack.c.l.b16 %v2384
          %v2424 = vpack.c.b16 %v2409, %v2408
          %v2425 = vpack.c.b16 %v2411, %v2410
          %v2426 = vpack.c.b16 %v2413, %v2412
          %v2427 = vpack.c.b16 %v2415, %v2414
          %v2428 = vpack.c.b16 %v2417, %v2416
          %v2429 = vpack.c.b16 %v2419, %v2418
          %v2430 = vpack.c.b16 %v2421, %v2420
          %v2431 = vpack.c.b16 %v2423, %v2422
          %2440 = vmatprep.subr.bf16.mxu0 0
          %2441 = vmatpush1.bf16.msra.mxu0 %v2424
          %2442 = vmatprep.subr.bf16.mxu0 0
          %2443 = vmatpush1.bf16.msra.mxu0 %v2425
          %2444 = vmatprep.subr.bf16.mxu0 0
          %2445 = vmatpush1.bf16.msra.mxu0 %v2426
          %2446 = vmatprep.subr.bf16.mxu0 0
          %2447 = vmatpush1.bf16.msra.mxu0 %v2427
          %2448 = vmatprep.subr.bf16.mxu0 0
          %2449 = vmatpush1.bf16.msra.mxu0 %v2428
          %2450 = vmatprep.subr.bf16.mxu0 0
          %2451 = vmatpush1.bf16.msra.mxu0 %v2429
          %2452 = vmatprep.subr.bf16.mxu0 0
          %2453 = vmatpush1.bf16.msra.mxu0 %v2430
          %2454 = vmatprep.subr.bf16.mxu0 0
          %2455 = vmatpush1.bf16.msra.mxu0 %v2431
          %2456 = vmatprep.subr.bf16.mxu0 0
          %2457 = vmatpush1.bf16.msra.mxu0 0
          %2458 = vmatprep.subr.bf16.mxu0 0
          %2459 = vmatpush1.bf16.msra.mxu0 0
          %2460 = vmatprep.subr.bf16.mxu0 0
          %2461 = vmatpush1.bf16.msra.mxu0 0
          %2462 = vmatprep.subr.bf16.mxu0 0
          %2463 = vmatpush1.bf16.msra.mxu0 0
          %2464 = vmatprep.subr.bf16.mxu0 0
          %2465 = vmatpush1.bf16.msra.mxu0 0
          %2466 = vmatprep.subr.bf16.mxu0 0
          %2467 = vmatpush1.bf16.msra.mxu0 0
          %2468 = vmatprep.subr.bf16.mxu0 0
          %2469 = vmatpush1.bf16.msra.mxu0 0
          %2470 = vmatprep.subr.bf16.mxu0 0
          %2471 = vmatpush1.bf16.msra.mxu0 0
          %2472 = vmatprep.mubr.bf16.mxu0 0
          %2473 = vmatmul.mubr.bf16.gmra.mrb[0].mxu0 %v2368
          %v2474 = vpop.f32.mrb[0].mxu0
          %v2475 = vadd.f32 %v2390, %v2474
          %v2476 = vpop.f32.mrb[0].mxu0
          %v2477 = vpop.f32.mrb[0].mxu0
          %v2478 = vadd.f32 %v2390, %v2477
          %v2479 = vpop.f32.mrb[0].mxu0
          %2480 = vdwg.mxu0
          %2481 = vmax.xlane.f32.xlu0 %v2475
          %v2482 = vpop.xlane.xlu0 %2481
          %2483 = vmax.xlane.f32.xlu0 %v2478
          %v2484 = vpop.xlane.xlu0 %2483
          %v2485 = vsub.f32 %v2475, %v2482
          %v2486 = vsub.f32 %v2478, %v2484
          %v2487 = vmul.f32 %v2485, 1.442695
          %v2488 = vpow.pop %v2487
          %v2489 = vmul.f32 %v2486, 1.442695
          %v2490 = vpow.pop %v2489
          %2491 = vadd.xlane.f32.xlu0 %v2488
          %v2492 = vpop.xlane.xlu0 %2491
          %2493 = vadd.xlane.f32.xlu0 %v2490
          %v2494 = vpop.xlane.xlu0 %2493
          %v2495 = vlog2.pop %v2492
          %v2496 = vmul.f32 %v2495, 0.6931472
          %v2497 = vlog2.pop %v2494
          %v2498 = vmul.f32 %v2497, 0.6931472
          %v2499 = vsub.f32 %v2485, %v2496
          %v2500 = vsub.f32 %v2486, %v2498
          %2501 = vst [vmem:[#allocation16] sm:$0xff] %v2499
          %2502 = vst [vmem:[#allocation16 + $0x8] sm:$0xff] %v2500
        $region104: #{tpu_custom_call.1} parent=55 // pred_fallthru
          _
        // Predicated region
        $region105: #{tpu_custom_call.1} parent=55 // pred_check
          %p2503 = pneg %p267
        $region106: #{tpu_custom_call.1} parent=55 // pred_check_branch
          %2505 = sbr.rel (%p2503) target = $region108
        $region107: #{tpu_custom_call.1} parent=55 // pred_region
          %s2507 = ssub.s32 256, 256
          %2508 = vsyncadd [#allocation9], %s2507
          %s2509 = sshll.u32 [#allocation16], 4
          %s2510 = int_to_ptr.vmem [resolvable:$true] %s2509
          %2515 = dma.vmem_to_hbm [thread:$0]  %s2510, 256, %s11, [#allocation9], 128, 128, 8
        $region108: #{tpu_custom_call.1} parent=55 // pred_fallthru
          _
        // Predicated region
        $region109: #{tpu_custom_call.1} parent=55 // pred_check
          %p2516 = pneg %p267
        $region110: #{tpu_custom_call.1} parent=55 // pred_check_branch
          %2518 = sbr.rel (%p2516) target = $region112
        $region111: #{tpu_custom_call.1} parent=55 // pred_region
          %2519 = dma.done [#allocation9], 256
        $region112: #{tpu_custom_call.1} parent=55 // pred_fallthru
          _
      $region56: #{tpu_custom_call.1} parent=5 // pred_fallthru
        _
      %p2520 = scmp.le.s32.totalorder 2, %s23
      // Predicated region
      $region113: #{tpu_custom_call.1} parent=5 // pred_check
        %p2521 = pneg %p2520
      $region114: #{tpu_custom_call.1} parent=5 // pred_check_branch
        %2523 = sbr.rel (%p2521) target = $region116
      $region115: #{tpu_custom_call.1} parent=5 // pred_region
        %s2524 = ssub.s32 %s23, 2
      $region116: #{tpu_custom_call.1} parent=5 // pred_fallthru
        _
    $region6: #{tpu_custom_call.1} parent=1 // loop_footer
      %s27 = sadd.s32 1, %s23
    $region7: #{tpu_custom_call.1} parent=1 // loop_footer_branch
      %22 = sbr.rel target = $region3
    $region8: #{tpu_custom_call.1} parent=1 // loop_exit
      _
    %2525 = vsyncpa [#allocation8], 1
    %s2526 = scalar_lea.sflag [#allocation8], 1
    %2527 = vsyncpa %s2526, 1
    %2528 = vsyncpa [#allocation11], 1
    %s2529 = scalar_lea.sflag [#allocation11], 1
    %2530 = vsyncpa %s2529, 1
    %2531 = vsyncpa [#allocation14], 1
    %2532 = vsyncpa [#allocation9], 1
    %s2533 = scalar_lea.sflag [#allocation9], 1
    %2534 = vsyncpa %s2533, 1
  %2535 = vsyncmov [#allocation6]
  %s2536 = vpop.sfrf %2535
  %p2537 = scmp.eq.s32.totalorder %s2536, 0
  %p2538 = pneg %p2537
  %2540 = shalt.err (%p2538)
  %s2541 = scalar_lea.sflag [#allocation6], 1
  %2542 = vsyncmov %s2541
  %s2543 = vpop.sfrf %2542
  %p2544 = scmp.eq.s32.totalorder %s2543, 0
  %p2545 = pneg %p2544
  %2547 = shalt.err (%p2545)

</llo_original>
